<compile_context>
chip_gen: v5e
topology: v5e:2x2
jax: 0.10.0
libtpu: 0.0.40
codegen_flags: <defaults>
</compile_context>

<pallas_src>
import jax
import jax.numpy as jnp
from jax.experimental import pallas as pl
from jax.experimental.pallas import tpu as pltpu


def _identity_message_kernel(z_src_ref, z_dst_ref, raw_msg_ref, t_enc_ref, out_ref):
    # One full-block store: lane placement happens on VPU/XLU slots (idle in
    # this copy kernel) instead of 4 serialized masked stores on the vst slot.
    out_ref[...] = jnp.concatenate(
        [z_src_ref[...], z_dst_ref[...], raw_msg_ref[...], t_enc_ref[...]],
        axis=-1)


def _min_sublane_multiple(dtype) -> int:
    # Sub-32-bit dtypes pack along sublanes: f32 -> 8, bf16 -> 16, int8 -> 32.
    itemsize = jnp.dtype(dtype).itemsize
    return max(8, (8 * 4) // max(1, itemsize))


def _round_up(x: int, m: int) -> int:
    return ((x + m - 1) // m) * m


def identity_message(z_src, z_dst, raw_msg, t_enc, *,
                     row_tile: int = 4096,
                     vmem_budget_bytes: int = 12 * 1024 * 1024,
                     small_n_threshold: int = 16384,
                     force_pallas: bool = False):
    n, memory_dim = z_src.shape
    assert z_dst.shape == (n, memory_dim)
    assert raw_msg.shape[0] == n and t_enc.shape[0] == n
    assert z_src.dtype == z_dst.dtype == raw_msg.dtype == t_enc.dtype
    raw_msg_dim = raw_msg.shape[-1]
    time_dim = t_enc.shape[-1]
    out_channels = raw_msg_dim + 2 * memory_dim + time_dim
    dtype = z_src.dtype
    itemsize = jnp.dtype(dtype).itemsize

    # Small batches: pallas_call launch + per-step overhead dominates; XLA's
    # fused concat copy matches or beats the kernel.  Keep exact semantics.
    if n < small_n_threshold and not force_pallas:
        return jnp.concatenate([z_src, z_dst, raw_msg, t_enc], axis=-1)

    # --- VMEM accounting with lane padding (each block pads to 128 lanes) ---
    def lane_pad(d):
        return _round_up(d, 128)

    padded_cols = (2 * lane_pad(memory_dim) + lane_pad(raw_msg_dim)
                   + lane_pad(time_dim) + lane_pad(out_channels))
    # (inputs + output), each double-buffered by the Pallas pipeline.
    bytes_per_row = 2 * padded_cols * itemsize

    sub = _min_sublane_multiple(dtype)
    vmem_cap_rows = max(sub, ((vmem_budget_bytes // bytes_per_row) // sub) * sub)
    rt = min(_round_up(max(1, row_tile), sub), vmem_cap_rows, _round_up(n, sub))
    # v7x megacore: guarantee >= 2 grid steps whenever the batch is splittable
    # at sublane granularity, so dimension_semantics=("parallel",) can shard
    # work across both TensorCores.
    if n > 2 * sub:
        rt = min(rt, _round_up(pl.cdiv(n, 2), sub))
    rt = max(sub, rt)

    # Explicit scoped-VMEM limit from the *padded* working set (+25% headroom),
    # clamped so it exists on every generation (v7x has 32 MiB scoped default).
    working_set = rt * bytes_per_row
    vmem_limit = min(max(int(working_set * 1.25), 4 * 1024 * 1024),
                     32 * 1024 * 1024)

    grid = (pl.cdiv(n, rt),)  # ragged last tile handled by Pallas block padding
    return pl.pallas_call(
        _identity_message_kernel,
        out_shape=jax.ShapeDtypeStruct((n, out_channels), dtype),
        grid_spec=pltpu.PrefetchScalarGridSpec(
            num_scalar_prefetch=0,
            grid=grid,
            in_specs=[
                pl.BlockSpec((rt, memory_dim), lambda i: (i, 0)),
                pl.BlockSpec((rt, memory_dim), lambda i: (i, 0)),
                pl.BlockSpec((rt, raw_msg_dim), lambda i: (i, 0)),
                pl.BlockSpec((rt, time_dim), lambda i: (i, 0)),
            ],
            out_specs=pl.BlockSpec((rt, out_channels), lambda i: (i, 0)),
        ),
        compiler_params=pltpu.CompilerParams(
            dimension_semantics=("parallel",),
            vmem_limit_bytes=vmem_limit),
    )(z_src, z_dst, raw_msg, t_enc)


if __name__ == "__main__":
    # Module hyper-params (IdentityMessage.__init__): out_channels =
    # raw_msg_dim + 2 * memory_dim + time_dim.  No learnable parameters.
    raw_msg_dim = 16
    memory_dim = 32
    time_dim = 8
    num_events = 3000  # multiple of 8, not of the row tile -> exercises cdiv path

    key = jax.random.PRNGKey(0)
    k1, k2, k3, k4 = jax.random.split(key, 4)
    z_src = jax.random.normal(k1, (num_events, memory_dim), dtype=jnp.float32)
    z_dst = jax.random.normal(k2, (num_events, memory_dim), dtype=jnp.float32)
    raw_msg = jax.random.normal(k3, (num_events, raw_msg_dim), dtype=jnp.float32)
    t_enc = jax.random.normal(k4, (num_events, time_dim), dtype=jnp.float32)

    ref = jnp.concatenate([z_src, z_dst, raw_msg, t_enc], axis=-1)
    out_channels = raw_msg_dim + 2 * memory_dim + time_dim

    # 1) Pallas path with default (VMEM-budget + megacore clamped) tile.
    out = jax.block_until_ready(
        identity_message(z_src, z_dst, raw_msg, t_enc, force_pallas=True))
    assert out.shape == (num_events, out_channels)
    assert out.dtype == ref.dtype
    assert jnp.array_equal(out, ref)

    # 2) Pallas path with a small explicit tile: multi-step grid + ragged tail.
    out_tiled = jax.block_until_ready(
        identity_message(z_src, z_dst, raw_msg, t_enc,
                         row_tile=512, force_pallas=True))
    assert jnp.array_equal(out_tiled, ref)

    # 3) Small-n fallback path (what a real caller gets at this batch size).
    out_fb = jax.block_until_ready(
        identity_message(z_src, z_dst, raw_msg, t_enc))
    assert jnp.array_equal(out_fb, ref)

    print("KERNEL_OK")
</pallas_src>

<mosaic_0001>
module attributes {stable_mosaic.version = 11 : i64} {
  func.func @_identity_message_kernel(%arg0: i32, %arg1: memref<1504x32xf32, #tpu.memory_space<vmem>>, %arg2: memref<1504x32xf32, #tpu.memory_space<vmem>>, %arg3: memref<1504x16xf32, #tpu.memory_space<vmem>>, %arg4: memref<1504x8xf32, #tpu.memory_space<vmem>>, %arg5: memref<1504x88xf32, #tpu.memory_space<vmem>>) attributes {dimension_semantics = [#tpu.dimension_semantics<parallel>], iteration_bounds = array<i64: 2>, scalar_prefetch = 0 : i64, scratch_operands = 0 : i64, tpu.core_type = #tpu.core_type<tc>, window_params = [{transform_indices = @transform_0, window_bounds = array<i64: 1504, 32>}, {transform_indices = @transform_1, window_bounds = array<i64: 1504, 32>}, {transform_indices = @transform_2, window_bounds = array<i64: 1504, 16>}, {transform_indices = @transform_3, window_bounds = array<i64: 1504, 8>}, {transform_indices = @transform_4, window_bounds = array<i64: 1504, 88>}]} {
    %c0 = arith.constant 0 : index
    %c0_0 = arith.constant 0 : index
    %0 = vector.load %arg1[%c0, %c0_0] : memref<1504x32xf32, #tpu.memory_space<vmem>>, vector<1504x32xf32>
    %c0_1 = arith.constant 0 : index
    %c0_2 = arith.constant 0 : index
    %1 = vector.load %arg2[%c0_1, %c0_2] : memref<1504x32xf32, #tpu.memory_space<vmem>>, vector<1504x32xf32>
    %c0_3 = arith.constant 0 : index
    %c0_4 = arith.constant 0 : index
    %2 = vector.load %arg3[%c0_3, %c0_4] : memref<1504x16xf32, #tpu.memory_space<vmem>>, vector<1504x16xf32>
    %c0_5 = arith.constant 0 : index
    %c0_6 = arith.constant 0 : index
    %3 = vector.load %arg4[%c0_5, %c0_6] : memref<1504x8xf32, #tpu.memory_space<vmem>>, vector<1504x8xf32>
    %4 = tpu.concatenate %0, %1, %2, %3 in 1 : vector<1504x32xf32>, vector<1504x32xf32>, vector<1504x16xf32>, vector<1504x8xf32> -> vector<1504x88xf32>
    %c0_7 = arith.constant 0 : index
    %c0_8 = arith.constant 0 : index
    %5 = vector.load %arg5[%c0_7, %c0_8] : memref<1504x88xf32, #tpu.memory_space<vmem>>, vector<1504x88xf32>
    tpu.vector_store %arg5[%c0_7, %c0_8], %4 {strides = array<i32>} : memref<1504x88xf32, #tpu.memory_space<vmem>>, vector<1504x88xf32>,
    return
  }
  func.func @transform_0(%arg0: i32) -> (i32, i32) {
    %c0_i32 = arith.constant 0 : i32
    %c0_i32_0 = arith.constant 0 : i32
    return %arg0, %c0_i32 : i32, i32
  }
  func.func @transform_1(%arg0: i32) -> (i32, i32) {
    %c0_i32 = arith.constant 0 : i32
    %c0_i32_0 = arith.constant 0 : i32
    return %arg0, %c0_i32 : i32, i32
  }
  func.func @transform_2(%arg0: i32) -> (i32, i32) {
    %c0_i32 = arith.constant 0 : i32
    %c0_i32_0 = arith.constant 0 : i32
    return %arg0, %c0_i32 : i32, i32
  }
  func.func @transform_3(%arg0: i32) -> (i32, i32) {
    %c0_i32 = arith.constant 0 : i32
    %c0_i32_0 = arith.constant 0 : i32
    return %arg0, %c0_i32 : i32, i32
  }
  func.func @transform_4(%arg0: i32) -> (i32, i32) {
    %c0_i32 = arith.constant 0 : i32
    %c0_i32_0 = arith.constant 0 : i32
    return %arg0, %c0_i32 : i32, i32
  }
}

</mosaic_0001>

<llo_original>
// kernel: tpu_custom_call.1
$region0: #{tpu_custom_call.1}
  #allocation0 [shape = 'u32[]', space=smem, size = 0x4, offset = 0x4, fixed_abs, tag = 'smem constant byte address 0x4 - core index']
  #allocation1 [shape = 'u32[72,128]{1,0:T(1,128)}', space=vmem, size = 0x9000, scoped, tag = 'internal scratch']
  %s0 = inlined_call_operand.vmem [shape: f32[3000,32], index: 0, kind: input, shape index: {}]
  %s1 = inlined_call_operand.vmem [shape: f32[3000,32], index: 1, kind: input, shape index: {}]
  %s2 = inlined_call_operand.vmem [shape: f32[3000,16], index: 2, kind: input, shape index: {}]
  %s3 = inlined_call_operand.vmem [shape: f32[3000,8], index: 3, kind: input, shape index: {}]
  %s4 = inlined_call_operand.vmem [shape: f32[3000,88], index: 4, kind: output, shape index: {}]
  %s5 = sld [smem:[#allocation0]]
  $region97: #{tpu_custom_call.1} parent=0
    _
  %s7 = ssub.s32 1, %s5
  %s8 = scalar_select 0, %s7, %s5
  $region1: #{tpu_custom_call.1} parent=0
    #allocation2 [shape = 'u8[1540096]{0}', space=vmem, size = 0x178000, scoped, tag = 'output window, operand 0']
    loop: start=0, step=1, limit=4
    $region2: #{tpu_custom_call.1} parent=1 // loop_pre_header
      _
    $region3: #{tpu_custom_call.1} parent=1 // loop_header
      %s10 = sphi 0, %s14
      %p11 = scmp.ge.s32.totalorder %s10, 4
      %s20 = sphi 0, %s22
      %s23 = sphi 0, %s20
      %s24 = sphi 0, %s23
      %s40 = sphi 0, %s24
      %s46 = sphi 0, %s48
      %s49 = sphi 0, %s46
      %s50 = sphi 0, %s49
      %s66 = sphi 0, %s50
      %s72 = sphi 0, %s74
      %s75 = sphi 0, %s72
      %s76 = sphi 0, %s75
      %s92 = sphi 0, %s76
      %s98 = sphi 0, %s100
      %s101 = sphi 0, %s98
      %s102 = sphi 0, %s101
      %s118 = sphi 0, %s102
      %s124 = sphi 0, %s126
      %s127 = sphi 0, %s124
      %s128 = sphi 0, %s127
      %s144 = sphi 0, %s128
    $region4: #{tpu_custom_call.1} parent=1 // loop_header_branch
      %13 = sbr.rel (%p11) target = $region8
    $region5: #{tpu_custom_call.1} parent=1 // loop_body
      %s15 = ssub.s32 %s10, 1
      %s16 = ssub.s32 %s10, 2
      %s17 = sadd.s32 %s10, 1
      %s18 = ssub.s32 %s10, %s17
      %p19 = scmp.eq.s32.totalorder %s18, 0
      %s21 = sadd.s32 %s20, 1
      %s22 = scalar_select %p19, %s20, %s21
      %p25 = pneg %p19
      %p26 = scmp.eq.s32.totalorder %s10, 1
      %p27 = por %p25, %p26
      %p28 = scmp.ne.s32.totalorder %s20, %s23
      %p29 = scmp.eq.s32.totalorder %s10, 0
      %p30 = por %p28, %p29
      %p31 = scmp.ne.s32.totalorder %s20, %s23
      %p32 = scmp.eq.s32.totalorder %s15, 1
      %p33 = por %p31, %p32
      %p34 = scmp.ne.s32.totalorder %s23, %s24
      %p35 = scmp.eq.s32.totalorder %s15, 0
      %p36 = por %p34, %p35
      %p37 = scmp.ne.s32.totalorder %s23, %s24
      %p38 = scmp.eq.s32.totalorder %s16, 1
      %p39 = por %p37, %p38
      %p41 = scmp.ne.s32.totalorder %s24, %s40
      %p42 = scmp.eq.s32.totalorder %s16, 0
      %p43 = por %p41, %p42
      %s44 = ssub.s32 %s10, %s17
      %p45 = scmp.eq.s32.totalorder %s44, 0
      %s47 = sadd.s32 %s46, 1
      %s48 = scalar_select %p45, %s46, %s47
      %p51 = pneg %p45
      %p52 = scmp.eq.s32.totalorder %s10, 1
      %p53 = por %p51, %p52
      %p54 = scmp.ne.s32.totalorder %s46, %s49
      %p55 = scmp.eq.s32.totalorder %s10, 0
      %p56 = por %p54, %p55
      %p57 = scmp.ne.s32.totalorder %s46, %s49
      %p58 = scmp.eq.s32.totalorder %s15, 1
      %p59 = por %p57, %p58
      %p60 = scmp.ne.s32.totalorder %s49, %s50
      %p61 = scmp.eq.s32.totalorder %s15, 0
      %p62 = por %p60, %p61
      %p63 = scmp.ne.s32.totalorder %s49, %s50
      %p64 = scmp.eq.s32.totalorder %s16, 1
      %p65 = por %p63, %p64
      %p67 = scmp.ne.s32.totalorder %s50, %s66
      %p68 = scmp.eq.s32.totalorder %s16, 0
      %p69 = por %p67, %p68
      %s70 = ssub.s32 %s10, %s17
      %p71 = scmp.eq.s32.totalorder %s70, 0
      %s73 = sadd.s32 %s72, 1
      %s74 = scalar_select %p71, %s72, %s73
      %p77 = pneg %p71
      %p78 = scmp.eq.s32.totalorder %s10, 1
      %p79 = por %p77, %p78
      %p80 = scmp.ne.s32.totalorder %s72, %s75
      %p81 = scmp.eq.s32.totalorder %s10, 0
      %p82 = por %p80, %p81
      %p83 = scmp.ne.s32.totalorder %s72, %s75
      %p84 = scmp.eq.s32.totalorder %s15, 1
      %p85 = por %p83, %p84
      %p86 = scmp.ne.s32.totalorder %s75, %s76
      %p87 = scmp.eq.s32.totalorder %s15, 0
      %p88 = por %p86, %p87
      %p89 = scmp.ne.s32.totalorder %s75, %s76
      %p90 = scmp.eq.s32.totalorder %s16, 1
      %p91 = por %p89, %p90
      %p93 = scmp.ne.s32.totalorder %s76, %s92
      %p94 = scmp.eq.s32.totalorder %s16, 0
      %p95 = por %p93, %p94
      %s96 = ssub.s32 %s10, %s17
      %p97 = scmp.eq.s32.totalorder %s96, 0
      %s99 = sadd.s32 %s98, 1
      %s100 = scalar_select %p97, %s98, %s99
      %p103 = pneg %p97
      %p104 = scmp.eq.s32.totalorder %s10, 1
      %p105 = por %p103, %p104
      %p106 = scmp.ne.s32.totalorder %s98, %s101
      %p107 = scmp.eq.s32.totalorder %s10, 0
      %p108 = por %p106, %p107
      %p109 = scmp.ne.s32.totalorder %s98, %s101
      %p110 = scmp.eq.s32.totalorder %s15, 1
      %p111 = por %p109, %p110
      %p112 = scmp.ne.s32.totalorder %s101, %s102
      %p113 = scmp.eq.s32.totalorder %s15, 0
      %p114 = por %p112, %p113
      %p115 = scmp.ne.s32.totalorder %s101, %s102
      %p116 = scmp.eq.s32.totalorder %s16, 1
      %p117 = por %p115, %p116
      %p119 = scmp.ne.s32.totalorder %s102, %s118
      %p120 = scmp.eq.s32.totalorder %s16, 0
      %p121 = por %p119, %p120
      %s122 = ssub.s32 %s10, %s17
      %p123 = scmp.eq.s32.totalorder %s122, 0
      %s125 = sadd.s32 %s124, 1
      %s126 = scalar_select %p123, %s124, %s125
      %p129 = pneg %p123
      %p130 = scmp.eq.s32.totalorder %s10, 1
      %p131 = por %p129, %p130
      %p132 = scmp.ne.s32.totalorder %s124, %s127
      %p133 = scmp.eq.s32.totalorder %s10, 0
      %p134 = por %p132, %p133
      %p135 = scmp.ne.s32.totalorder %s124, %s127
      %p136 = scmp.eq.s32.totalorder %s15, 1
      %p137 = por %p135, %p136
      %p138 = scmp.ne.s32.totalorder %s127, %s128
      %p139 = scmp.eq.s32.totalorder %s15, 0
      %p140 = por %p138, %p139
      %p141 = scmp.ne.s32.totalorder %s127, %s128
      %p142 = scmp.eq.s32.totalorder %s16, 1
      %p143 = por %p141, %p142
      %p145 = scmp.ne.s32.totalorder %s128, %s144
      %p146 = scmp.eq.s32.totalorder %s16, 0
      %p147 = por %p145, %p146
      %p148 = scmp.le.s32.totalorder 1, %s10
      %p149 = scmp.lt.s32.totalorder %s10, 3
      %p150 = pnand %p148, %p149
      %p151 = pneg %p150
      // Predicated region
      $region9: #{tpu_custom_call.1} parent=5 // pred_check
        _
      $region10: #{tpu_custom_call.1} parent=5 // pred_check_branch
        %153 = sbr.rel (%p150) target = $region12
      $region11: #{tpu_custom_call.1} parent=5 // pred_region
        %s154 = ssub.s32 %s10, 1
      $region12: #{tpu_custom_call.1} parent=5 // pred_fallthru
        _
      %p155 = scmp.lt.s32.totalorder %s10, 2
      // Predicated region
      $region13: #{tpu_custom_call.1} parent=5 // pred_check
        %p156 = pneg %p155
      $region14: #{tpu_custom_call.1} parent=5 // pred_check_branch
        %158 = sbr.rel (%p156) target = $region16
      $region15: #{tpu_custom_call.1} parent=5 // pred_region
        // Predicated region
        $region17: #{tpu_custom_call.1} parent=15 // pred_check
          %p159 = pneg %p30
        $region18: #{tpu_custom_call.1} parent=15 // pred_check_branch
          %161 = sbr.rel (%p159) target = $region20
        $region19: #{tpu_custom_call.1} parent=15 // pred_region
          %s162 = smul.u32 188, %s10
          %s163 = ssub.s32 375, %s162
          %p164 = scmp.lt.s32.totalorder %s163, 188
          %s165 = scalar_select %p164, %s163, 188
          %s166 = smul.u32 8, %s165
          %p167 = scmp.lt.s32.totalorder %s162, 374
          %s168 = scalar_select %p167, %s162, 374
          %s169 = smul.addr %s168, 8
          %s170 = scalar_lea.vmem %s0, %s169
          %s171 = smul.u32 188, %s10
          %s172 = ssub.s32 375, %s171
          %p173 = scmp.lt.s32.totalorder %s172, 188
          %s174 = scalar_select %p173, %s172, 188
          %s175 = smul.u32 8, %s174
        $region20: #{tpu_custom_call.1} parent=15 // pred_fallthru
          _
        // Predicated region
        $region21: #{tpu_custom_call.1} parent=15 // pred_check
          %p176 = pneg %p56
        $region22: #{tpu_custom_call.1} parent=15 // pred_check_branch
          %178 = sbr.rel (%p176) target = $region24
        $region23: #{tpu_custom_call.1} parent=15 // pred_region
          %s179 = smul.u32 188, %s10
          %s180 = ssub.s32 375, %s179
          %p181 = scmp.lt.s32.totalorder %s180, 188
          %s182 = scalar_select %p181, %s180, 188
          %s183 = smul.u32 8, %s182
          %p184 = scmp.lt.s32.totalorder %s179, 374
          %s185 = scalar_select %p184, %s179, 374
          %s186 = smul.addr %s185, 8
          %s187 = scalar_lea.vmem %s1, %s186
          %s188 = smul.u32 188, %s10
          %s189 = ssub.s32 375, %s188
          %p190 = scmp.lt.s32.totalorder %s189, 188
          %s191 = scalar_select %p190, %s189, 188
          %s192 = smul.u32 8, %s191
        $region24: #{tpu_custom_call.1} parent=15 // pred_fallthru
          _
        // Predicated region
        $region25: #{tpu_custom_call.1} parent=15 // pred_check
          %p193 = pneg %p82
        $region26: #{tpu_custom_call.1} parent=15 // pred_check_branch
          %195 = sbr.rel (%p193) target = $region28
        $region27: #{tpu_custom_call.1} parent=15 // pred_region
          %s196 = smul.u32 188, %s10
          %s197 = ssub.s32 375, %s196
          %p198 = scmp.lt.s32.totalorder %s197, 188
          %s199 = scalar_select %p198, %s197, 188
          %s200 = smul.u32 8, %s199
          %p201 = scmp.lt.s32.totalorder %s196, 374
          %s202 = scalar_select %p201, %s196, 374
          %s203 = smul.addr %s202, 8
          %s204 = scalar_lea.vmem %s2, %s203
          %s205 = smul.u32 188, %s10
          %s206 = ssub.s32 375, %s205
          %p207 = scmp.lt.s32.totalorder %s206, 188
          %s208 = scalar_select %p207, %s206, 188
          %s209 = smul.u32 8, %s208
        $region28: #{tpu_custom_call.1} parent=15 // pred_fallthru
          _
        // Predicated region
        $region29: #{tpu_custom_call.1} parent=15 // pred_check
          %p210 = pneg %p108
        $region30: #{tpu_custom_call.1} parent=15 // pred_check_branch
          %212 = sbr.rel (%p210) target = $region32
        $region31: #{tpu_custom_call.1} parent=15 // pred_region
          %s213 = smul.u32 188, %s10
          %s214 = ssub.s32 375, %s213
          %p215 = scmp.lt.s32.totalorder %s214, 188
          %s216 = scalar_select %p215, %s214, 188
          %s217 = smul.u32 8, %s216
          %p218 = scmp.lt.s32.totalorder %s213, 374
          %s219 = scalar_select %p218, %s213, 374
          %s220 = smul.addr %s219, 8
          %s221 = scalar_lea.vmem %s3, %s220
          %s222 = smul.u32 188, %s10
          %s223 = ssub.s32 375, %s222
          %p224 = scmp.lt.s32.totalorder %s223, 188
          %s225 = scalar_select %p224, %s223, 188
          %s226 = smul.u32 8, %s225
        $region32: #{tpu_custom_call.1} parent=15 // pred_fallthru
          _
      $region16: #{tpu_custom_call.1} parent=5 // pred_fallthru
        _
      %p227 = scmp.le.s32.totalorder 1, %s10
      %p228 = scmp.lt.s32.totalorder %s10, 3
      %p229 = pnand %p227, %p228
      %p230 = pneg %p229
      // Predicated region
      $region33: #{tpu_custom_call.1} parent=5 // pred_check
        _
      $region34: #{tpu_custom_call.1} parent=5 // pred_check_branch
        %232 = sbr.rel (%p229) target = $region36
      $region35: #{tpu_custom_call.1} parent=5 // pred_region
        %s233 = ssub.s32 %s10, 1
        %s234 = smul.u32 188, %s15
        %s235 = ssub.s32 375, %s234
        %p236 = scmp.lt.s32.totalorder %s235, 188
        %s237 = scalar_select %p236, %s235, 188
        %s238 = smul.u32 8, %s237
        %p239 = scmp.lt.s32.totalorder %s234, 374
        %s240 = scalar_select %p239, %s234, 374
        %s241 = smul.addr %s240, 8
        %s242 = scalar_lea.vmem %s0, %s241
        %p243 = pneg %p36
        %p244 = pneg %p33
        %s245 = smul.u32 188, %s15
        %s246 = ssub.s32 375, %s245
        %p247 = scmp.lt.s32.totalorder %s246, 188
        %s248 = scalar_select %p247, %s246, 188
        %s249 = smul.u32 8, %s248
        %p250 = scmp.lt.s32.totalorder %s245, 374
        %s251 = scalar_select %p250, %s245, 374
        %s252 = smul.addr %s251, 8
        %s253 = scalar_lea.vmem %s1, %s252
        %p254 = pneg %p62
        %p255 = pneg %p59
        %s256 = smul.u32 188, %s15
        %s257 = ssub.s32 375, %s256
        %p258 = scmp.lt.s32.totalorder %s257, 188
        %s259 = scalar_select %p258, %s257, 188
        %s260 = smul.u32 8, %s259
        %p261 = scmp.lt.s32.totalorder %s256, 374
        %s262 = scalar_select %p261, %s256, 374
        %s263 = smul.addr %s262, 8
        %s264 = scalar_lea.vmem %s2, %s263
        %p265 = pneg %p88
        %p266 = pneg %p85
        %s267 = smul.u32 188, %s15
        %s268 = ssub.s32 375, %s267
        %p269 = scmp.lt.s32.totalorder %s268, 188
        %s270 = scalar_select %p269, %s268, 188
        %s271 = smul.u32 8, %s270
        %p272 = scmp.lt.s32.totalorder %s267, 374
        %s273 = scalar_select %p272, %s267, 374
        %s274 = smul.addr %s273, 8
        %s275 = scalar_lea.vmem %s3, %s274
        %p276 = pneg %p114
        %p277 = pneg %p111
        %p278 = pneg %p140
        %p279 = pneg %p137
        %s280 = sand.u32 %s127, 1
        %s281 = sand.u32 %s127, 1
        %s282 = smul.addr %s281, 1504
        %s283 = scalar_lea.vmem [#allocation2], %s282
        %s284 = smul.u32 188, %s15
        %s285 = ssub.s32 375, %s284
        %p286 = scmp.lt.s32.totalorder %s285, 188
        %s287 = scalar_select %p286, %s285, 188
        %s288 = smul.u32 8, %s287
        %p289 = scmp.lt.s32.totalorder %s284, 374
        %s290 = scalar_select %p289, %s284, 374
        %s291 = smul.addr %s290, 8
        %s292 = scalar_lea.vmem %s0, %s291
        %s293 = smul.u32 188, %s15
        %s294 = ssub.s32 375, %s293
        %p295 = scmp.lt.s32.totalorder %s294, 188
        %s296 = scalar_select %p295, %s294, 188
        %s297 = smul.u32 8, %s296
        %s298 = smul.u32 188, %s15
        %s299 = ssub.s32 375, %s298
        %p300 = scmp.lt.s32.totalorder %s299, 188
        %s301 = scalar_select %p300, %s299, 188
        %s302 = smul.u32 8, %s301
        %p303 = scmp.lt.s32.totalorder %s298, 374
        %s304 = scalar_select %p303, %s298, 374
        %s305 = smul.addr %s304, 8
        %s306 = scalar_lea.vmem %s1, %s305
        %s307 = smul.u32 188, %s15
        %s308 = ssub.s32 375, %s307
        %p309 = scmp.lt.s32.totalorder %s308, 188
        %s310 = scalar_select %p309, %s308, 188
        %s311 = smul.u32 8, %s310
        %s312 = smul.u32 188, %s15
        %s313 = ssub.s32 375, %s312
        %p314 = scmp.lt.s32.totalorder %s313, 188
        %s315 = scalar_select %p314, %s313, 188
        %s316 = smul.u32 8, %s315
        %p317 = scmp.lt.s32.totalorder %s312, 374
        %s318 = scalar_select %p317, %s312, 374
        %s319 = smul.addr %s318, 8
        %s320 = scalar_lea.vmem %s2, %s319
        %s321 = smul.u32 188, %s15
        %s322 = ssub.s32 375, %s321
        %p323 = scmp.lt.s32.totalorder %s322, 188
        %s324 = scalar_select %p323, %s322, 188
        %s325 = smul.u32 8, %s324
        %s326 = smul.u32 188, %s15
        %s327 = ssub.s32 375, %s326
        %p328 = scmp.lt.s32.totalorder %s327, 188
        %s329 = scalar_select %p328, %s327, 188
        %s330 = smul.u32 8, %s329
        %p331 = scmp.lt.s32.totalorder %s326, 374
        %s332 = scalar_select %p331, %s326, 374
        %s333 = smul.addr %s332, 8
        %s334 = scalar_lea.vmem %s3, %s333
        %s335 = smul.u32 188, %s15
        %s336 = ssub.s32 375, %s335
        %p337 = scmp.lt.s32.totalorder %s336, 188
        %s338 = scalar_select %p337, %s336, 188
        %s339 = smul.u32 8, %s338
        %s340 = smul.u32 188, %s15
        %s341 = ssub.s32 375, %s340
        %p342 = scmp.lt.s32.totalorder %s341, 188
        %s343 = scalar_select %p342, %s341, 188
        %s344 = smul.u32 8, %s343
        %v345 = vld [vmem:[%s292] sm:$0xff]
        %v346 = vld [vmem:[%s292 + $0x8] sm:$0xff]
        %v347 = vld [vmem:[%s292 + $0x10] sm:$0xff]
        %v348 = vld [vmem:[%s292 + $0x18] sm:$0xff]
        %v349 = vld [vmem:[%s292 + $0x20] sm:$0xff]
        %v350 = vld [vmem:[%s292 + $0x28] sm:$0xff]
        %v351 = vld [vmem:[%s292 + $0x30] sm:$0xff]
        %v352 = vld [vmem:[%s292 + $0x38] sm:$0xff]
        %v353 = vld [vmem:[%s292 + $0x40] sm:$0xff]
        %v354 = vld [vmem:[%s292 + $0x48] sm:$0xff]
        %v355 = vld [vmem:[%s292 + $0x50] sm:$0xff]
        %v356 = vld [vmem:[%s292 + $0x58] sm:$0xff]
        %v357 = vld [vmem:[%s292 + $0x60] sm:$0xff]
        %v358 = vld [vmem:[%s292 + $0x68] sm:$0xff]
        %v359 = vld [vmem:[%s292 + $0x70] sm:$0xff]
        %v360 = vld [vmem:[%s292 + $0x78] sm:$0xff]
        %v361 = vld [vmem:[%s292 + $0x80] sm:$0xff]
        %v362 = vld [vmem:[%s292 + $0x88] sm:$0xff]
        %v363 = vld [vmem:[%s292 + $0x90] sm:$0xff]
        %v364 = vld [vmem:[%s292 + $0x98] sm:$0xff]
        %v365 = vld [vmem:[%s292 + $0xa0] sm:$0xff]
        %v366 = vld [vmem:[%s292 + $0xa8] sm:$0xff]
        %v367 = vld [vmem:[%s292 + $0xb0] sm:$0xff]
        %v368 = vld [vmem:[%s292 + $0xb8] sm:$0xff]
        %v369 = vld [vmem:[%s292 + $0xc0] sm:$0xff]
        %v370 = vld [vmem:[%s292 + $0xc8] sm:$0xff]
        %v371 = vld [vmem:[%s292 + $0xd0] sm:$0xff]
        %v372 = vld [vmem:[%s292 + $0xd8] sm:$0xff]
        %v373 = vld [vmem:[%s292 + $0xe0] sm:$0xff]
        %v374 = vld [vmem:[%s292 + $0xe8] sm:$0xff]
        %v375 = vld [vmem:[%s292 + $0xf0] sm:$0xff]
        %v376 = vld [vmem:[%s292 + $0xf8] sm:$0xff]
        %v377 = vld [vmem:[%s292 + $0x100] sm:$0xff]
        %v378 = vld [vmem:[%s292 + $0x108] sm:$0xff]
        %v379 = vld [vmem:[%s292 + $0x110] sm:$0xff]
        %v380 = vld [vmem:[%s292 + $0x118] sm:$0xff]
        %v381 = vld [vmem:[%s292 + $0x120] sm:$0xff]
        %v382 = vld [vmem:[%s292 + $0x128] sm:$0xff]
        %v383 = vld [vmem:[%s292 + $0x130] sm:$0xff]
        %v384 = vld [vmem:[%s292 + $0x138] sm:$0xff]
        %v385 = vld [vmem:[%s292 + $0x140] sm:$0xff]
        %v386 = vld [vmem:[%s292 + $0x148] sm:$0xff]
        %v387 = vld [vmem:[%s292 + $0x150] sm:$0xff]
        %v388 = vld [vmem:[%s292 + $0x158] sm:$0xff]
        %v389 = vld [vmem:[%s292 + $0x160] sm:$0xff]
        %v390 = vld [vmem:[%s292 + $0x168] sm:$0xff]
        %v391 = vld [vmem:[%s292 + $0x170] sm:$0xff]
        %v392 = vld [vmem:[%s292 + $0x178] sm:$0xff]
        %v393 = vld [vmem:[%s292 + $0x180] sm:$0xff]
        %v394 = vld [vmem:[%s292 + $0x188] sm:$0xff]
        %v395 = vld [vmem:[%s292 + $0x190] sm:$0xff]
        %v396 = vld [vmem:[%s292 + $0x198] sm:$0xff]
        %v397 = vld [vmem:[%s292 + $0x1a0] sm:$0xff]
        %v398 = vld [vmem:[%s292 + $0x1a8] sm:$0xff]
        %v399 = vld [vmem:[%s292 + $0x1b0] sm:$0xff]
        %v400 = vld [vmem:[%s292 + $0x1b8] sm:$0xff]
        %v401 = vld [vmem:[%s292 + $0x1c0] sm:$0xff]
        %v402 = vld [vmem:[%s292 + $0x1c8] sm:$0xff]
        %v403 = vld [vmem:[%s292 + $0x1d0] sm:$0xff]
        %v404 = vld [vmem:[%s292 + $0x1d8] sm:$0xff]
        %v405 = vld [vmem:[%s292 + $0x1e0] sm:$0xff]
        %v406 = vld [vmem:[%s292 + $0x1e8] sm:$0xff]
        %v407 = vld [vmem:[%s292 + $0x1f0] sm:$0xff]
        %v408 = vld [vmem:[%s292 + $0x1f8] sm:$0xff]
        %v409 = vld [vmem:[%s292 + $0x200] sm:$0xff]
        %v410 = vld [vmem:[%s292 + $0x208] sm:$0xff]
        %v411 = vld [vmem:[%s292 + $0x210] sm:$0xff]
        %v412 = vld [vmem:[%s292 + $0x218] sm:$0xff]
        %v413 = vld [vmem:[%s292 + $0x220] sm:$0xff]
        %v414 = vld [vmem:[%s292 + $0x228] sm:$0xff]
        %v415 = vld [vmem:[%s292 + $0x230] sm:$0xff]
        %v416 = vld [vmem:[%s292 + $0x238] sm:$0xff]
        %v417 = vld [vmem:[%s292 + $0x240] sm:$0xff]
        %v418 = vld [vmem:[%s292 + $0x248] sm:$0xff]
        %v419 = vld [vmem:[%s292 + $0x250] sm:$0xff]
        %v420 = vld [vmem:[%s292 + $0x258] sm:$0xff]
        %v421 = vld [vmem:[%s292 + $0x260] sm:$0xff]
        %v422 = vld [vmem:[%s292 + $0x268] sm:$0xff]
        %v423 = vld [vmem:[%s292 + $0x270] sm:$0xff]
        %v424 = vld [vmem:[%s292 + $0x278] sm:$0xff]
        %v425 = vld [vmem:[%s292 + $0x280] sm:$0xff]
        %v426 = vld [vmem:[%s292 + $0x288] sm:$0xff]
        %v427 = vld [vmem:[%s292 + $0x290] sm:$0xff]
        %v428 = vld [vmem:[%s292 + $0x298] sm:$0xff]
        %v429 = vld [vmem:[%s292 + $0x2a0] sm:$0xff]
        %v430 = vld [vmem:[%s292 + $0x2a8] sm:$0xff]
        %v431 = vld [vmem:[%s292 + $0x2b0] sm:$0xff]
        %v432 = vld [vmem:[%s292 + $0x2b8] sm:$0xff]
        %v433 = vld [vmem:[%s292 + $0x2c0] sm:$0xff]
        %v434 = vld [vmem:[%s292 + $0x2c8] sm:$0xff]
        %v435 = vld [vmem:[%s292 + $0x2d0] sm:$0xff]
        %v436 = vld [vmem:[%s292 + $0x2d8] sm:$0xff]
        %v437 = vld [vmem:[%s292 + $0x2e0] sm:$0xff]
        %v438 = vld [vmem:[%s292 + $0x2e8] sm:$0xff]
        %v439 = vld [vmem:[%s292 + $0x2f0] sm:$0xff]
        %v440 = vld [vmem:[%s292 + $0x2f8] sm:$0xff]
        %v441 = vld [vmem:[%s292 + $0x300] sm:$0xff]
        %v442 = vld [vmem:[%s292 + $0x308] sm:$0xff]
        %v443 = vld [vmem:[%s292 + $0x310] sm:$0xff]
        %v444 = vld [vmem:[%s292 + $0x318] sm:$0xff]
        %v445 = vld [vmem:[%s292 + $0x320] sm:$0xff]
        %v446 = vld [vmem:[%s292 + $0x328] sm:$0xff]
        %v447 = vld [vmem:[%s292 + $0x330] sm:$0xff]
        %v448 = vld [vmem:[%s292 + $0x338] sm:$0xff]
        %v449 = vld [vmem:[%s292 + $0x340] sm:$0xff]
        %v450 = vld [vmem:[%s292 + $0x348] sm:$0xff]
        %v451 = vld [vmem:[%s292 + $0x350] sm:$0xff]
        %v452 = vld [vmem:[%s292 + $0x358] sm:$0xff]
        %v453 = vld [vmem:[%s292 + $0x360] sm:$0xff]
        %v454 = vld [vmem:[%s292 + $0x368] sm:$0xff]
        %v455 = vld [vmem:[%s292 + $0x370] sm:$0xff]
        %v456 = vld [vmem:[%s292 + $0x378] sm:$0xff]
        %v457 = vld [vmem:[%s292 + $0x380] sm:$0xff]
        %v458 = vld [vmem:[%s292 + $0x388] sm:$0xff]
        %v459 = vld [vmem:[%s292 + $0x390] sm:$0xff]
        %v460 = vld [vmem:[%s292 + $0x398] sm:$0xff]
        %v461 = vld [vmem:[%s292 + $0x3a0] sm:$0xff]
        %v462 = vld [vmem:[%s292 + $0x3a8] sm:$0xff]
        %v463 = vld [vmem:[%s292 + $0x3b0] sm:$0xff]
        %v464 = vld [vmem:[%s292 + $0x3b8] sm:$0xff]
        %v465 = vld [vmem:[%s292 + $0x3c0] sm:$0xff]
        %v466 = vld [vmem:[%s292 + $0x3c8] sm:$0xff]
        %v467 = vld [vmem:[%s292 + $0x3d0] sm:$0xff]
        %v468 = vld [vmem:[%s292 + $0x3d8] sm:$0xff]
        %v469 = vld [vmem:[%s292 + $0x3e0] sm:$0xff]
        %v470 = vld [vmem:[%s292 + $0x3e8] sm:$0xff]
        %v471 = vld [vmem:[%s292 + $0x3f0] sm:$0xff]
        %v472 = vld [vmem:[%s292 + $0x3f8] sm:$0xff]
        %v473 = vld [vmem:[%s292 + $0x400] sm:$0xff]
        %v474 = vld [vmem:[%s292 + $0x408] sm:$0xff]
        %v475 = vld [vmem:[%s292 + $0x410] sm:$0xff]
        %v476 = vld [vmem:[%s292 + $0x418] sm:$0xff]
        %v477 = vld [vmem:[%s292 + $0x420] sm:$0xff]
        %v478 = vld [vmem:[%s292 + $0x428] sm:$0xff]
        %v479 = vld [vmem:[%s292 + $0x430] sm:$0xff]
        %v480 = vld [vmem:[%s292 + $0x438] sm:$0xff]
        %v481 = vld [vmem:[%s292 + $0x440] sm:$0xff]
        %v482 = vld [vmem:[%s292 + $0x448] sm:$0xff]
        %v483 = vld [vmem:[%s292 + $0x450] sm:$0xff]
        %v484 = vld [vmem:[%s292 + $0x458] sm:$0xff]
        %v485 = vld [vmem:[%s292 + $0x460] sm:$0xff]
        %v486 = vld [vmem:[%s292 + $0x468] sm:$0xff]
        %v487 = vld [vmem:[%s292 + $0x470] sm:$0xff]
        %v488 = vld [vmem:[%s292 + $0x478] sm:$0xff]
        %v489 = vld [vmem:[%s292 + $0x480] sm:$0xff]
        %v490 = vld [vmem:[%s292 + $0x488] sm:$0xff]
        %v491 = vld [vmem:[%s292 + $0x490] sm:$0xff]
        %v492 = vld [vmem:[%s292 + $0x498] sm:$0xff]
        %v493 = vld [vmem:[%s292 + $0x4a0] sm:$0xff]
        %v494 = vld [vmem:[%s292 + $0x4a8] sm:$0xff]
        %v495 = vld [vmem:[%s292 + $0x4b0] sm:$0xff]
        %v496 = vld [vmem:[%s292 + $0x4b8] sm:$0xff]
        %v497 = vld [vmem:[%s292 + $0x4c0] sm:$0xff]
        %v498 = vld [vmem:[%s292 + $0x4c8] sm:$0xff]
        %v499 = vld [vmem:[%s292 + $0x4d0] sm:$0xff]
        %v500 = vld [vmem:[%s292 + $0x4d8] sm:$0xff]
        %v501 = vld [vmem:[%s292 + $0x4e0] sm:$0xff]
        %v502 = vld [vmem:[%s292 + $0x4e8] sm:$0xff]
        %v503 = vld [vmem:[%s292 + $0x4f0] sm:$0xff]
        %v504 = vld [vmem:[%s292 + $0x4f8] sm:$0xff]
        %v505 = vld [vmem:[%s292 + $0x500] sm:$0xff]
        %v506 = vld [vmem:[%s292 + $0x508] sm:$0xff]
        %v507 = vld [vmem:[%s292 + $0x510] sm:$0xff]
        %v508 = vld [vmem:[%s292 + $0x518] sm:$0xff]
        %v509 = vld [vmem:[%s292 + $0x520] sm:$0xff]
        %v510 = vld [vmem:[%s292 + $0x528] sm:$0xff]
        %v511 = vld [vmem:[%s292 + $0x530] sm:$0xff]
        %v512 = vld [vmem:[%s292 + $0x538] sm:$0xff]
        %v513 = vld [vmem:[%s292 + $0x540] sm:$0xff]
        %v514 = vld [vmem:[%s292 + $0x548] sm:$0xff]
        %v515 = vld [vmem:[%s292 + $0x550] sm:$0xff]
        %v516 = vld [vmem:[%s292 + $0x558] sm:$0xff]
        %v517 = vld [vmem:[%s292 + $0x560] sm:$0xff]
        %v518 = vld [vmem:[%s292 + $0x568] sm:$0xff]
        %v519 = vld [vmem:[%s292 + $0x570] sm:$0xff]
        %v520 = vld [vmem:[%s292 + $0x578] sm:$0xff]
        %v521 = vld [vmem:[%s292 + $0x580] sm:$0xff]
        %v522 = vld [vmem:[%s292 + $0x588] sm:$0xff]
        %v523 = vld [vmem:[%s292 + $0x590] sm:$0xff]
        %v524 = vld [vmem:[%s292 + $0x598] sm:$0xff]
        %v525 = vld [vmem:[%s292 + $0x5a0] sm:$0xff]
        %v526 = vld [vmem:[%s292 + $0x5a8] sm:$0xff]
        %v527 = vld [vmem:[%s292 + $0x5b0] sm:$0xff]
        %v528 = vld [vmem:[%s292 + $0x5b8] sm:$0xff]
        %v529 = vld [vmem:[%s292 + $0x5c0] sm:$0xff]
        %v530 = vld [vmem:[%s292 + $0x5c8] sm:$0xff]
        %v531 = vld [vmem:[%s292 + $0x5d0] sm:$0xff]
        %v532 = vld [vmem:[%s292 + $0x5d8] sm:$0xff]
        %v533 = vld [vmem:[%s306] sm:$0xff]
        %v534 = vld [vmem:[%s306 + $0x8] sm:$0xff]
        %v535 = vld [vmem:[%s306 + $0x10] sm:$0xff]
        %v536 = vld [vmem:[%s306 + $0x18] sm:$0xff]
        %v537 = vld [vmem:[%s306 + $0x20] sm:$0xff]
        %v538 = vld [vmem:[%s306 + $0x28] sm:$0xff]
        %v539 = vld [vmem:[%s306 + $0x30] sm:$0xff]
        %v540 = vld [vmem:[%s306 + $0x38] sm:$0xff]
        %v541 = vld [vmem:[%s306 + $0x40] sm:$0xff]
        %v542 = vld [vmem:[%s306 + $0x48] sm:$0xff]
        %v543 = vld [vmem:[%s306 + $0x50] sm:$0xff]
        %v544 = vld [vmem:[%s306 + $0x58] sm:$0xff]
        %v545 = vld [vmem:[%s306 + $0x60] sm:$0xff]
        %v546 = vld [vmem:[%s306 + $0x68] sm:$0xff]
        %v547 = vld [vmem:[%s306 + $0x70] sm:$0xff]
        %v548 = vld [vmem:[%s306 + $0x78] sm:$0xff]
        %v549 = vld [vmem:[%s306 + $0x80] sm:$0xff]
        %v550 = vld [vmem:[%s306 + $0x88] sm:$0xff]
        %v551 = vld [vmem:[%s306 + $0x90] sm:$0xff]
        %v552 = vld [vmem:[%s306 + $0x98] sm:$0xff]
        %v553 = vld [vmem:[%s306 + $0xa0] sm:$0xff]
        %v554 = vld [vmem:[%s306 + $0xa8] sm:$0xff]
        %v555 = vld [vmem:[%s306 + $0xb0] sm:$0xff]
        %v556 = vld [vmem:[%s306 + $0xb8] sm:$0xff]
        %v557 = vld [vmem:[%s306 + $0xc0] sm:$0xff]
        %v558 = vld [vmem:[%s306 + $0xc8] sm:$0xff]
        %v559 = vld [vmem:[%s306 + $0xd0] sm:$0xff]
        %v560 = vld [vmem:[%s306 + $0xd8] sm:$0xff]
        %v561 = vld [vmem:[%s306 + $0xe0] sm:$0xff]
        %v562 = vld [vmem:[%s306 + $0xe8] sm:$0xff]
        %v563 = vld [vmem:[%s306 + $0xf0] sm:$0xff]
        %v564 = vld [vmem:[%s306 + $0xf8] sm:$0xff]
        %v565 = vld [vmem:[%s306 + $0x100] sm:$0xff]
        %v566 = vld [vmem:[%s306 + $0x108] sm:$0xff]
        %v567 = vld [vmem:[%s306 + $0x110] sm:$0xff]
        %v568 = vld [vmem:[%s306 + $0x118] sm:$0xff]
        %v569 = vld [vmem:[%s306 + $0x120] sm:$0xff]
        %v570 = vld [vmem:[%s306 + $0x128] sm:$0xff]
        %v571 = vld [vmem:[%s306 + $0x130] sm:$0xff]
        %v572 = vld [vmem:[%s306 + $0x138] sm:$0xff]
        %v573 = vld [vmem:[%s306 + $0x140] sm:$0xff]
        %v574 = vld [vmem:[%s306 + $0x148] sm:$0xff]
        %v575 = vld [vmem:[%s306 + $0x150] sm:$0xff]
        %v576 = vld [vmem:[%s306 + $0x158] sm:$0xff]
        %v577 = vld [vmem:[%s306 + $0x160] sm:$0xff]
        %v578 = vld [vmem:[%s306 + $0x168] sm:$0xff]
        %v579 = vld [vmem:[%s306 + $0x170] sm:$0xff]
        %v580 = vld [vmem:[%s306 + $0x178] sm:$0xff]
        %v581 = vld [vmem:[%s306 + $0x180] sm:$0xff]
        %v582 = vld [vmem:[%s306 + $0x188] sm:$0xff]
        %v583 = vld [vmem:[%s306 + $0x190] sm:$0xff]
        %v584 = vld [vmem:[%s306 + $0x198] sm:$0xff]
        %v585 = vld [vmem:[%s306 + $0x1a0] sm:$0xff]
        %v586 = vld [vmem:[%s306 + $0x1a8] sm:$0xff]
        %v587 = vld [vmem:[%s306 + $0x1b0] sm:$0xff]
        %v588 = vld [vmem:[%s306 + $0x1b8] sm:$0xff]
        %v589 = vld [vmem:[%s306 + $0x1c0] sm:$0xff]
        %v590 = vld [vmem:[%s306 + $0x1c8] sm:$0xff]
        %v591 = vld [vmem:[%s306 + $0x1d0] sm:$0xff]
        %v592 = vld [vmem:[%s306 + $0x1d8] sm:$0xff]
        %v593 = vld [vmem:[%s306 + $0x1e0] sm:$0xff]
        %v594 = vld [vmem:[%s306 + $0x1e8] sm:$0xff]
        %v595 = vld [vmem:[%s306 + $0x1f0] sm:$0xff]
        %v596 = vld [vmem:[%s306 + $0x1f8] sm:$0xff]
        %v597 = vld [vmem:[%s306 + $0x200] sm:$0xff]
        %v598 = vld [vmem:[%s306 + $0x208] sm:$0xff]
        %v599 = vld [vmem:[%s306 + $0x210] sm:$0xff]
        %v600 = vld [vmem:[%s306 + $0x218] sm:$0xff]
        %v601 = vld [vmem:[%s306 + $0x220] sm:$0xff]
        %v602 = vld [vmem:[%s306 + $0x228] sm:$0xff]
        %v603 = vld [vmem:[%s306 + $0x230] sm:$0xff]
        %v604 = vld [vmem:[%s306 + $0x238] sm:$0xff]
        %v605 = vld [vmem:[%s306 + $0x240] sm:$0xff]
        %v606 = vld [vmem:[%s306 + $0x248] sm:$0xff]
        %v607 = vld [vmem:[%s306 + $0x250] sm:$0xff]
        %v608 = vld [vmem:[%s306 + $0x258] sm:$0xff]
        %v609 = vld [vmem:[%s306 + $0x260] sm:$0xff]
        %v610 = vld [vmem:[%s306 + $0x268] sm:$0xff]
        %v611 = vld [vmem:[%s306 + $0x270] sm:$0xff]
        %v612 = vld [vmem:[%s306 + $0x278] sm:$0xff]
        %v613 = vld [vmem:[%s306 + $0x280] sm:$0xff]
        %v614 = vld [vmem:[%s306 + $0x288] sm:$0xff]
        %v615 = vld [vmem:[%s306 + $0x290] sm:$0xff]
        %v616 = vld [vmem:[%s306 + $0x298] sm:$0xff]
        %v617 = vld [vmem:[%s306 + $0x2a0] sm:$0xff]
        %v618 = vld [vmem:[%s306 + $0x2a8] sm:$0xff]
        %v619 = vld [vmem:[%s306 + $0x2b0] sm:$0xff]
        %v620 = vld [vmem:[%s306 + $0x2b8] sm:$0xff]
        %v621 = vld [vmem:[%s306 + $0x2c0] sm:$0xff]
        %v622 = vld [vmem:[%s306 + $0x2c8] sm:$0xff]
        %v623 = vld [vmem:[%s306 + $0x2d0] sm:$0xff]
        %v624 = vld [vmem:[%s306 + $0x2d8] sm:$0xff]
        %v625 = vld [vmem:[%s306 + $0x2e0] sm:$0xff]
        %v626 = vld [vmem:[%s306 + $0x2e8] sm:$0xff]
        %v627 = vld [vmem:[%s306 + $0x2f0] sm:$0xff]
        %v628 = vld [vmem:[%s306 + $0x2f8] sm:$0xff]
        %v629 = vld [vmem:[%s306 + $0x300] sm:$0xff]
        %v630 = vld [vmem:[%s306 + $0x308] sm:$0xff]
        %v631 = vld [vmem:[%s306 + $0x310] sm:$0xff]
        %v632 = vld [vmem:[%s306 + $0x318] sm:$0xff]
        %v633 = vld [vmem:[%s306 + $0x320] sm:$0xff]
        %v634 = vld [vmem:[%s306 + $0x328] sm:$0xff]
        %v635 = vld [vmem:[%s306 + $0x330] sm:$0xff]
        %v636 = vld [vmem:[%s306 + $0x338] sm:$0xff]
        %v637 = vld [vmem:[%s306 + $0x340] sm:$0xff]
        %v638 = vld [vmem:[%s306 + $0x348] sm:$0xff]
        %v639 = vld [vmem:[%s306 + $0x350] sm:$0xff]
        %v640 = vld [vmem:[%s306 + $0x358] sm:$0xff]
        %v641 = vld [vmem:[%s306 + $0x360] sm:$0xff]
        %v642 = vld [vmem:[%s306 + $0x368] sm:$0xff]
        %v643 = vld [vmem:[%s306 + $0x370] sm:$0xff]
        %v644 = vld [vmem:[%s306 + $0x378] sm:$0xff]
        %v645 = vld [vmem:[%s306 + $0x380] sm:$0xff]
        %v646 = vld [vmem:[%s306 + $0x388] sm:$0xff]
        %v647 = vld [vmem:[%s306 + $0x390] sm:$0xff]
        %v648 = vld [vmem:[%s306 + $0x398] sm:$0xff]
        %v649 = vld [vmem:[%s306 + $0x3a0] sm:$0xff]
        %v650 = vld [vmem:[%s306 + $0x3a8] sm:$0xff]
        %v651 = vld [vmem:[%s306 + $0x3b0] sm:$0xff]
        %v652 = vld [vmem:[%s306 + $0x3b8] sm:$0xff]
        %v653 = vld [vmem:[%s306 + $0x3c0] sm:$0xff]
        %v654 = vld [vmem:[%s306 + $0x3c8] sm:$0xff]
        %v655 = vld [vmem:[%s306 + $0x3d0] sm:$0xff]
        %v656 = vld [vmem:[%s306 + $0x3d8] sm:$0xff]
        %v657 = vld [vmem:[%s306 + $0x3e0] sm:$0xff]
        %v658 = vld [vmem:[%s306 + $0x3e8] sm:$0xff]
        %v659 = vld [vmem:[%s306 + $0x3f0] sm:$0xff]
        %v660 = vld [vmem:[%s306 + $0x3f8] sm:$0xff]
        %v661 = vld [vmem:[%s306 + $0x400] sm:$0xff]
        %v662 = vld [vmem:[%s306 + $0x408] sm:$0xff]
        %v663 = vld [vmem:[%s306 + $0x410] sm:$0xff]
        %v664 = vld [vmem:[%s306 + $0x418] sm:$0xff]
        %v665 = vld [vmem:[%s306 + $0x420] sm:$0xff]
        %v666 = vld [vmem:[%s306 + $0x428] sm:$0xff]
        %v667 = vld [vmem:[%s306 + $0x430] sm:$0xff]
        %v668 = vld [vmem:[%s306 + $0x438] sm:$0xff]
        %v669 = vld [vmem:[%s306 + $0x440] sm:$0xff]
        %v670 = vld [vmem:[%s306 + $0x448] sm:$0xff]
        %v671 = vld [vmem:[%s306 + $0x450] sm:$0xff]
        %v672 = vld [vmem:[%s306 + $0x458] sm:$0xff]
        %v673 = vld [vmem:[%s306 + $0x460] sm:$0xff]
        %v674 = vld [vmem:[%s306 + $0x468] sm:$0xff]
        %v675 = vld [vmem:[%s306 + $0x470] sm:$0xff]
        %v676 = vld [vmem:[%s306 + $0x478] sm:$0xff]
        %v677 = vld [vmem:[%s306 + $0x480] sm:$0xff]
        %v678 = vld [vmem:[%s306 + $0x488] sm:$0xff]
        %v679 = vld [vmem:[%s306 + $0x490] sm:$0xff]
        %v680 = vld [vmem:[%s306 + $0x498] sm:$0xff]
        %v681 = vld [vmem:[%s306 + $0x4a0] sm:$0xff]
        %v682 = vld [vmem:[%s306 + $0x4a8] sm:$0xff]
        %v683 = vld [vmem:[%s306 + $0x4b0] sm:$0xff]
        %v684 = vld [vmem:[%s306 + $0x4b8] sm:$0xff]
        %v685 = vld [vmem:[%s306 + $0x4c0] sm:$0xff]
        %v686 = vld [vmem:[%s306 + $0x4c8] sm:$0xff]
        %v687 = vld [vmem:[%s306 + $0x4d0] sm:$0xff]
        %v688 = vld [vmem:[%s306 + $0x4d8] sm:$0xff]
        %v689 = vld [vmem:[%s306 + $0x4e0] sm:$0xff]
        %v690 = vld [vmem:[%s306 + $0x4e8] sm:$0xff]
        %v691 = vld [vmem:[%s306 + $0x4f0] sm:$0xff]
        %v692 = vld [vmem:[%s306 + $0x4f8] sm:$0xff]
        %v693 = vld [vmem:[%s306 + $0x500] sm:$0xff]
        %v694 = vld [vmem:[%s306 + $0x508] sm:$0xff]
        %v695 = vld [vmem:[%s306 + $0x510] sm:$0xff]
        %v696 = vld [vmem:[%s306 + $0x518] sm:$0xff]
        %v697 = vld [vmem:[%s306 + $0x520] sm:$0xff]
        %v698 = vld [vmem:[%s306 + $0x528] sm:$0xff]
        %v699 = vld [vmem:[%s306 + $0x530] sm:$0xff]
        %v700 = vld [vmem:[%s306 + $0x538] sm:$0xff]
        %v701 = vld [vmem:[%s306 + $0x540] sm:$0xff]
        %v702 = vld [vmem:[%s306 + $0x548] sm:$0xff]
        %v703 = vld [vmem:[%s306 + $0x550] sm:$0xff]
        %v704 = vld [vmem:[%s306 + $0x558] sm:$0xff]
        %v705 = vld [vmem:[%s306 + $0x560] sm:$0xff]
        %v706 = vld [vmem:[%s306 + $0x568] sm:$0xff]
        %v707 = vld [vmem:[%s306 + $0x570] sm:$0xff]
        %v708 = vld [vmem:[%s306 + $0x578] sm:$0xff]
        %v709 = vld [vmem:[%s306 + $0x580] sm:$0xff]
        %v710 = vld [vmem:[%s306 + $0x588] sm:$0xff]
        %v711 = vld [vmem:[%s306 + $0x590] sm:$0xff]
        %v712 = vld [vmem:[%s306 + $0x598] sm:$0xff]
        %v713 = vld [vmem:[%s306 + $0x5a0] sm:$0xff]
        %v714 = vld [vmem:[%s306 + $0x5a8] sm:$0xff]
        %v715 = vld [vmem:[%s306 + $0x5b0] sm:$0xff]
        %v716 = vld [vmem:[%s306 + $0x5b8] sm:$0xff]
        %v717 = vld [vmem:[%s306 + $0x5c0] sm:$0xff]
        %v718 = vld [vmem:[%s306 + $0x5c8] sm:$0xff]
        %v719 = vld [vmem:[%s306 + $0x5d0] sm:$0xff]
        %v720 = vld [vmem:[%s306 + $0x5d8] sm:$0xff]
        %v721 = vld [vmem:[%s320] sm:$0xff]
        %v722 = vld [vmem:[%s320 + $0x8] sm:$0xff]
        %v723 = vld [vmem:[%s320 + $0x10] sm:$0xff]
        %v724 = vld [vmem:[%s320 + $0x18] sm:$0xff]
        %v725 = vld [vmem:[%s320 + $0x20] sm:$0xff]
        %v726 = vld [vmem:[%s320 + $0x28] sm:$0xff]
        %v727 = vld [vmem:[%s320 + $0x30] sm:$0xff]
        %v728 = vld [vmem:[%s320 + $0x38] sm:$0xff]
        %v729 = vld [vmem:[%s320 + $0x40] sm:$0xff]
        %v730 = vld [vmem:[%s320 + $0x48] sm:$0xff]
        %v731 = vld [vmem:[%s320 + $0x50] sm:$0xff]
        %v732 = vld [vmem:[%s320 + $0x58] sm:$0xff]
        %v733 = vld [vmem:[%s320 + $0x60] sm:$0xff]
        %v734 = vld [vmem:[%s320 + $0x68] sm:$0xff]
        %v735 = vld [vmem:[%s320 + $0x70] sm:$0xff]
        %v736 = vld [vmem:[%s320 + $0x78] sm:$0xff]
        %v737 = vld [vmem:[%s320 + $0x80] sm:$0xff]
        %v738 = vld [vmem:[%s320 + $0x88] sm:$0xff]
        %v739 = vld [vmem:[%s320 + $0x90] sm:$0xff]
        %v740 = vld [vmem:[%s320 + $0x98] sm:$0xff]
        %v741 = vld [vmem:[%s320 + $0xa0] sm:$0xff]
        %v742 = vld [vmem:[%s320 + $0xa8] sm:$0xff]
        %v743 = vld [vmem:[%s320 + $0xb0] sm:$0xff]
        %v744 = vld [vmem:[%s320 + $0xb8] sm:$0xff]
        %v745 = vld [vmem:[%s320 + $0xc0] sm:$0xff]
        %v746 = vld [vmem:[%s320 + $0xc8] sm:$0xff]
        %v747 = vld [vmem:[%s320 + $0xd0] sm:$0xff]
        %v748 = vld [vmem:[%s320 + $0xd8] sm:$0xff]
        %v749 = vld [vmem:[%s320 + $0xe0] sm:$0xff]
        %v750 = vld [vmem:[%s320 + $0xe8] sm:$0xff]
        %v751 = vld [vmem:[%s320 + $0xf0] sm:$0xff]
        %v752 = vld [vmem:[%s320 + $0xf8] sm:$0xff]
        %v753 = vld [vmem:[%s320 + $0x100] sm:$0xff]
        %v754 = vld [vmem:[%s320 + $0x108] sm:$0xff]
        %v755 = vld [vmem:[%s320 + $0x110] sm:$0xff]
        %v756 = vld [vmem:[%s320 + $0x118] sm:$0xff]
        %v757 = vld [vmem:[%s320 + $0x120] sm:$0xff]
        %v758 = vld [vmem:[%s320 + $0x128] sm:$0xff]
        %v759 = vld [vmem:[%s320 + $0x130] sm:$0xff]
        %v760 = vld [vmem:[%s320 + $0x138] sm:$0xff]
        %v761 = vld [vmem:[%s320 + $0x140] sm:$0xff]
        %v762 = vld [vmem:[%s320 + $0x148] sm:$0xff]
        %v763 = vld [vmem:[%s320 + $0x150] sm:$0xff]
        %v764 = vld [vmem:[%s320 + $0x158] sm:$0xff]
        %v765 = vld [vmem:[%s320 + $0x160] sm:$0xff]
        %v766 = vld [vmem:[%s320 + $0x168] sm:$0xff]
        %v767 = vld [vmem:[%s320 + $0x170] sm:$0xff]
        %v768 = vld [vmem:[%s320 + $0x178] sm:$0xff]
        %v769 = vld [vmem:[%s320 + $0x180] sm:$0xff]
        %v770 = vld [vmem:[%s320 + $0x188] sm:$0xff]
        %v771 = vld [vmem:[%s320 + $0x190] sm:$0xff]
        %v772 = vld [vmem:[%s320 + $0x198] sm:$0xff]
        %v773 = vld [vmem:[%s320 + $0x1a0] sm:$0xff]
        %v774 = vld [vmem:[%s320 + $0x1a8] sm:$0xff]
        %v775 = vld [vmem:[%s320 + $0x1b0] sm:$0xff]
        %v776 = vld [vmem:[%s320 + $0x1b8] sm:$0xff]
        %v777 = vld [vmem:[%s320 + $0x1c0] sm:$0xff]
        %v778 = vld [vmem:[%s320 + $0x1c8] sm:$0xff]
        %v779 = vld [vmem:[%s320 + $0x1d0] sm:$0xff]
        %v780 = vld [vmem:[%s320 + $0x1d8] sm:$0xff]
        %v781 = vld [vmem:[%s320 + $0x1e0] sm:$0xff]
        %v782 = vld [vmem:[%s320 + $0x1e8] sm:$0xff]
        %v783 = vld [vmem:[%s320 + $0x1f0] sm:$0xff]
        %v784 = vld [vmem:[%s320 + $0x1f8] sm:$0xff]
        %v785 = vld [vmem:[%s320 + $0x200] sm:$0xff]
        %v786 = vld [vmem:[%s320 + $0x208] sm:$0xff]
        %v787 = vld [vmem:[%s320 + $0x210] sm:$0xff]
        %v788 = vld [vmem:[%s320 + $0x218] sm:$0xff]
        %v789 = vld [vmem:[%s320 + $0x220] sm:$0xff]
        %v790 = vld [vmem:[%s320 + $0x228] sm:$0xff]
        %v791 = vld [vmem:[%s320 + $0x230] sm:$0xff]
        %v792 = vld [vmem:[%s320 + $0x238] sm:$0xff]
        %v793 = vld [vmem:[%s320 + $0x240] sm:$0xff]
        %v794 = vld [vmem:[%s320 + $0x248] sm:$0xff]
        %v795 = vld [vmem:[%s320 + $0x250] sm:$0xff]
        %v796 = vld [vmem:[%s320 + $0x258] sm:$0xff]
        %v797 = vld [vmem:[%s320 + $0x260] sm:$0xff]
        %v798 = vld [vmem:[%s320 + $0x268] sm:$0xff]
        %v799 = vld [vmem:[%s320 + $0x270] sm:$0xff]
        %v800 = vld [vmem:[%s320 + $0x278] sm:$0xff]
        %v801 = vld [vmem:[%s320 + $0x280] sm:$0xff]
        %v802 = vld [vmem:[%s320 + $0x288] sm:$0xff]
        %v803 = vld [vmem:[%s320 + $0x290] sm:$0xff]
        %v804 = vld [vmem:[%s320 + $0x298] sm:$0xff]
        %v805 = vld [vmem:[%s320 + $0x2a0] sm:$0xff]
        %v806 = vld [vmem:[%s320 + $0x2a8] sm:$0xff]
        %v807 = vld [vmem:[%s320 + $0x2b0] sm:$0xff]
        %v808 = vld [vmem:[%s320 + $0x2b8] sm:$0xff]
        %v809 = vld [vmem:[%s320 + $0x2c0] sm:$0xff]
        %v810 = vld [vmem:[%s320 + $0x2c8] sm:$0xff]
        %v811 = vld [vmem:[%s320 + $0x2d0] sm:$0xff]
        %v812 = vld [vmem:[%s320 + $0x2d8] sm:$0xff]
        %v813 = vld [vmem:[%s320 + $0x2e0] sm:$0xff]
        %v814 = vld [vmem:[%s320 + $0x2e8] sm:$0xff]
        %v815 = vld [vmem:[%s320 + $0x2f0] sm:$0xff]
        %v816 = vld [vmem:[%s320 + $0x2f8] sm:$0xff]
        %v817 = vld [vmem:[%s320 + $0x300] sm:$0xff]
        %v818 = vld [vmem:[%s320 + $0x308] sm:$0xff]
        %v819 = vld [vmem:[%s320 + $0x310] sm:$0xff]
        %v820 = vld [vmem:[%s320 + $0x318] sm:$0xff]
        %v821 = vld [vmem:[%s320 + $0x320] sm:$0xff]
        %v822 = vld [vmem:[%s320 + $0x328] sm:$0xff]
        %v823 = vld [vmem:[%s320 + $0x330] sm:$0xff]
        %v824 = vld [vmem:[%s320 + $0x338] sm:$0xff]
        %v825 = vld [vmem:[%s320 + $0x340] sm:$0xff]
        %v826 = vld [vmem:[%s320 + $0x348] sm:$0xff]
        %v827 = vld [vmem:[%s320 + $0x350] sm:$0xff]
        %v828 = vld [vmem:[%s320 + $0x358] sm:$0xff]
        %v829 = vld [vmem:[%s320 + $0x360] sm:$0xff]
        %v830 = vld [vmem:[%s320 + $0x368] sm:$0xff]
        %v831 = vld [vmem:[%s320 + $0x370] sm:$0xff]
        %v832 = vld [vmem:[%s320 + $0x378] sm:$0xff]
        %v833 = vld [vmem:[%s320 + $0x380] sm:$0xff]
        %v834 = vld [vmem:[%s320 + $0x388] sm:$0xff]
        %v835 = vld [vmem:[%s320 + $0x390] sm:$0xff]
        %v836 = vld [vmem:[%s320 + $0x398] sm:$0xff]
        %v837 = vld [vmem:[%s320 + $0x3a0] sm:$0xff]
        %v838 = vld [vmem:[%s320 + $0x3a8] sm:$0xff]
        %v839 = vld [vmem:[%s320 + $0x3b0] sm:$0xff]
        %v840 = vld [vmem:[%s320 + $0x3b8] sm:$0xff]
        %v841 = vld [vmem:[%s320 + $0x3c0] sm:$0xff]
        %v842 = vld [vmem:[%s320 + $0x3c8] sm:$0xff]
        %v843 = vld [vmem:[%s320 + $0x3d0] sm:$0xff]
        %v844 = vld [vmem:[%s320 + $0x3d8] sm:$0xff]
        %v845 = vld [vmem:[%s320 + $0x3e0] sm:$0xff]
        %v846 = vld [vmem:[%s320 + $0x3e8] sm:$0xff]
        %v847 = vld [vmem:[%s320 + $0x3f0] sm:$0xff]
        %v848 = vld [vmem:[%s320 + $0x3f8] sm:$0xff]
        %v849 = vld [vmem:[%s320 + $0x400] sm:$0xff]
        %v850 = vld [vmem:[%s320 + $0x408] sm:$0xff]
        %v851 = vld [vmem:[%s320 + $0x410] sm:$0xff]
        %v852 = vld [vmem:[%s320 + $0x418] sm:$0xff]
        %v853 = vld [vmem:[%s320 + $0x420] sm:$0xff]
        %v854 = vld [vmem:[%s320 + $0x428] sm:$0xff]
        %v855 = vld [vmem:[%s320 + $0x430] sm:$0xff]
        %v856 = vld [vmem:[%s320 + $0x438] sm:$0xff]
        %v857 = vld [vmem:[%s320 + $0x440] sm:$0xff]
        %v858 = vld [vmem:[%s320 + $0x448] sm:$0xff]
        %v859 = vld [vmem:[%s320 + $0x450] sm:$0xff]
        %v860 = vld [vmem:[%s320 + $0x458] sm:$0xff]
        %v861 = vld [vmem:[%s320 + $0x460] sm:$0xff]
        %v862 = vld [vmem:[%s320 + $0x468] sm:$0xff]
        %v863 = vld [vmem:[%s320 + $0x470] sm:$0xff]
        %v864 = vld [vmem:[%s320 + $0x478] sm:$0xff]
        %v865 = vld [vmem:[%s320 + $0x480] sm:$0xff]
        %v866 = vld [vmem:[%s320 + $0x488] sm:$0xff]
        %v867 = vld [vmem:[%s320 + $0x490] sm:$0xff]
        %v868 = vld [vmem:[%s320 + $0x498] sm:$0xff]
        %v869 = vld [vmem:[%s320 + $0x4a0] sm:$0xff]
        %v870 = vld [vmem:[%s320 + $0x4a8] sm:$0xff]
        %v871 = vld [vmem:[%s320 + $0x4b0] sm:$0xff]
        %v872 = vld [vmem:[%s320 + $0x4b8] sm:$0xff]
        %v873 = vld [vmem:[%s320 + $0x4c0] sm:$0xff]
        %v874 = vld [vmem:[%s320 + $0x4c8] sm:$0xff]
        %v875 = vld [vmem:[%s320 + $0x4d0] sm:$0xff]
        %v876 = vld [vmem:[%s320 + $0x4d8] sm:$0xff]
        %v877 = vld [vmem:[%s320 + $0x4e0] sm:$0xff]
        %v878 = vld [vmem:[%s320 + $0x4e8] sm:$0xff]
        %v879 = vld [vmem:[%s320 + $0x4f0] sm:$0xff]
        %v880 = vld [vmem:[%s320 + $0x4f8] sm:$0xff]
        %v881 = vld [vmem:[%s320 + $0x500] sm:$0xff]
        %v882 = vld [vmem:[%s320 + $0x508] sm:$0xff]
        %v883 = vld [vmem:[%s320 + $0x510] sm:$0xff]
        %v884 = vld [vmem:[%s320 + $0x518] sm:$0xff]
        %v885 = vld [vmem:[%s320 + $0x520] sm:$0xff]
        %v886 = vld [vmem:[%s320 + $0x528] sm:$0xff]
        %v887 = vld [vmem:[%s320 + $0x530] sm:$0xff]
        %v888 = vld [vmem:[%s320 + $0x538] sm:$0xff]
        %v889 = vld [vmem:[%s320 + $0x540] sm:$0xff]
        %v890 = vld [vmem:[%s320 + $0x548] sm:$0xff]
        %v891 = vld [vmem:[%s320 + $0x550] sm:$0xff]
        %v892 = vld [vmem:[%s320 + $0x558] sm:$0xff]
        %v893 = vld [vmem:[%s320 + $0x560] sm:$0xff]
        %v894 = vld [vmem:[%s320 + $0x568] sm:$0xff]
        %v895 = vld [vmem:[%s320 + $0x570] sm:$0xff]
        %v896 = vld [vmem:[%s320 + $0x578] sm:$0xff]
        %v897 = vld [vmem:[%s320 + $0x580] sm:$0xff]
        %v898 = vld [vmem:[%s320 + $0x588] sm:$0xff]
        %v899 = vld [vmem:[%s320 + $0x590] sm:$0xff]
        %v900 = vld [vmem:[%s320 + $0x598] sm:$0xff]
        %v901 = vld [vmem:[%s320 + $0x5a0] sm:$0xff]
        %v902 = vld [vmem:[%s320 + $0x5a8] sm:$0xff]
        %v903 = vld [vmem:[%s320 + $0x5b0] sm:$0xff]
        %v904 = vld [vmem:[%s320 + $0x5b8] sm:$0xff]
        %v905 = vld [vmem:[%s320 + $0x5c0] sm:$0xff]
        %v906 = vld [vmem:[%s320 + $0x5c8] sm:$0xff]
        %v907 = vld [vmem:[%s320 + $0x5d0] sm:$0xff]
        %v908 = vld [vmem:[%s320 + $0x5d8] sm:$0xff]
        %v909 = vld [vmem:[%s334] sm:$0xff]
        %v910 = vld [vmem:[%s334 + $0x8] sm:$0xff]
        %v911 = vld [vmem:[%s334 + $0x10] sm:$0xff]
        %v912 = vld [vmem:[%s334 + $0x18] sm:$0xff]
        %v913 = vld [vmem:[%s334 + $0x20] sm:$0xff]
        %v914 = vld [vmem:[%s334 + $0x28] sm:$0xff]
        %v915 = vld [vmem:[%s334 + $0x30] sm:$0xff]
        %v916 = vld [vmem:[%s334 + $0x38] sm:$0xff]
        %v917 = vld [vmem:[%s334 + $0x40] sm:$0xff]
        %v918 = vld [vmem:[%s334 + $0x48] sm:$0xff]
        %v919 = vld [vmem:[%s334 + $0x50] sm:$0xff]
        %v920 = vld [vmem:[%s334 + $0x58] sm:$0xff]
        %v921 = vld [vmem:[%s334 + $0x60] sm:$0xff]
        %v922 = vld [vmem:[%s334 + $0x68] sm:$0xff]
        %v923 = vld [vmem:[%s334 + $0x70] sm:$0xff]
        %v924 = vld [vmem:[%s334 + $0x78] sm:$0xff]
        %v925 = vld [vmem:[%s334 + $0x80] sm:$0xff]
        %v926 = vld [vmem:[%s334 + $0x88] sm:$0xff]
        %v927 = vld [vmem:[%s334 + $0x90] sm:$0xff]
        %v928 = vld [vmem:[%s334 + $0x98] sm:$0xff]
        %v929 = vld [vmem:[%s334 + $0xa0] sm:$0xff]
        %v930 = vld [vmem:[%s334 + $0xa8] sm:$0xff]
        %v931 = vld [vmem:[%s334 + $0xb0] sm:$0xff]
        %v932 = vld [vmem:[%s334 + $0xb8] sm:$0xff]
        %v933 = vld [vmem:[%s334 + $0xc0] sm:$0xff]
        %v934 = vld [vmem:[%s334 + $0xc8] sm:$0xff]
        %v935 = vld [vmem:[%s334 + $0xd0] sm:$0xff]
        %v936 = vld [vmem:[%s334 + $0xd8] sm:$0xff]
        %v937 = vld [vmem:[%s334 + $0xe0] sm:$0xff]
        %v938 = vld [vmem:[%s334 + $0xe8] sm:$0xff]
        %v939 = vld [vmem:[%s334 + $0xf0] sm:$0xff]
        %v940 = vld [vmem:[%s334 + $0xf8] sm:$0xff]
        %v941 = vld [vmem:[%s334 + $0x100] sm:$0xff]
        %v942 = vld [vmem:[%s334 + $0x108] sm:$0xff]
        %v943 = vld [vmem:[%s334 + $0x110] sm:$0xff]
        %v944 = vld [vmem:[%s334 + $0x118] sm:$0xff]
        %v945 = vld [vmem:[%s334 + $0x120] sm:$0xff]
        %v946 = vld [vmem:[%s334 + $0x128] sm:$0xff]
        %v947 = vld [vmem:[%s334 + $0x130] sm:$0xff]
        %v948 = vld [vmem:[%s334 + $0x138] sm:$0xff]
        %v949 = vld [vmem:[%s334 + $0x140] sm:$0xff]
        %v950 = vld [vmem:[%s334 + $0x148] sm:$0xff]
        %v951 = vld [vmem:[%s334 + $0x150] sm:$0xff]
        %v952 = vld [vmem:[%s334 + $0x158] sm:$0xff]
        %v953 = vld [vmem:[%s334 + $0x160] sm:$0xff]
        %v954 = vld [vmem:[%s334 + $0x168] sm:$0xff]
        %v955 = vld [vmem:[%s334 + $0x170] sm:$0xff]
        %v956 = vld [vmem:[%s334 + $0x178] sm:$0xff]
        %v957 = vld [vmem:[%s334 + $0x180] sm:$0xff]
        %v958 = vld [vmem:[%s334 + $0x188] sm:$0xff]
        %v959 = vld [vmem:[%s334 + $0x190] sm:$0xff]
        %v960 = vld [vmem:[%s334 + $0x198] sm:$0xff]
        %v961 = vld [vmem:[%s334 + $0x1a0] sm:$0xff]
        %v962 = vld [vmem:[%s334 + $0x1a8] sm:$0xff]
        %v963 = vld [vmem:[%s334 + $0x1b0] sm:$0xff]
        %v964 = vld [vmem:[%s334 + $0x1b8] sm:$0xff]
        %v965 = vld [vmem:[%s334 + $0x1c0] sm:$0xff]
        %v966 = vld [vmem:[%s334 + $0x1c8] sm:$0xff]
        %v967 = vld [vmem:[%s334 + $0x1d0] sm:$0xff]
        %v968 = vld [vmem:[%s334 + $0x1d8] sm:$0xff]
        %v969 = vld [vmem:[%s334 + $0x1e0] sm:$0xff]
        %v970 = vld [vmem:[%s334 + $0x1e8] sm:$0xff]
        %v971 = vld [vmem:[%s334 + $0x1f0] sm:$0xff]
        %v972 = vld [vmem:[%s334 + $0x1f8] sm:$0xff]
        %v973 = vld [vmem:[%s334 + $0x200] sm:$0xff]
        %v974 = vld [vmem:[%s334 + $0x208] sm:$0xff]
        %v975 = vld [vmem:[%s334 + $0x210] sm:$0xff]
        %v976 = vld [vmem:[%s334 + $0x218] sm:$0xff]
        %v977 = vld [vmem:[%s334 + $0x220] sm:$0xff]
        %v978 = vld [vmem:[%s334 + $0x228] sm:$0xff]
        %v979 = vld [vmem:[%s334 + $0x230] sm:$0xff]
        %v980 = vld [vmem:[%s334 + $0x238] sm:$0xff]
        %v981 = vld [vmem:[%s334 + $0x240] sm:$0xff]
        %v982 = vld [vmem:[%s334 + $0x248] sm:$0xff]
        %v983 = vld [vmem:[%s334 + $0x250] sm:$0xff]
        %v984 = vld [vmem:[%s334 + $0x258] sm:$0xff]
        %v985 = vld [vmem:[%s334 + $0x260] sm:$0xff]
        %v986 = vld [vmem:[%s334 + $0x268] sm:$0xff]
        %v987 = vld [vmem:[%s334 + $0x270] sm:$0xff]
        %v988 = vld [vmem:[%s334 + $0x278] sm:$0xff]
        %v989 = vld [vmem:[%s334 + $0x280] sm:$0xff]
        %v990 = vld [vmem:[%s334 + $0x288] sm:$0xff]
        %v991 = vld [vmem:[%s334 + $0x290] sm:$0xff]
        %v992 = vld [vmem:[%s334 + $0x298] sm:$0xff]
        %v993 = vld [vmem:[%s334 + $0x2a0] sm:$0xff]
        %v994 = vld [vmem:[%s334 + $0x2a8] sm:$0xff]
        %v995 = vld [vmem:[%s334 + $0x2b0] sm:$0xff]
        %v996 = vld [vmem:[%s334 + $0x2b8] sm:$0xff]
        %v997 = vld [vmem:[%s334 + $0x2c0] sm:$0xff]
        %v998 = vld [vmem:[%s334 + $0x2c8] sm:$0xff]
        %v999 = vld [vmem:[%s334 + $0x2d0] sm:$0xff]
        %v1000 = vld [vmem:[%s334 + $0x2d8] sm:$0xff]
        %v1001 = vld [vmem:[%s334 + $0x2e0] sm:$0xff]
        %v1002 = vld [vmem:[%s334 + $0x2e8] sm:$0xff]
        %v1003 = vld [vmem:[%s334 + $0x2f0] sm:$0xff]
        %v1004 = vld [vmem:[%s334 + $0x2f8] sm:$0xff]
        %v1005 = vld [vmem:[%s334 + $0x300] sm:$0xff]
        %v1006 = vld [vmem:[%s334 + $0x308] sm:$0xff]
        %v1007 = vld [vmem:[%s334 + $0x310] sm:$0xff]
        %v1008 = vld [vmem:[%s334 + $0x318] sm:$0xff]
        %v1009 = vld [vmem:[%s334 + $0x320] sm:$0xff]
        %v1010 = vld [vmem:[%s334 + $0x328] sm:$0xff]
        %v1011 = vld [vmem:[%s334 + $0x330] sm:$0xff]
        %v1012 = vld [vmem:[%s334 + $0x338] sm:$0xff]
        %v1013 = vld [vmem:[%s334 + $0x340] sm:$0xff]
        %v1014 = vld [vmem:[%s334 + $0x348] sm:$0xff]
        %v1015 = vld [vmem:[%s334 + $0x350] sm:$0xff]
        %v1016 = vld [vmem:[%s334 + $0x358] sm:$0xff]
        %v1017 = vld [vmem:[%s334 + $0x360] sm:$0xff]
        %v1018 = vld [vmem:[%s334 + $0x368] sm:$0xff]
        %v1019 = vld [vmem:[%s334 + $0x370] sm:$0xff]
        %v1020 = vld [vmem:[%s334 + $0x378] sm:$0xff]
        %v1021 = vld [vmem:[%s334 + $0x380] sm:$0xff]
        %v1022 = vld [vmem:[%s334 + $0x388] sm:$0xff]
        %v1023 = vld [vmem:[%s334 + $0x390] sm:$0xff]
        %v1024 = vld [vmem:[%s334 + $0x398] sm:$0xff]
        %v1025 = vld [vmem:[%s334 + $0x3a0] sm:$0xff]
        %v1026 = vld [vmem:[%s334 + $0x3a8] sm:$0xff]
        %v1027 = vld [vmem:[%s334 + $0x3b0] sm:$0xff]
        %v1028 = vld [vmem:[%s334 + $0x3b8] sm:$0xff]
        %v1029 = vld [vmem:[%s334 + $0x3c0] sm:$0xff]
        %v1030 = vld [vmem:[%s334 + $0x3c8] sm:$0xff]
        %v1031 = vld [vmem:[%s334 + $0x3d0] sm:$0xff]
        %v1032 = vld [vmem:[%s334 + $0x3d8] sm:$0xff]
        %v1033 = vld [vmem:[%s334 + $0x3e0] sm:$0xff]
        %v1034 = vld [vmem:[%s334 + $0x3e8] sm:$0xff]
        %v1035 = vld [vmem:[%s334 + $0x3f0] sm:$0xff]
        %v1036 = vld [vmem:[%s334 + $0x3f8] sm:$0xff]
        %v1037 = vld [vmem:[%s334 + $0x400] sm:$0xff]
        %v1038 = vld [vmem:[%s334 + $0x408] sm:$0xff]
        %v1039 = vld [vmem:[%s334 + $0x410] sm:$0xff]
        %v1040 = vld [vmem:[%s334 + $0x418] sm:$0xff]
        %v1041 = vld [vmem:[%s334 + $0x420] sm:$0xff]
        %v1042 = vld [vmem:[%s334 + $0x428] sm:$0xff]
        %v1043 = vld [vmem:[%s334 + $0x430] sm:$0xff]
        %v1044 = vld [vmem:[%s334 + $0x438] sm:$0xff]
        %v1045 = vld [vmem:[%s334 + $0x440] sm:$0xff]
        %v1046 = vld [vmem:[%s334 + $0x448] sm:$0xff]
        %v1047 = vld [vmem:[%s334 + $0x450] sm:$0xff]
        %v1048 = vld [vmem:[%s334 + $0x458] sm:$0xff]
        %v1049 = vld [vmem:[%s334 + $0x460] sm:$0xff]
        %v1050 = vld [vmem:[%s334 + $0x468] sm:$0xff]
        %v1051 = vld [vmem:[%s334 + $0x470] sm:$0xff]
        %v1052 = vld [vmem:[%s334 + $0x478] sm:$0xff]
        %v1053 = vld [vmem:[%s334 + $0x480] sm:$0xff]
        %v1054 = vld [vmem:[%s334 + $0x488] sm:$0xff]
        %v1055 = vld [vmem:[%s334 + $0x490] sm:$0xff]
        %v1056 = vld [vmem:[%s334 + $0x498] sm:$0xff]
        %v1057 = vld [vmem:[%s334 + $0x4a0] sm:$0xff]
        %v1058 = vld [vmem:[%s334 + $0x4a8] sm:$0xff]
        %v1059 = vld [vmem:[%s334 + $0x4b0] sm:$0xff]
        %v1060 = vld [vmem:[%s334 + $0x4b8] sm:$0xff]
        %v1061 = vld [vmem:[%s334 + $0x4c0] sm:$0xff]
        %v1062 = vld [vmem:[%s334 + $0x4c8] sm:$0xff]
        %v1063 = vld [vmem:[%s334 + $0x4d0] sm:$0xff]
        %v1064 = vld [vmem:[%s334 + $0x4d8] sm:$0xff]
        %v1065 = vld [vmem:[%s334 + $0x4e0] sm:$0xff]
        %v1066 = vld [vmem:[%s334 + $0x4e8] sm:$0xff]
        %v1067 = vld [vmem:[%s334 + $0x4f0] sm:$0xff]
        %v1068 = vld [vmem:[%s334 + $0x4f8] sm:$0xff]
        %v1069 = vld [vmem:[%s334 + $0x500] sm:$0xff]
        %v1070 = vld [vmem:[%s334 + $0x508] sm:$0xff]
        %v1071 = vld [vmem:[%s334 + $0x510] sm:$0xff]
        %v1072 = vld [vmem:[%s334 + $0x518] sm:$0xff]
        %v1073 = vld [vmem:[%s334 + $0x520] sm:$0xff]
        %v1074 = vld [vmem:[%s334 + $0x528] sm:$0xff]
        %v1075 = vld [vmem:[%s334 + $0x530] sm:$0xff]
        %v1076 = vld [vmem:[%s334 + $0x538] sm:$0xff]
        %v1077 = vld [vmem:[%s334 + $0x540] sm:$0xff]
        %v1078 = vld [vmem:[%s334 + $0x548] sm:$0xff]
        %v1079 = vld [vmem:[%s334 + $0x550] sm:$0xff]
        %v1080 = vld [vmem:[%s334 + $0x558] sm:$0xff]
        %v1081 = vld [vmem:[%s334 + $0x560] sm:$0xff]
        %v1082 = vld [vmem:[%s334 + $0x568] sm:$0xff]
        %v1083 = vld [vmem:[%s334 + $0x570] sm:$0xff]
        %v1084 = vld [vmem:[%s334 + $0x578] sm:$0xff]
        %v1085 = vld [vmem:[%s334 + $0x580] sm:$0xff]
        %v1086 = vld [vmem:[%s334 + $0x588] sm:$0xff]
        %v1087 = vld [vmem:[%s334 + $0x590] sm:$0xff]
        %v1088 = vld [vmem:[%s334 + $0x598] sm:$0xff]
        %v1089 = vld [vmem:[%s334 + $0x5a0] sm:$0xff]
        %v1090 = vld [vmem:[%s334 + $0x5a8] sm:$0xff]
        %v1091 = vld [vmem:[%s334 + $0x5b0] sm:$0xff]
        %v1092 = vld [vmem:[%s334 + $0x5b8] sm:$0xff]
        %v1093 = vld [vmem:[%s334 + $0x5c0] sm:$0xff]
        %v1094 = vld [vmem:[%s334 + $0x5c8] sm:$0xff]
        %v1095 = vld [vmem:[%s334 + $0x5d0] sm:$0xff]
        %v1096 = vld [vmem:[%s334 + $0x5d8] sm:$0xff]
        %1285 = vrot.lane.b32.xlu0 %v533, 32
        %v1286 = vpop.permute.xlu0 %1285
        %1287 = vrot.lane.b32.xlu0 %v534, 32
        %v1288 = vpop.permute.xlu0 %1287
        %1289 = vrot.lane.b32.xlu0 %v535, 32
        %v1290 = vpop.permute.xlu0 %1289
        %1291 = vrot.lane.b32.xlu0 %v536, 32
        %v1292 = vpop.permute.xlu0 %1291
        %1293 = vrot.lane.b32.xlu0 %v537, 32
        %v1294 = vpop.permute.xlu0 %1293
        %1295 = vrot.lane.b32.xlu0 %v538, 32
        %v1296 = vpop.permute.xlu0 %1295
        %1297 = vrot.lane.b32.xlu0 %v539, 32
        %v1298 = vpop.permute.xlu0 %1297
        %1299 = vrot.lane.b32.xlu0 %v540, 32
        %v1300 = vpop.permute.xlu0 %1299
        %1301 = vrot.lane.b32.xlu0 %v541, 32
        %v1302 = vpop.permute.xlu0 %1301
        %1303 = vrot.lane.b32.xlu0 %v542, 32
        %v1304 = vpop.permute.xlu0 %1303
        %1305 = vrot.lane.b32.xlu0 %v543, 32
        %v1306 = vpop.permute.xlu0 %1305
        %1307 = vrot.lane.b32.xlu0 %v544, 32
        %v1308 = vpop.permute.xlu0 %1307
        %1309 = vrot.lane.b32.xlu0 %v545, 32
        %v1310 = vpop.permute.xlu0 %1309
        %1311 = vrot.lane.b32.xlu0 %v546, 32
        %v1312 = vpop.permute.xlu0 %1311
        %1313 = vrot.lane.b32.xlu0 %v547, 32
        %v1314 = vpop.permute.xlu0 %1313
        %1315 = vrot.lane.b32.xlu0 %v548, 32
        %v1316 = vpop.permute.xlu0 %1315
        %1317 = vrot.lane.b32.xlu0 %v549, 32
        %v1318 = vpop.permute.xlu0 %1317
        %1319 = vrot.lane.b32.xlu0 %v550, 32
        %v1320 = vpop.permute.xlu0 %1319
        %1321 = vrot.lane.b32.xlu0 %v551, 32
        %v1322 = vpop.permute.xlu0 %1321
        %1323 = vrot.lane.b32.xlu0 %v552, 32
        %v1324 = vpop.permute.xlu0 %1323
        %1325 = vrot.lane.b32.xlu0 %v553, 32
        %v1326 = vpop.permute.xlu0 %1325
        %1327 = vrot.lane.b32.xlu0 %v554, 32
        %v1328 = vpop.permute.xlu0 %1327
        %1329 = vrot.lane.b32.xlu0 %v555, 32
        %v1330 = vpop.permute.xlu0 %1329
        %1331 = vrot.lane.b32.xlu0 %v556, 32
        %v1332 = vpop.permute.xlu0 %1331
        %1333 = vrot.lane.b32.xlu0 %v557, 32
        %v1334 = vpop.permute.xlu0 %1333
        %1335 = vrot.lane.b32.xlu0 %v558, 32
        %v1336 = vpop.permute.xlu0 %1335
        %1337 = vrot.lane.b32.xlu0 %v559, 32
        %v1338 = vpop.permute.xlu0 %1337
        %1339 = vrot.lane.b32.xlu0 %v560, 32
        %v1340 = vpop.permute.xlu0 %1339
        %1341 = vrot.lane.b32.xlu0 %v561, 32
        %v1342 = vpop.permute.xlu0 %1341
        %1343 = vrot.lane.b32.xlu0 %v562, 32
        %v1344 = vpop.permute.xlu0 %1343
        %1345 = vrot.lane.b32.xlu0 %v563, 32
        %v1346 = vpop.permute.xlu0 %1345
        %1347 = vrot.lane.b32.xlu0 %v564, 32
        %v1348 = vpop.permute.xlu0 %1347
        %1349 = vrot.lane.b32.xlu0 %v565, 32
        %v1350 = vpop.permute.xlu0 %1349
        %1351 = vrot.lane.b32.xlu0 %v566, 32
        %v1352 = vpop.permute.xlu0 %1351
        %1353 = vrot.lane.b32.xlu0 %v567, 32
        %v1354 = vpop.permute.xlu0 %1353
        %1355 = vrot.lane.b32.xlu0 %v568, 32
        %v1356 = vpop.permute.xlu0 %1355
        %1357 = vrot.lane.b32.xlu0 %v569, 32
        %v1358 = vpop.permute.xlu0 %1357
        %1359 = vrot.lane.b32.xlu0 %v570, 32
        %v1360 = vpop.permute.xlu0 %1359
        %1361 = vrot.lane.b32.xlu0 %v571, 32
        %v1362 = vpop.permute.xlu0 %1361
        %1363 = vrot.lane.b32.xlu0 %v572, 32
        %v1364 = vpop.permute.xlu0 %1363
        %1365 = vrot.lane.b32.xlu0 %v573, 32
        %v1366 = vpop.permute.xlu0 %1365
        %1367 = vrot.lane.b32.xlu0 %v574, 32
        %v1368 = vpop.permute.xlu0 %1367
        %1369 = vrot.lane.b32.xlu0 %v575, 32
        %v1370 = vpop.permute.xlu0 %1369
        %1371 = vrot.lane.b32.xlu0 %v576, 32
        %v1372 = vpop.permute.xlu0 %1371
        %1373 = vrot.lane.b32.xlu0 %v577, 32
        %v1374 = vpop.permute.xlu0 %1373
        %1375 = vrot.lane.b32.xlu0 %v578, 32
        %v1376 = vpop.permute.xlu0 %1375
        %1377 = vrot.lane.b32.xlu0 %v579, 32
        %v1378 = vpop.permute.xlu0 %1377
        %1379 = vrot.lane.b32.xlu0 %v580, 32
        %v1380 = vpop.permute.xlu0 %1379
        %1381 = vrot.lane.b32.xlu0 %v581, 32
        %v1382 = vpop.permute.xlu0 %1381
        %1383 = vrot.lane.b32.xlu0 %v582, 32
        %v1384 = vpop.permute.xlu0 %1383
        %1385 = vrot.lane.b32.xlu0 %v583, 32
        %v1386 = vpop.permute.xlu0 %1385
        %1387 = vrot.lane.b32.xlu0 %v584, 32
        %v1388 = vpop.permute.xlu0 %1387
        %1389 = vrot.lane.b32.xlu0 %v585, 32
        %v1390 = vpop.permute.xlu0 %1389
        %1391 = vrot.lane.b32.xlu0 %v586, 32
        %v1392 = vpop.permute.xlu0 %1391
        %1393 = vrot.lane.b32.xlu0 %v587, 32
        %v1394 = vpop.permute.xlu0 %1393
        %1395 = vrot.lane.b32.xlu0 %v588, 32
        %v1396 = vpop.permute.xlu0 %1395
        %1397 = vrot.lane.b32.xlu0 %v589, 32
        %v1398 = vpop.permute.xlu0 %1397
        %1399 = vrot.lane.b32.xlu0 %v590, 32
        %v1400 = vpop.permute.xlu0 %1399
        %1401 = vrot.lane.b32.xlu0 %v591, 32
        %v1402 = vpop.permute.xlu0 %1401
        %1403 = vrot.lane.b32.xlu0 %v592, 32
        %v1404 = vpop.permute.xlu0 %1403
        %1405 = vrot.lane.b32.xlu0 %v593, 32
        %v1406 = vpop.permute.xlu0 %1405
        %1407 = vrot.lane.b32.xlu0 %v594, 32
        %v1408 = vpop.permute.xlu0 %1407
        %1409 = vrot.lane.b32.xlu0 %v595, 32
        %v1410 = vpop.permute.xlu0 %1409
        %1411 = vrot.lane.b32.xlu0 %v596, 32
        %v1412 = vpop.permute.xlu0 %1411
        %1413 = vrot.lane.b32.xlu0 %v597, 32
        %v1414 = vpop.permute.xlu0 %1413
        %1415 = vrot.lane.b32.xlu0 %v598, 32
        %v1416 = vpop.permute.xlu0 %1415
        %1417 = vrot.lane.b32.xlu0 %v599, 32
        %v1418 = vpop.permute.xlu0 %1417
        %1419 = vrot.lane.b32.xlu0 %v600, 32
        %v1420 = vpop.permute.xlu0 %1419
        %1421 = vrot.lane.b32.xlu0 %v601, 32
        %v1422 = vpop.permute.xlu0 %1421
        %1423 = vrot.lane.b32.xlu0 %v602, 32
        %v1424 = vpop.permute.xlu0 %1423
        %1425 = vrot.lane.b32.xlu0 %v603, 32
        %v1426 = vpop.permute.xlu0 %1425
        %1427 = vrot.lane.b32.xlu0 %v604, 32
        %v1428 = vpop.permute.xlu0 %1427
        %1429 = vrot.lane.b32.xlu0 %v605, 32
        %v1430 = vpop.permute.xlu0 %1429
        %1431 = vrot.lane.b32.xlu0 %v606, 32
        %v1432 = vpop.permute.xlu0 %1431
        %1433 = vrot.lane.b32.xlu0 %v607, 32
        %v1434 = vpop.permute.xlu0 %1433
        %1435 = vrot.lane.b32.xlu0 %v608, 32
        %v1436 = vpop.permute.xlu0 %1435
        %1437 = vrot.lane.b32.xlu0 %v609, 32
        %v1438 = vpop.permute.xlu0 %1437
        %1439 = vrot.lane.b32.xlu0 %v610, 32
        %v1440 = vpop.permute.xlu0 %1439
        %1441 = vrot.lane.b32.xlu0 %v611, 32
        %v1442 = vpop.permute.xlu0 %1441
        %1443 = vrot.lane.b32.xlu0 %v612, 32
        %v1444 = vpop.permute.xlu0 %1443
        %1445 = vrot.lane.b32.xlu0 %v613, 32
        %v1446 = vpop.permute.xlu0 %1445
        %1447 = vrot.lane.b32.xlu0 %v614, 32
        %v1448 = vpop.permute.xlu0 %1447
        %1449 = vrot.lane.b32.xlu0 %v615, 32
        %v1450 = vpop.permute.xlu0 %1449
        %1451 = vrot.lane.b32.xlu0 %v616, 32
        %v1452 = vpop.permute.xlu0 %1451
        %1453 = vrot.lane.b32.xlu0 %v617, 32
        %v1454 = vpop.permute.xlu0 %1453
        %1455 = vrot.lane.b32.xlu0 %v618, 32
        %v1456 = vpop.permute.xlu0 %1455
        %1457 = vrot.lane.b32.xlu0 %v619, 32
        %v1458 = vpop.permute.xlu0 %1457
        %1459 = vrot.lane.b32.xlu0 %v620, 32
        %v1460 = vpop.permute.xlu0 %1459
        %1461 = vrot.lane.b32.xlu0 %v621, 32
        %v1462 = vpop.permute.xlu0 %1461
        %1463 = vrot.lane.b32.xlu0 %v622, 32
        %v1464 = vpop.permute.xlu0 %1463
        %1465 = vrot.lane.b32.xlu0 %v623, 32
        %v1466 = vpop.permute.xlu0 %1465
        %1467 = vrot.lane.b32.xlu0 %v624, 32
        %v1468 = vpop.permute.xlu0 %1467
        %1469 = vrot.lane.b32.xlu0 %v625, 32
        %v1470 = vpop.permute.xlu0 %1469
        %1471 = vrot.lane.b32.xlu0 %v626, 32
        %v1472 = vpop.permute.xlu0 %1471
        %1473 = vrot.lane.b32.xlu0 %v627, 32
        %v1474 = vpop.permute.xlu0 %1473
        %1475 = vrot.lane.b32.xlu0 %v628, 32
        %v1476 = vpop.permute.xlu0 %1475
        %1477 = vrot.lane.b32.xlu0 %v629, 32
        %v1478 = vpop.permute.xlu0 %1477
        %1479 = vrot.lane.b32.xlu0 %v630, 32
        %v1480 = vpop.permute.xlu0 %1479
        %1481 = vrot.lane.b32.xlu0 %v631, 32
        %v1482 = vpop.permute.xlu0 %1481
        %1483 = vrot.lane.b32.xlu0 %v632, 32
        %v1484 = vpop.permute.xlu0 %1483
        %1485 = vrot.lane.b32.xlu0 %v633, 32
        %v1486 = vpop.permute.xlu0 %1485
        %1487 = vrot.lane.b32.xlu0 %v634, 32
        %v1488 = vpop.permute.xlu0 %1487
        %1489 = vrot.lane.b32.xlu0 %v635, 32
        %v1490 = vpop.permute.xlu0 %1489
        %1491 = vrot.lane.b32.xlu0 %v636, 32
        %v1492 = vpop.permute.xlu0 %1491
        %1493 = vrot.lane.b32.xlu0 %v637, 32
        %v1494 = vpop.permute.xlu0 %1493
        %1495 = vrot.lane.b32.xlu0 %v638, 32
        %v1496 = vpop.permute.xlu0 %1495
        %1497 = vrot.lane.b32.xlu0 %v639, 32
        %v1498 = vpop.permute.xlu0 %1497
        %1499 = vrot.lane.b32.xlu0 %v640, 32
        %v1500 = vpop.permute.xlu0 %1499
        %1501 = vrot.lane.b32.xlu0 %v641, 32
        %v1502 = vpop.permute.xlu0 %1501
        %1503 = vrot.lane.b32.xlu0 %v642, 32
        %v1504 = vpop.permute.xlu0 %1503
        %1505 = vrot.lane.b32.xlu0 %v643, 32
        %v1506 = vpop.permute.xlu0 %1505
        %1507 = vrot.lane.b32.xlu0 %v644, 32
        %v1508 = vpop.permute.xlu0 %1507
        %1509 = vrot.lane.b32.xlu0 %v645, 32
        %v1510 = vpop.permute.xlu0 %1509
        %1511 = vrot.lane.b32.xlu0 %v646, 32
        %v1512 = vpop.permute.xlu0 %1511
        %1513 = vrot.lane.b32.xlu0 %v647, 32
        %v1514 = vpop.permute.xlu0 %1513
        %1515 = vrot.lane.b32.xlu0 %v648, 32
        %v1516 = vpop.permute.xlu0 %1515
        %1517 = vrot.lane.b32.xlu0 %v649, 32
        %v1518 = vpop.permute.xlu0 %1517
        %1519 = vrot.lane.b32.xlu0 %v650, 32
        %v1520 = vpop.permute.xlu0 %1519
        %1521 = vrot.lane.b32.xlu0 %v651, 32
        %v1522 = vpop.permute.xlu0 %1521
        %1523 = vrot.lane.b32.xlu0 %v652, 32
        %v1524 = vpop.permute.xlu0 %1523
        %1525 = vrot.lane.b32.xlu0 %v653, 32
        %v1526 = vpop.permute.xlu0 %1525
        %1527 = vrot.lane.b32.xlu0 %v654, 32
        %v1528 = vpop.permute.xlu0 %1527
        %1529 = vrot.lane.b32.xlu0 %v655, 32
        %v1530 = vpop.permute.xlu0 %1529
        %1531 = vrot.lane.b32.xlu0 %v656, 32
        %v1532 = vpop.permute.xlu0 %1531
        %1533 = vrot.lane.b32.xlu0 %v657, 32
        %v1534 = vpop.permute.xlu0 %1533
        %1535 = vrot.lane.b32.xlu0 %v658, 32
        %v1536 = vpop.permute.xlu0 %1535
        %1537 = vrot.lane.b32.xlu0 %v659, 32
        %v1538 = vpop.permute.xlu0 %1537
        %1539 = vrot.lane.b32.xlu0 %v660, 32
        %v1540 = vpop.permute.xlu0 %1539
        %1541 = vrot.lane.b32.xlu0 %v661, 32
        %v1542 = vpop.permute.xlu0 %1541
        %1543 = vrot.lane.b32.xlu0 %v662, 32
        %v1544 = vpop.permute.xlu0 %1543
        %1545 = vrot.lane.b32.xlu0 %v663, 32
        %v1546 = vpop.permute.xlu0 %1545
        %1547 = vrot.lane.b32.xlu0 %v664, 32
        %v1548 = vpop.permute.xlu0 %1547
        %1549 = vrot.lane.b32.xlu0 %v665, 32
        %v1550 = vpop.permute.xlu0 %1549
        %1551 = vrot.lane.b32.xlu0 %v666, 32
        %v1552 = vpop.permute.xlu0 %1551
        %1553 = vrot.lane.b32.xlu0 %v667, 32
        %v1554 = vpop.permute.xlu0 %1553
        %1555 = vrot.lane.b32.xlu0 %v668, 32
        %v1556 = vpop.permute.xlu0 %1555
        %1557 = vrot.lane.b32.xlu0 %v669, 32
        %v1558 = vpop.permute.xlu0 %1557
        %1559 = vrot.lane.b32.xlu0 %v670, 32
        %v1560 = vpop.permute.xlu0 %1559
        %1561 = vrot.lane.b32.xlu0 %v671, 32
        %v1562 = vpop.permute.xlu0 %1561
        %1563 = vrot.lane.b32.xlu0 %v672, 32
        %v1564 = vpop.permute.xlu0 %1563
        %1565 = vrot.lane.b32.xlu0 %v673, 32
        %v1566 = vpop.permute.xlu0 %1565
        %1567 = vrot.lane.b32.xlu0 %v674, 32
        %v1568 = vpop.permute.xlu0 %1567
        %1569 = vrot.lane.b32.xlu0 %v675, 32
        %v1570 = vpop.permute.xlu0 %1569
        %1571 = vrot.lane.b32.xlu0 %v676, 32
        %v1572 = vpop.permute.xlu0 %1571
        %1573 = vrot.lane.b32.xlu0 %v677, 32
        %v1574 = vpop.permute.xlu0 %1573
        %1575 = vrot.lane.b32.xlu0 %v678, 32
        %v1576 = vpop.permute.xlu0 %1575
        %1577 = vrot.lane.b32.xlu0 %v679, 32
        %v1578 = vpop.permute.xlu0 %1577
        %1579 = vrot.lane.b32.xlu0 %v680, 32
        %v1580 = vpop.permute.xlu0 %1579
        %1581 = vrot.lane.b32.xlu0 %v681, 32
        %v1582 = vpop.permute.xlu0 %1581
        %1583 = vrot.lane.b32.xlu0 %v682, 32
        %v1584 = vpop.permute.xlu0 %1583
        %1585 = vrot.lane.b32.xlu0 %v683, 32
        %v1586 = vpop.permute.xlu0 %1585
        %1587 = vrot.lane.b32.xlu0 %v684, 32
        %v1588 = vpop.permute.xlu0 %1587
        %1589 = vrot.lane.b32.xlu0 %v685, 32
        %v1590 = vpop.permute.xlu0 %1589
        %1591 = vrot.lane.b32.xlu0 %v686, 32
        %v1592 = vpop.permute.xlu0 %1591
        %1593 = vrot.lane.b32.xlu0 %v687, 32
        %v1594 = vpop.permute.xlu0 %1593
        %1595 = vrot.lane.b32.xlu0 %v688, 32
        %v1596 = vpop.permute.xlu0 %1595
        %1597 = vrot.lane.b32.xlu0 %v689, 32
        %v1598 = vpop.permute.xlu0 %1597
        %1599 = vrot.lane.b32.xlu0 %v690, 32
        %v1600 = vpop.permute.xlu0 %1599
        %1601 = vrot.lane.b32.xlu0 %v691, 32
        %v1602 = vpop.permute.xlu0 %1601
        %1603 = vrot.lane.b32.xlu0 %v692, 32
        %v1604 = vpop.permute.xlu0 %1603
        %1605 = vrot.lane.b32.xlu0 %v693, 32
        %v1606 = vpop.permute.xlu0 %1605
        %1607 = vrot.lane.b32.xlu0 %v694, 32
        %v1608 = vpop.permute.xlu0 %1607
        %1609 = vrot.lane.b32.xlu0 %v695, 32
        %v1610 = vpop.permute.xlu0 %1609
        %1611 = vrot.lane.b32.xlu0 %v696, 32
        %v1612 = vpop.permute.xlu0 %1611
        %1613 = vrot.lane.b32.xlu0 %v697, 32
        %v1614 = vpop.permute.xlu0 %1613
        %1615 = vrot.lane.b32.xlu0 %v698, 32
        %v1616 = vpop.permute.xlu0 %1615
        %1617 = vrot.lane.b32.xlu0 %v699, 32
        %v1618 = vpop.permute.xlu0 %1617
        %1619 = vrot.lane.b32.xlu0 %v700, 32
        %v1620 = vpop.permute.xlu0 %1619
        %1621 = vrot.lane.b32.xlu0 %v701, 32
        %v1622 = vpop.permute.xlu0 %1621
        %1623 = vrot.lane.b32.xlu0 %v702, 32
        %v1624 = vpop.permute.xlu0 %1623
        %1625 = vrot.lane.b32.xlu0 %v703, 32
        %v1626 = vpop.permute.xlu0 %1625
        %1627 = vrot.lane.b32.xlu0 %v704, 32
        %v1628 = vpop.permute.xlu0 %1627
        %1629 = vrot.lane.b32.xlu0 %v705, 32
        %v1630 = vpop.permute.xlu0 %1629
        %1631 = vrot.lane.b32.xlu0 %v706, 32
        %v1632 = vpop.permute.xlu0 %1631
        %1633 = vrot.lane.b32.xlu0 %v707, 32
        %v1634 = vpop.permute.xlu0 %1633
        %1635 = vrot.lane.b32.xlu0 %v708, 32
        %v1636 = vpop.permute.xlu0 %1635
        %1637 = vrot.lane.b32.xlu0 %v709, 32
        %v1638 = vpop.permute.xlu0 %1637
        %1639 = vrot.lane.b32.xlu0 %v710, 32
        %v1640 = vpop.permute.xlu0 %1639
        %1641 = vrot.lane.b32.xlu0 %v711, 32
        %v1642 = vpop.permute.xlu0 %1641
        %1643 = vrot.lane.b32.xlu0 %v712, 32
        %v1644 = vpop.permute.xlu0 %1643
        %1645 = vrot.lane.b32.xlu0 %v713, 32
        %v1646 = vpop.permute.xlu0 %1645
        %1647 = vrot.lane.b32.xlu0 %v714, 32
        %v1648 = vpop.permute.xlu0 %1647
        %1649 = vrot.lane.b32.xlu0 %v715, 32
        %v1650 = vpop.permute.xlu0 %1649
        %1651 = vrot.lane.b32.xlu0 %v716, 32
        %v1652 = vpop.permute.xlu0 %1651
        %1653 = vrot.lane.b32.xlu0 %v717, 32
        %v1654 = vpop.permute.xlu0 %1653
        %1655 = vrot.lane.b32.xlu0 %v718, 32
        %v1656 = vpop.permute.xlu0 %1655
        %1657 = vrot.lane.b32.xlu0 %v719, 32
        %v1658 = vpop.permute.xlu0 %1657
        %1659 = vrot.lane.b32.xlu0 %v720, 32
        %v1660 = vpop.permute.xlu0 %1659
        %2037 = vrot.lane.b32.xlu0 %v721, 64
        %v2038 = vpop.permute.xlu0 %2037
        %2039 = vrot.lane.b32.xlu0 %v722, 64
        %v2040 = vpop.permute.xlu0 %2039
        %2041 = vrot.lane.b32.xlu0 %v723, 64
        %v2042 = vpop.permute.xlu0 %2041
        %2043 = vrot.lane.b32.xlu0 %v724, 64
        %v2044 = vpop.permute.xlu0 %2043
        %2045 = vrot.lane.b32.xlu0 %v725, 64
        %v2046 = vpop.permute.xlu0 %2045
        %2047 = vrot.lane.b32.xlu0 %v726, 64
        %v2048 = vpop.permute.xlu0 %2047
        %2049 = vrot.lane.b32.xlu0 %v727, 64
        %v2050 = vpop.permute.xlu0 %2049
        %2051 = vrot.lane.b32.xlu0 %v728, 64
        %v2052 = vpop.permute.xlu0 %2051
        %2053 = vrot.lane.b32.xlu0 %v729, 64
        %v2054 = vpop.permute.xlu0 %2053
        %2055 = vrot.lane.b32.xlu0 %v730, 64
        %v2056 = vpop.permute.xlu0 %2055
        %2057 = vrot.lane.b32.xlu0 %v731, 64
        %v2058 = vpop.permute.xlu0 %2057
        %2059 = vrot.lane.b32.xlu0 %v732, 64
        %v2060 = vpop.permute.xlu0 %2059
        %2061 = vrot.lane.b32.xlu0 %v733, 64
        %v2062 = vpop.permute.xlu0 %2061
        %2063 = vrot.lane.b32.xlu0 %v734, 64
        %v2064 = vpop.permute.xlu0 %2063
        %2065 = vrot.lane.b32.xlu0 %v735, 64
        %v2066 = vpop.permute.xlu0 %2065
        %2067 = vrot.lane.b32.xlu0 %v736, 64
        %v2068 = vpop.permute.xlu0 %2067
        %2069 = vrot.lane.b32.xlu0 %v737, 64
        %v2070 = vpop.permute.xlu0 %2069
        %2071 = vrot.lane.b32.xlu0 %v738, 64
        %v2072 = vpop.permute.xlu0 %2071
        %2073 = vrot.lane.b32.xlu0 %v739, 64
        %v2074 = vpop.permute.xlu0 %2073
        %2075 = vrot.lane.b32.xlu0 %v740, 64
        %v2076 = vpop.permute.xlu0 %2075
        %2077 = vrot.lane.b32.xlu0 %v741, 64
        %v2078 = vpop.permute.xlu0 %2077
        %2079 = vrot.lane.b32.xlu0 %v742, 64
        %v2080 = vpop.permute.xlu0 %2079
        %2081 = vrot.lane.b32.xlu0 %v743, 64
        %v2082 = vpop.permute.xlu0 %2081
        %2083 = vrot.lane.b32.xlu0 %v744, 64
        %v2084 = vpop.permute.xlu0 %2083
        %2085 = vrot.lane.b32.xlu0 %v745, 64
        %v2086 = vpop.permute.xlu0 %2085
        %2087 = vrot.lane.b32.xlu0 %v746, 64
        %v2088 = vpop.permute.xlu0 %2087
        %2089 = vrot.lane.b32.xlu0 %v747, 64
        %v2090 = vpop.permute.xlu0 %2089
        %2091 = vrot.lane.b32.xlu0 %v748, 64
        %v2092 = vpop.permute.xlu0 %2091
        %2093 = vrot.lane.b32.xlu0 %v749, 64
        %v2094 = vpop.permute.xlu0 %2093
        %2095 = vrot.lane.b32.xlu0 %v750, 64
        %v2096 = vpop.permute.xlu0 %2095
        %2097 = vrot.lane.b32.xlu0 %v751, 64
        %v2098 = vpop.permute.xlu0 %2097
        %2099 = vrot.lane.b32.xlu0 %v752, 64
        %v2100 = vpop.permute.xlu0 %2099
        %2101 = vrot.lane.b32.xlu0 %v753, 64
        %v2102 = vpop.permute.xlu0 %2101
        %2103 = vrot.lane.b32.xlu0 %v754, 64
        %v2104 = vpop.permute.xlu0 %2103
        %2105 = vrot.lane.b32.xlu0 %v755, 64
        %v2106 = vpop.permute.xlu0 %2105
        %2107 = vrot.lane.b32.xlu0 %v756, 64
        %v2108 = vpop.permute.xlu0 %2107
        %2109 = vrot.lane.b32.xlu0 %v757, 64
        %v2110 = vpop.permute.xlu0 %2109
        %2111 = vrot.lane.b32.xlu0 %v758, 64
        %v2112 = vpop.permute.xlu0 %2111
        %2113 = vrot.lane.b32.xlu0 %v759, 64
        %v2114 = vpop.permute.xlu0 %2113
        %2115 = vrot.lane.b32.xlu0 %v760, 64
        %v2116 = vpop.permute.xlu0 %2115
        %2117 = vrot.lane.b32.xlu0 %v761, 64
        %v2118 = vpop.permute.xlu0 %2117
        %2119 = vrot.lane.b32.xlu0 %v762, 64
        %v2120 = vpop.permute.xlu0 %2119
        %2121 = vrot.lane.b32.xlu0 %v763, 64
        %v2122 = vpop.permute.xlu0 %2121
        %2123 = vrot.lane.b32.xlu0 %v764, 64
        %v2124 = vpop.permute.xlu0 %2123
        %2125 = vrot.lane.b32.xlu0 %v765, 64
        %v2126 = vpop.permute.xlu0 %2125
        %2127 = vrot.lane.b32.xlu0 %v766, 64
        %v2128 = vpop.permute.xlu0 %2127
        %2129 = vrot.lane.b32.xlu0 %v767, 64
        %v2130 = vpop.permute.xlu0 %2129
        %2131 = vrot.lane.b32.xlu0 %v768, 64
        %v2132 = vpop.permute.xlu0 %2131
        %2133 = vrot.lane.b32.xlu0 %v769, 64
        %v2134 = vpop.permute.xlu0 %2133
        %2135 = vrot.lane.b32.xlu0 %v770, 64
        %v2136 = vpop.permute.xlu0 %2135
        %2137 = vrot.lane.b32.xlu0 %v771, 64
        %v2138 = vpop.permute.xlu0 %2137
        %2139 = vrot.lane.b32.xlu0 %v772, 64
        %v2140 = vpop.permute.xlu0 %2139
        %2141 = vrot.lane.b32.xlu0 %v773, 64
        %v2142 = vpop.permute.xlu0 %2141
        %2143 = vrot.lane.b32.xlu0 %v774, 64
        %v2144 = vpop.permute.xlu0 %2143
        %2145 = vrot.lane.b32.xlu0 %v775, 64
        %v2146 = vpop.permute.xlu0 %2145
        %2147 = vrot.lane.b32.xlu0 %v776, 64
        %v2148 = vpop.permute.xlu0 %2147
        %2149 = vrot.lane.b32.xlu0 %v777, 64
        %v2150 = vpop.permute.xlu0 %2149
        %2151 = vrot.lane.b32.xlu0 %v778, 64
        %v2152 = vpop.permute.xlu0 %2151
        %2153 = vrot.lane.b32.xlu0 %v779, 64
        %v2154 = vpop.permute.xlu0 %2153
        %2155 = vrot.lane.b32.xlu0 %v780, 64
        %v2156 = vpop.permute.xlu0 %2155
        %2157 = vrot.lane.b32.xlu0 %v781, 64
        %v2158 = vpop.permute.xlu0 %2157
        %2159 = vrot.lane.b32.xlu0 %v782, 64
        %v2160 = vpop.permute.xlu0 %2159
        %2161 = vrot.lane.b32.xlu0 %v783, 64
        %v2162 = vpop.permute.xlu0 %2161
        %2163 = vrot.lane.b32.xlu0 %v784, 64
        %v2164 = vpop.permute.xlu0 %2163
        %2165 = vrot.lane.b32.xlu0 %v785, 64
        %v2166 = vpop.permute.xlu0 %2165
        %2167 = vrot.lane.b32.xlu0 %v786, 64
        %v2168 = vpop.permute.xlu0 %2167
        %2169 = vrot.lane.b32.xlu0 %v787, 64
        %v2170 = vpop.permute.xlu0 %2169
        %2171 = vrot.lane.b32.xlu0 %v788, 64
        %v2172 = vpop.permute.xlu0 %2171
        %2173 = vrot.lane.b32.xlu0 %v789, 64
        %v2174 = vpop.permute.xlu0 %2173
        %2175 = vrot.lane.b32.xlu0 %v790, 64
        %v2176 = vpop.permute.xlu0 %2175
        %2177 = vrot.lane.b32.xlu0 %v791, 64
        %v2178 = vpop.permute.xlu0 %2177
        %2179 = vrot.lane.b32.xlu0 %v792, 64
        %v2180 = vpop.permute.xlu0 %2179
        %2181 = vrot.lane.b32.xlu0 %v793, 64
        %v2182 = vpop.permute.xlu0 %2181
        %2183 = vrot.lane.b32.xlu0 %v794, 64
        %v2184 = vpop.permute.xlu0 %2183
        %2185 = vrot.lane.b32.xlu0 %v795, 64
        %v2186 = vpop.permute.xlu0 %2185
        %2187 = vrot.lane.b32.xlu0 %v796, 64
        %v2188 = vpop.permute.xlu0 %2187
        %2189 = vrot.lane.b32.xlu0 %v797, 64
        %v2190 = vpop.permute.xlu0 %2189
        %2191 = vrot.lane.b32.xlu0 %v798, 64
        %v2192 = vpop.permute.xlu0 %2191
        %2193 = vrot.lane.b32.xlu0 %v799, 64
        %v2194 = vpop.permute.xlu0 %2193
        %2195 = vrot.lane.b32.xlu0 %v800, 64
        %v2196 = vpop.permute.xlu0 %2195
        %2197 = vrot.lane.b32.xlu0 %v801, 64
        %v2198 = vpop.permute.xlu0 %2197
        %2199 = vrot.lane.b32.xlu0 %v802, 64
        %v2200 = vpop.permute.xlu0 %2199
        %2201 = vrot.lane.b32.xlu0 %v803, 64
        %v2202 = vpop.permute.xlu0 %2201
        %2203 = vrot.lane.b32.xlu0 %v804, 64
        %v2204 = vpop.permute.xlu0 %2203
        %2205 = vrot.lane.b32.xlu0 %v805, 64
        %v2206 = vpop.permute.xlu0 %2205
        %2207 = vrot.lane.b32.xlu0 %v806, 64
        %v2208 = vpop.permute.xlu0 %2207
        %2209 = vrot.lane.b32.xlu0 %v807, 64
        %v2210 = vpop.permute.xlu0 %2209
        %2211 = vrot.lane.b32.xlu0 %v808, 64
        %v2212 = vpop.permute.xlu0 %2211
        %2213 = vrot.lane.b32.xlu0 %v809, 64
        %v2214 = vpop.permute.xlu0 %2213
        %2215 = vrot.lane.b32.xlu0 %v810, 64
        %v2216 = vpop.permute.xlu0 %2215
        %2217 = vrot.lane.b32.xlu0 %v811, 64
        %v2218 = vpop.permute.xlu0 %2217
        %2219 = vrot.lane.b32.xlu0 %v812, 64
        %v2220 = vpop.permute.xlu0 %2219
        %2221 = vrot.lane.b32.xlu0 %v813, 64
        %v2222 = vpop.permute.xlu0 %2221
        %2223 = vrot.lane.b32.xlu0 %v814, 64
        %v2224 = vpop.permute.xlu0 %2223
        %2225 = vrot.lane.b32.xlu0 %v815, 64
        %v2226 = vpop.permute.xlu0 %2225
        %2227 = vrot.lane.b32.xlu0 %v816, 64
        %v2228 = vpop.permute.xlu0 %2227
        %2229 = vrot.lane.b32.xlu0 %v817, 64
        %v2230 = vpop.permute.xlu0 %2229
        %2231 = vrot.lane.b32.xlu0 %v818, 64
        %v2232 = vpop.permute.xlu0 %2231
        %2233 = vrot.lane.b32.xlu0 %v819, 64
        %v2234 = vpop.permute.xlu0 %2233
        %2235 = vrot.lane.b32.xlu0 %v820, 64
        %v2236 = vpop.permute.xlu0 %2235
        %2237 = vrot.lane.b32.xlu0 %v821, 64
        %v2238 = vpop.permute.xlu0 %2237
        %2239 = vrot.lane.b32.xlu0 %v822, 64
        %v2240 = vpop.permute.xlu0 %2239
        %2241 = vrot.lane.b32.xlu0 %v823, 64
        %v2242 = vpop.permute.xlu0 %2241
        %2243 = vrot.lane.b32.xlu0 %v824, 64
        %v2244 = vpop.permute.xlu0 %2243
        %2245 = vrot.lane.b32.xlu0 %v825, 64
        %v2246 = vpop.permute.xlu0 %2245
        %2247 = vrot.lane.b32.xlu0 %v826, 64
        %v2248 = vpop.permute.xlu0 %2247
        %2249 = vrot.lane.b32.xlu0 %v827, 64
        %v2250 = vpop.permute.xlu0 %2249
        %2251 = vrot.lane.b32.xlu0 %v828, 64
        %v2252 = vpop.permute.xlu0 %2251
        %2253 = vrot.lane.b32.xlu0 %v829, 64
        %v2254 = vpop.permute.xlu0 %2253
        %2255 = vrot.lane.b32.xlu0 %v830, 64
        %v2256 = vpop.permute.xlu0 %2255
        %2257 = vrot.lane.b32.xlu0 %v831, 64
        %v2258 = vpop.permute.xlu0 %2257
        %2259 = vrot.lane.b32.xlu0 %v832, 64
        %v2260 = vpop.permute.xlu0 %2259
        %2261 = vrot.lane.b32.xlu0 %v833, 64
        %v2262 = vpop.permute.xlu0 %2261
        %2263 = vrot.lane.b32.xlu0 %v834, 64
        %v2264 = vpop.permute.xlu0 %2263
        %2265 = vrot.lane.b32.xlu0 %v835, 64
        %v2266 = vpop.permute.xlu0 %2265
        %2267 = vrot.lane.b32.xlu0 %v836, 64
        %v2268 = vpop.permute.xlu0 %2267
        %2269 = vrot.lane.b32.xlu0 %v837, 64
        %v2270 = vpop.permute.xlu0 %2269
        %2271 = vrot.lane.b32.xlu0 %v838, 64
        %v2272 = vpop.permute.xlu0 %2271
        %2273 = vrot.lane.b32.xlu0 %v839, 64
        %v2274 = vpop.permute.xlu0 %2273
        %2275 = vrot.lane.b32.xlu0 %v840, 64
        %v2276 = vpop.permute.xlu0 %2275
        %2277 = vrot.lane.b32.xlu0 %v841, 64
        %v2278 = vpop.permute.xlu0 %2277
        %2279 = vrot.lane.b32.xlu0 %v842, 64
        %v2280 = vpop.permute.xlu0 %2279
        %2281 = vrot.lane.b32.xlu0 %v843, 64
        %v2282 = vpop.permute.xlu0 %2281
        %2283 = vrot.lane.b32.xlu0 %v844, 64
        %v2284 = vpop.permute.xlu0 %2283
        %2285 = vrot.lane.b32.xlu0 %v845, 64
        %v2286 = vpop.permute.xlu0 %2285
        %2287 = vrot.lane.b32.xlu0 %v846, 64
        %v2288 = vpop.permute.xlu0 %2287
        %2289 = vrot.lane.b32.xlu0 %v847, 64
        %v2290 = vpop.permute.xlu0 %2289
        %2291 = vrot.lane.b32.xlu0 %v848, 64
        %v2292 = vpop.permute.xlu0 %2291
        %2293 = vrot.lane.b32.xlu0 %v849, 64
        %v2294 = vpop.permute.xlu0 %2293
        %2295 = vrot.lane.b32.xlu0 %v850, 64
        %v2296 = vpop.permute.xlu0 %2295
        %2297 = vrot.lane.b32.xlu0 %v851, 64
        %v2298 = vpop.permute.xlu0 %2297
        %2299 = vrot.lane.b32.xlu0 %v852, 64
        %v2300 = vpop.permute.xlu0 %2299
        %2301 = vrot.lane.b32.xlu0 %v853, 64
        %v2302 = vpop.permute.xlu0 %2301
        %2303 = vrot.lane.b32.xlu0 %v854, 64
        %v2304 = vpop.permute.xlu0 %2303
        %2305 = vrot.lane.b32.xlu0 %v855, 64
        %v2306 = vpop.permute.xlu0 %2305
        %2307 = vrot.lane.b32.xlu0 %v856, 64
        %v2308 = vpop.permute.xlu0 %2307
        %2309 = vrot.lane.b32.xlu0 %v857, 64
        %v2310 = vpop.permute.xlu0 %2309
        %2311 = vrot.lane.b32.xlu0 %v858, 64
        %v2312 = vpop.permute.xlu0 %2311
        %2313 = vrot.lane.b32.xlu0 %v859, 64
        %v2314 = vpop.permute.xlu0 %2313
        %2315 = vrot.lane.b32.xlu0 %v860, 64
        %v2316 = vpop.permute.xlu0 %2315
        %2317 = vrot.lane.b32.xlu0 %v861, 64
        %v2318 = vpop.permute.xlu0 %2317
        %2319 = vrot.lane.b32.xlu0 %v862, 64
        %v2320 = vpop.permute.xlu0 %2319
        %2321 = vrot.lane.b32.xlu0 %v863, 64
        %v2322 = vpop.permute.xlu0 %2321
        %2323 = vrot.lane.b32.xlu0 %v864, 64
        %v2324 = vpop.permute.xlu0 %2323
        %2325 = vrot.lane.b32.xlu0 %v865, 64
        %v2326 = vpop.permute.xlu0 %2325
        %2327 = vrot.lane.b32.xlu0 %v866, 64
        %v2328 = vpop.permute.xlu0 %2327
        %2329 = vrot.lane.b32.xlu0 %v867, 64
        %v2330 = vpop.permute.xlu0 %2329
        %2331 = vrot.lane.b32.xlu0 %v868, 64
        %v2332 = vpop.permute.xlu0 %2331
        %2333 = vrot.lane.b32.xlu0 %v869, 64
        %v2334 = vpop.permute.xlu0 %2333
        %2335 = vrot.lane.b32.xlu0 %v870, 64
        %v2336 = vpop.permute.xlu0 %2335
        %2337 = vrot.lane.b32.xlu0 %v871, 64
        %v2338 = vpop.permute.xlu0 %2337
        %2339 = vrot.lane.b32.xlu0 %v872, 64
        %v2340 = vpop.permute.xlu0 %2339
        %2341 = vrot.lane.b32.xlu0 %v873, 64
        %v2342 = vpop.permute.xlu0 %2341
        %2343 = vrot.lane.b32.xlu0 %v874, 64
        %v2344 = vpop.permute.xlu0 %2343
        %2345 = vrot.lane.b32.xlu0 %v875, 64
        %v2346 = vpop.permute.xlu0 %2345
        %2347 = vrot.lane.b32.xlu0 %v876, 64
        %v2348 = vpop.permute.xlu0 %2347
        %2349 = vrot.lane.b32.xlu0 %v877, 64
        %v2350 = vpop.permute.xlu0 %2349
        %2351 = vrot.lane.b32.xlu0 %v878, 64
        %v2352 = vpop.permute.xlu0 %2351
        %2353 = vrot.lane.b32.xlu0 %v879, 64
        %v2354 = vpop.permute.xlu0 %2353
        %2355 = vrot.lane.b32.xlu0 %v880, 64
        %v2356 = vpop.permute.xlu0 %2355
        %2357 = vrot.lane.b32.xlu0 %v881, 64
        %v2358 = vpop.permute.xlu0 %2357
        %2359 = vrot.lane.b32.xlu0 %v882, 64
        %v2360 = vpop.permute.xlu0 %2359
        %2361 = vrot.lane.b32.xlu0 %v883, 64
        %v2362 = vpop.permute.xlu0 %2361
        %2363 = vrot.lane.b32.xlu0 %v884, 64
        %v2364 = vpop.permute.xlu0 %2363
        %2365 = vrot.lane.b32.xlu0 %v885, 64
        %v2366 = vpop.permute.xlu0 %2365
        %2367 = vrot.lane.b32.xlu0 %v886, 64
        %v2368 = vpop.permute.xlu0 %2367
        %2369 = vrot.lane.b32.xlu0 %v887, 64
        %v2370 = vpop.permute.xlu0 %2369
        %2371 = vrot.lane.b32.xlu0 %v888, 64
        %v2372 = vpop.permute.xlu0 %2371
        %2373 = vrot.lane.b32.xlu0 %v889, 64
        %v2374 = vpop.permute.xlu0 %2373
        %2375 = vrot.lane.b32.xlu0 %v890, 64
        %v2376 = vpop.permute.xlu0 %2375
        %2377 = vrot.lane.b32.xlu0 %v891, 64
        %v2378 = vpop.permute.xlu0 %2377
        %2379 = vrot.lane.b32.xlu0 %v892, 64
        %v2380 = vpop.permute.xlu0 %2379
        %2381 = vrot.lane.b32.xlu0 %v893, 64
        %v2382 = vpop.permute.xlu0 %2381
        %2383 = vrot.lane.b32.xlu0 %v894, 64
        %v2384 = vpop.permute.xlu0 %2383
        %2385 = vrot.lane.b32.xlu0 %v895, 64
        %v2386 = vpop.permute.xlu0 %2385
        %2387 = vrot.lane.b32.xlu0 %v896, 64
        %v2388 = vpop.permute.xlu0 %2387
        %2389 = vrot.lane.b32.xlu0 %v897, 64
        %v2390 = vpop.permute.xlu0 %2389
        %2391 = vrot.lane.b32.xlu0 %v898, 64
        %v2392 = vpop.permute.xlu0 %2391
        %2393 = vrot.lane.b32.xlu0 %v899, 64
        %v2394 = vpop.permute.xlu0 %2393
        %2395 = vrot.lane.b32.xlu0 %v900, 64
        %v2396 = vpop.permute.xlu0 %2395
        %2397 = vrot.lane.b32.xlu0 %v901, 64
        %v2398 = vpop.permute.xlu0 %2397
        %2399 = vrot.lane.b32.xlu0 %v902, 64
        %v2400 = vpop.permute.xlu0 %2399
        %2401 = vrot.lane.b32.xlu0 %v903, 64
        %v2402 = vpop.permute.xlu0 %2401
        %2403 = vrot.lane.b32.xlu0 %v904, 64
        %v2404 = vpop.permute.xlu0 %2403
        %2405 = vrot.lane.b32.xlu0 %v905, 64
        %v2406 = vpop.permute.xlu0 %2405
        %2407 = vrot.lane.b32.xlu0 %v906, 64
        %v2408 = vpop.permute.xlu0 %2407
        %2409 = vrot.lane.b32.xlu0 %v907, 64
        %v2410 = vpop.permute.xlu0 %2409
        %2411 = vrot.lane.b32.xlu0 %v908, 64
        %v2412 = vpop.permute.xlu0 %2411
        %2789 = vrot.lane.b32.xlu0 %v909, 80
        %v2790 = vpop.permute.xlu0 %2789
        %2791 = vrot.lane.b32.xlu0 %v910, 80
        %v2792 = vpop.permute.xlu0 %2791
        %2793 = vrot.lane.b32.xlu0 %v911, 80
        %v2794 = vpop.permute.xlu0 %2793
        %2795 = vrot.lane.b32.xlu0 %v912, 80
        %v2796 = vpop.permute.xlu0 %2795
        %2797 = vrot.lane.b32.xlu0 %v913, 80
        %v2798 = vpop.permute.xlu0 %2797
        %2799 = vrot.lane.b32.xlu0 %v914, 80
        %v2800 = vpop.permute.xlu0 %2799
        %2801 = vrot.lane.b32.xlu0 %v915, 80
        %v2802 = vpop.permute.xlu0 %2801
        %2803 = vrot.lane.b32.xlu0 %v916, 80
        %v2804 = vpop.permute.xlu0 %2803
        %2805 = vrot.lane.b32.xlu0 %v917, 80
        %v2806 = vpop.permute.xlu0 %2805
        %2807 = vrot.lane.b32.xlu0 %v918, 80
        %v2808 = vpop.permute.xlu0 %2807
        %2809 = vrot.lane.b32.xlu0 %v919, 80
        %v2810 = vpop.permute.xlu0 %2809
        %2811 = vrot.lane.b32.xlu0 %v920, 80
        %v2812 = vpop.permute.xlu0 %2811
        %2813 = vrot.lane.b32.xlu0 %v921, 80
        %v2814 = vpop.permute.xlu0 %2813
        %2815 = vrot.lane.b32.xlu0 %v922, 80
        %v2816 = vpop.permute.xlu0 %2815
        %2817 = vrot.lane.b32.xlu0 %v923, 80
        %v2818 = vpop.permute.xlu0 %2817
        %2819 = vrot.lane.b32.xlu0 %v924, 80
        %v2820 = vpop.permute.xlu0 %2819
        %2821 = vrot.lane.b32.xlu0 %v925, 80
        %v2822 = vpop.permute.xlu0 %2821
        %2823 = vrot.lane.b32.xlu0 %v926, 80
        %v2824 = vpop.permute.xlu0 %2823
        %2825 = vrot.lane.b32.xlu0 %v927, 80
        %v2826 = vpop.permute.xlu0 %2825
        %2827 = vrot.lane.b32.xlu0 %v928, 80
        %v2828 = vpop.permute.xlu0 %2827
        %2829 = vrot.lane.b32.xlu0 %v929, 80
        %v2830 = vpop.permute.xlu0 %2829
        %2831 = vrot.lane.b32.xlu0 %v930, 80
        %v2832 = vpop.permute.xlu0 %2831
        %2833 = vrot.lane.b32.xlu0 %v931, 80
        %v2834 = vpop.permute.xlu0 %2833
        %2835 = vrot.lane.b32.xlu0 %v932, 80
        %v2836 = vpop.permute.xlu0 %2835
        %2837 = vrot.lane.b32.xlu0 %v933, 80
        %v2838 = vpop.permute.xlu0 %2837
        %2839 = vrot.lane.b32.xlu0 %v934, 80
        %v2840 = vpop.permute.xlu0 %2839
        %2841 = vrot.lane.b32.xlu0 %v935, 80
        %v2842 = vpop.permute.xlu0 %2841
        %2843 = vrot.lane.b32.xlu0 %v936, 80
        %v2844 = vpop.permute.xlu0 %2843
        %2845 = vrot.lane.b32.xlu0 %v937, 80
        %v2846 = vpop.permute.xlu0 %2845
        %2847 = vrot.lane.b32.xlu0 %v938, 80
        %v2848 = vpop.permute.xlu0 %2847
        %2849 = vrot.lane.b32.xlu0 %v939, 80
        %v2850 = vpop.permute.xlu0 %2849
        %2851 = vrot.lane.b32.xlu0 %v940, 80
        %v2852 = vpop.permute.xlu0 %2851
        %2853 = vrot.lane.b32.xlu0 %v941, 80
        %v2854 = vpop.permute.xlu0 %2853
        %2855 = vrot.lane.b32.xlu0 %v942, 80
        %v2856 = vpop.permute.xlu0 %2855
        %2857 = vrot.lane.b32.xlu0 %v943, 80
        %v2858 = vpop.permute.xlu0 %2857
        %2859 = vrot.lane.b32.xlu0 %v944, 80
        %v2860 = vpop.permute.xlu0 %2859
        %2861 = vrot.lane.b32.xlu0 %v945, 80
        %v2862 = vpop.permute.xlu0 %2861
        %2863 = vrot.lane.b32.xlu0 %v946, 80
        %v2864 = vpop.permute.xlu0 %2863
        %2865 = vrot.lane.b32.xlu0 %v947, 80
        %v2866 = vpop.permute.xlu0 %2865
        %2867 = vrot.lane.b32.xlu0 %v948, 80
        %v2868 = vpop.permute.xlu0 %2867
        %2869 = vrot.lane.b32.xlu0 %v949, 80
        %v2870 = vpop.permute.xlu0 %2869
        %2871 = vrot.lane.b32.xlu0 %v950, 80
        %v2872 = vpop.permute.xlu0 %2871
        %2873 = vrot.lane.b32.xlu0 %v951, 80
        %v2874 = vpop.permute.xlu0 %2873
        %2875 = vrot.lane.b32.xlu0 %v952, 80
        %v2876 = vpop.permute.xlu0 %2875
        %2877 = vrot.lane.b32.xlu0 %v953, 80
        %v2878 = vpop.permute.xlu0 %2877
        %2879 = vrot.lane.b32.xlu0 %v954, 80
        %v2880 = vpop.permute.xlu0 %2879
        %2881 = vrot.lane.b32.xlu0 %v955, 80
        %v2882 = vpop.permute.xlu0 %2881
        %2883 = vrot.lane.b32.xlu0 %v956, 80
        %v2884 = vpop.permute.xlu0 %2883
        %2885 = vrot.lane.b32.xlu0 %v957, 80
        %v2886 = vpop.permute.xlu0 %2885
        %2887 = vrot.lane.b32.xlu0 %v958, 80
        %v2888 = vpop.permute.xlu0 %2887
        %2889 = vrot.lane.b32.xlu0 %v959, 80
        %v2890 = vpop.permute.xlu0 %2889
        %2891 = vrot.lane.b32.xlu0 %v960, 80
        %v2892 = vpop.permute.xlu0 %2891
        %2893 = vrot.lane.b32.xlu0 %v961, 80
        %v2894 = vpop.permute.xlu0 %2893
        %2895 = vrot.lane.b32.xlu0 %v962, 80
        %v2896 = vpop.permute.xlu0 %2895
        %2897 = vrot.lane.b32.xlu0 %v963, 80
        %v2898 = vpop.permute.xlu0 %2897
        %2899 = vrot.lane.b32.xlu0 %v964, 80
        %v2900 = vpop.permute.xlu0 %2899
        %2901 = vrot.lane.b32.xlu0 %v965, 80
        %v2902 = vpop.permute.xlu0 %2901
        %2903 = vrot.lane.b32.xlu0 %v966, 80
        %v2904 = vpop.permute.xlu0 %2903
        %2905 = vrot.lane.b32.xlu0 %v967, 80
        %v2906 = vpop.permute.xlu0 %2905
        %2907 = vrot.lane.b32.xlu0 %v968, 80
        %v2908 = vpop.permute.xlu0 %2907
        %2909 = vrot.lane.b32.xlu0 %v969, 80
        %v2910 = vpop.permute.xlu0 %2909
        %2911 = vrot.lane.b32.xlu0 %v970, 80
        %v2912 = vpop.permute.xlu0 %2911
        %2913 = vrot.lane.b32.xlu0 %v971, 80
        %v2914 = vpop.permute.xlu0 %2913
        %2915 = vrot.lane.b32.xlu0 %v972, 80
        %v2916 = vpop.permute.xlu0 %2915
        %2917 = vrot.lane.b32.xlu0 %v973, 80
        %v2918 = vpop.permute.xlu0 %2917
        %2919 = vrot.lane.b32.xlu0 %v974, 80
        %v2920 = vpop.permute.xlu0 %2919
        %2921 = vrot.lane.b32.xlu0 %v975, 80
        %v2922 = vpop.permute.xlu0 %2921
        %2923 = vrot.lane.b32.xlu0 %v976, 80
        %v2924 = vpop.permute.xlu0 %2923
        %2925 = vrot.lane.b32.xlu0 %v977, 80
        %v2926 = vpop.permute.xlu0 %2925
        %2927 = vrot.lane.b32.xlu0 %v978, 80
        %v2928 = vpop.permute.xlu0 %2927
        %2929 = vrot.lane.b32.xlu0 %v979, 80
        %v2930 = vpop.permute.xlu0 %2929
        %2931 = vrot.lane.b32.xlu0 %v980, 80
        %v2932 = vpop.permute.xlu0 %2931
        %2933 = vrot.lane.b32.xlu0 %v981, 80
        %v2934 = vpop.permute.xlu0 %2933
        %2935 = vrot.lane.b32.xlu0 %v982, 80
        %v2936 = vpop.permute.xlu0 %2935
        %2937 = vrot.lane.b32.xlu0 %v983, 80
        %v2938 = vpop.permute.xlu0 %2937
        %2939 = vrot.lane.b32.xlu0 %v984, 80
        %v2940 = vpop.permute.xlu0 %2939
        %2941 = vrot.lane.b32.xlu0 %v985, 80
        %v2942 = vpop.permute.xlu0 %2941
        %2943 = vrot.lane.b32.xlu0 %v986, 80
        %v2944 = vpop.permute.xlu0 %2943
        %2945 = vrot.lane.b32.xlu0 %v987, 80
        %v2946 = vpop.permute.xlu0 %2945
        %2947 = vrot.lane.b32.xlu0 %v988, 80
        %v2948 = vpop.permute.xlu0 %2947
        %2949 = vrot.lane.b32.xlu0 %v989, 80
        %v2950 = vpop.permute.xlu0 %2949
        %2951 = vrot.lane.b32.xlu0 %v990, 80
        %v2952 = vpop.permute.xlu0 %2951
        %2953 = vrot.lane.b32.xlu0 %v991, 80
        %v2954 = vpop.permute.xlu0 %2953
        %2955 = vrot.lane.b32.xlu0 %v992, 80
        %v2956 = vpop.permute.xlu0 %2955
        %2957 = vrot.lane.b32.xlu0 %v993, 80
        %v2958 = vpop.permute.xlu0 %2957
        %2959 = vrot.lane.b32.xlu0 %v994, 80
        %v2960 = vpop.permute.xlu0 %2959
        %2961 = vrot.lane.b32.xlu0 %v995, 80
        %v2962 = vpop.permute.xlu0 %2961
        %2963 = vrot.lane.b32.xlu0 %v996, 80
        %v2964 = vpop.permute.xlu0 %2963
        %2965 = vrot.lane.b32.xlu0 %v997, 80
        %v2966 = vpop.permute.xlu0 %2965
        %2967 = vrot.lane.b32.xlu0 %v998, 80
        %v2968 = vpop.permute.xlu0 %2967
        %2969 = vrot.lane.b32.xlu0 %v999, 80
        %v2970 = vpop.permute.xlu0 %2969
        %2971 = vrot.lane.b32.xlu0 %v1000, 80
        %v2972 = vpop.permute.xlu0 %2971
        %2973 = vrot.lane.b32.xlu0 %v1001, 80
        %v2974 = vpop.permute.xlu0 %2973
        %2975 = vrot.lane.b32.xlu0 %v1002, 80
        %v2976 = vpop.permute.xlu0 %2975
        %2977 = vrot.lane.b32.xlu0 %v1003, 80
        %v2978 = vpop.permute.xlu0 %2977
        %2979 = vrot.lane.b32.xlu0 %v1004, 80
        %v2980 = vpop.permute.xlu0 %2979
        %2981 = vrot.lane.b32.xlu0 %v1005, 80
        %v2982 = vpop.permute.xlu0 %2981
        %2983 = vrot.lane.b32.xlu0 %v1006, 80
        %v2984 = vpop.permute.xlu0 %2983
        %2985 = vrot.lane.b32.xlu0 %v1007, 80
        %v2986 = vpop.permute.xlu0 %2985
        %2987 = vrot.lane.b32.xlu0 %v1008, 80
        %v2988 = vpop.permute.xlu0 %2987
        %2989 = vrot.lane.b32.xlu0 %v1009, 80
        %v2990 = vpop.permute.xlu0 %2989
        %2991 = vrot.lane.b32.xlu0 %v1010, 80
        %v2992 = vpop.permute.xlu0 %2991
        %2993 = vrot.lane.b32.xlu0 %v1011, 80
        %v2994 = vpop.permute.xlu0 %2993
        %2995 = vrot.lane.b32.xlu0 %v1012, 80
        %v2996 = vpop.permute.xlu0 %2995
        %2997 = vrot.lane.b32.xlu0 %v1013, 80
        %v2998 = vpop.permute.xlu0 %2997
        %2999 = vrot.lane.b32.xlu0 %v1014, 80
        %v3000 = vpop.permute.xlu0 %2999
        %3001 = vrot.lane.b32.xlu0 %v1015, 80
        %v3002 = vpop.permute.xlu0 %3001
        %3003 = vrot.lane.b32.xlu0 %v1016, 80
        %v3004 = vpop.permute.xlu0 %3003
        %3005 = vrot.lane.b32.xlu0 %v1017, 80
        %v3006 = vpop.permute.xlu0 %3005
        %3007 = vrot.lane.b32.xlu0 %v1018, 80
        %v3008 = vpop.permute.xlu0 %3007
        %3009 = vrot.lane.b32.xlu0 %v1019, 80
        %v3010 = vpop.permute.xlu0 %3009
        %3011 = vrot.lane.b32.xlu0 %v1020, 80
        %v3012 = vpop.permute.xlu0 %3011
        %3013 = vrot.lane.b32.xlu0 %v1021, 80
        %v3014 = vpop.permute.xlu0 %3013
        %3015 = vrot.lane.b32.xlu0 %v1022, 80
        %v3016 = vpop.permute.xlu0 %3015
        %3017 = vrot.lane.b32.xlu0 %v1023, 80
        %v3018 = vpop.permute.xlu0 %3017
        %3019 = vrot.lane.b32.xlu0 %v1024, 80
        %v3020 = vpop.permute.xlu0 %3019
        %3021 = vrot.lane.b32.xlu0 %v1025, 80
        %v3022 = vpop.permute.xlu0 %3021
        %3023 = vrot.lane.b32.xlu0 %v1026, 80
        %v3024 = vpop.permute.xlu0 %3023
        %3025 = vrot.lane.b32.xlu0 %v1027, 80
        %v3026 = vpop.permute.xlu0 %3025
        %3027 = vrot.lane.b32.xlu0 %v1028, 80
        %v3028 = vpop.permute.xlu0 %3027
        %3029 = vrot.lane.b32.xlu0 %v1029, 80
        %v3030 = vpop.permute.xlu0 %3029
        %3031 = vrot.lane.b32.xlu0 %v1030, 80
        %v3032 = vpop.permute.xlu0 %3031
        %3033 = vrot.lane.b32.xlu0 %v1031, 80
        %v3034 = vpop.permute.xlu0 %3033
        %3035 = vrot.lane.b32.xlu0 %v1032, 80
        %v3036 = vpop.permute.xlu0 %3035
        %3037 = vrot.lane.b32.xlu0 %v1033, 80
        %v3038 = vpop.permute.xlu0 %3037
        %3039 = vrot.lane.b32.xlu0 %v1034, 80
        %v3040 = vpop.permute.xlu0 %3039
        %3041 = vrot.lane.b32.xlu0 %v1035, 80
        %v3042 = vpop.permute.xlu0 %3041
        %3043 = vrot.lane.b32.xlu0 %v1036, 80
        %v3044 = vpop.permute.xlu0 %3043
        %3045 = vrot.lane.b32.xlu0 %v1037, 80
        %v3046 = vpop.permute.xlu0 %3045
        %3047 = vrot.lane.b32.xlu0 %v1038, 80
        %v3048 = vpop.permute.xlu0 %3047
        %3049 = vrot.lane.b32.xlu0 %v1039, 80
        %v3050 = vpop.permute.xlu0 %3049
        %3051 = vrot.lane.b32.xlu0 %v1040, 80
        %v3052 = vpop.permute.xlu0 %3051
        %3053 = vrot.lane.b32.xlu0 %v1041, 80
        %v3054 = vpop.permute.xlu0 %3053
        %3055 = vrot.lane.b32.xlu0 %v1042, 80
        %v3056 = vpop.permute.xlu0 %3055
        %3057 = vrot.lane.b32.xlu0 %v1043, 80
        %v3058 = vpop.permute.xlu0 %3057
        %3059 = vrot.lane.b32.xlu0 %v1044, 80
        %v3060 = vpop.permute.xlu0 %3059
        %3061 = vrot.lane.b32.xlu0 %v1045, 80
        %v3062 = vpop.permute.xlu0 %3061
        %3063 = vrot.lane.b32.xlu0 %v1046, 80
        %v3064 = vpop.permute.xlu0 %3063
        %3065 = vrot.lane.b32.xlu0 %v1047, 80
        %v3066 = vpop.permute.xlu0 %3065
        %3067 = vrot.lane.b32.xlu0 %v1048, 80
        %v3068 = vpop.permute.xlu0 %3067
        %3069 = vrot.lane.b32.xlu0 %v1049, 80
        %v3070 = vpop.permute.xlu0 %3069
        %3071 = vrot.lane.b32.xlu0 %v1050, 80
        %v3072 = vpop.permute.xlu0 %3071
        %3073 = vrot.lane.b32.xlu0 %v1051, 80
        %v3074 = vpop.permute.xlu0 %3073
        %3075 = vrot.lane.b32.xlu0 %v1052, 80
        %v3076 = vpop.permute.xlu0 %3075
        %3077 = vrot.lane.b32.xlu0 %v1053, 80
        %v3078 = vpop.permute.xlu0 %3077
        %3079 = vrot.lane.b32.xlu0 %v1054, 80
        %v3080 = vpop.permute.xlu0 %3079
        %3081 = vrot.lane.b32.xlu0 %v1055, 80
        %v3082 = vpop.permute.xlu0 %3081
        %3083 = vrot.lane.b32.xlu0 %v1056, 80
        %v3084 = vpop.permute.xlu0 %3083
        %3085 = vrot.lane.b32.xlu0 %v1057, 80
        %v3086 = vpop.permute.xlu0 %3085
        %3087 = vrot.lane.b32.xlu0 %v1058, 80
        %v3088 = vpop.permute.xlu0 %3087
        %3089 = vrot.lane.b32.xlu0 %v1059, 80
        %v3090 = vpop.permute.xlu0 %3089
        %3091 = vrot.lane.b32.xlu0 %v1060, 80
        %v3092 = vpop.permute.xlu0 %3091
        %3093 = vrot.lane.b32.xlu0 %v1061, 80
        %v3094 = vpop.permute.xlu0 %3093
        %3095 = vrot.lane.b32.xlu0 %v1062, 80
        %v3096 = vpop.permute.xlu0 %3095
        %3097 = vrot.lane.b32.xlu0 %v1063, 80
        %v3098 = vpop.permute.xlu0 %3097
        %3099 = vrot.lane.b32.xlu0 %v1064, 80
        %v3100 = vpop.permute.xlu0 %3099
        %3101 = vrot.lane.b32.xlu0 %v1065, 80
        %v3102 = vpop.permute.xlu0 %3101
        %3103 = vrot.lane.b32.xlu0 %v1066, 80
        %v3104 = vpop.permute.xlu0 %3103
        %3105 = vrot.lane.b32.xlu0 %v1067, 80
        %v3106 = vpop.permute.xlu0 %3105
        %3107 = vrot.lane.b32.xlu0 %v1068, 80
        %v3108 = vpop.permute.xlu0 %3107
        %3109 = vrot.lane.b32.xlu0 %v1069, 80
        %v3110 = vpop.permute.xlu0 %3109
        %3111 = vrot.lane.b32.xlu0 %v1070, 80
        %v3112 = vpop.permute.xlu0 %3111
        %3113 = vrot.lane.b32.xlu0 %v1071, 80
        %v3114 = vpop.permute.xlu0 %3113
        %3115 = vrot.lane.b32.xlu0 %v1072, 80
        %v3116 = vpop.permute.xlu0 %3115
        %3117 = vrot.lane.b32.xlu0 %v1073, 80
        %v3118 = vpop.permute.xlu0 %3117
        %3119 = vrot.lane.b32.xlu0 %v1074, 80
        %v3120 = vpop.permute.xlu0 %3119
        %3121 = vrot.lane.b32.xlu0 %v1075, 80
        %v3122 = vpop.permute.xlu0 %3121
        %3123 = vrot.lane.b32.xlu0 %v1076, 80
        %v3124 = vpop.permute.xlu0 %3123
        %3125 = vrot.lane.b32.xlu0 %v1077, 80
        %v3126 = vpop.permute.xlu0 %3125
        %3127 = vrot.lane.b32.xlu0 %v1078, 80
        %v3128 = vpop.permute.xlu0 %3127
        %3129 = vrot.lane.b32.xlu0 %v1079, 80
        %v3130 = vpop.permute.xlu0 %3129
        %3131 = vrot.lane.b32.xlu0 %v1080, 80
        %v3132 = vpop.permute.xlu0 %3131
        %3133 = vrot.lane.b32.xlu0 %v1081, 80
        %v3134 = vpop.permute.xlu0 %3133
        %3135 = vrot.lane.b32.xlu0 %v1082, 80
        %v3136 = vpop.permute.xlu0 %3135
        %3137 = vrot.lane.b32.xlu0 %v1083, 80
        %v3138 = vpop.permute.xlu0 %3137
        %3139 = vrot.lane.b32.xlu0 %v1084, 80
        %v3140 = vpop.permute.xlu0 %3139
        %3141 = vrot.lane.b32.xlu0 %v1085, 80
        %v3142 = vpop.permute.xlu0 %3141
        %3143 = vrot.lane.b32.xlu0 %v1086, 80
        %v3144 = vpop.permute.xlu0 %3143
        %3145 = vrot.lane.b32.xlu0 %v1087, 80
        %v3146 = vpop.permute.xlu0 %3145
        %3147 = vrot.lane.b32.xlu0 %v1088, 80
        %v3148 = vpop.permute.xlu0 %3147
        %3149 = vrot.lane.b32.xlu0 %v1089, 80
        %v3150 = vpop.permute.xlu0 %3149
        %3151 = vrot.lane.b32.xlu0 %v1090, 80
        %v3152 = vpop.permute.xlu0 %3151
        %3153 = vrot.lane.b32.xlu0 %v1091, 80
        %v3154 = vpop.permute.xlu0 %3153
        %3155 = vrot.lane.b32.xlu0 %v1092, 80
        %v3156 = vpop.permute.xlu0 %3155
        %3157 = vrot.lane.b32.xlu0 %v1093, 80
        %v3158 = vpop.permute.xlu0 %3157
        %3159 = vrot.lane.b32.xlu0 %v1094, 80
        %v3160 = vpop.permute.xlu0 %3159
        %3161 = vrot.lane.b32.xlu0 %v1095, 80
        %v3162 = vpop.permute.xlu0 %3161
        %3163 = vrot.lane.b32.xlu0 %v1096, 80
        %v3164 = vpop.permute.xlu0 %3163
        %vm3353 = vcmask 261120
        %v3354 = vsel %vm3353, %v345, %v1286
        %v3355 = vsel %vm3353, %v346, %v1288
        %v3356 = vsel %vm3353, %v347, %v1290
        %v3357 = vsel %vm3353, %v348, %v1292
        %v3358 = vsel %vm3353, %v349, %v1294
        %v3359 = vsel %vm3353, %v350, %v1296
        %v3360 = vsel %vm3353, %v351, %v1298
        %v3361 = vsel %vm3353, %v352, %v1300
        %v3362 = vsel %vm3353, %v353, %v1302
        %v3363 = vsel %vm3353, %v354, %v1304
        %v3364 = vsel %vm3353, %v355, %v1306
        %v3365 = vsel %vm3353, %v356, %v1308
        %v3366 = vsel %vm3353, %v357, %v1310
        %v3367 = vsel %vm3353, %v358, %v1312
        %v3368 = vsel %vm3353, %v359, %v1314
        %v3369 = vsel %vm3353, %v360, %v1316
        %v3370 = vsel %vm3353, %v361, %v1318
        %v3371 = vsel %vm3353, %v362, %v1320
        %v3372 = vsel %vm3353, %v363, %v1322
        %v3373 = vsel %vm3353, %v364, %v1324
        %v3374 = vsel %vm3353, %v365, %v1326
        %v3375 = vsel %vm3353, %v366, %v1328
        %v3376 = vsel %vm3353, %v367, %v1330
        %v3377 = vsel %vm3353, %v368, %v1332
        %v3378 = vsel %vm3353, %v369, %v1334
        %v3379 = vsel %vm3353, %v370, %v1336
        %v3380 = vsel %vm3353, %v371, %v1338
        %v3381 = vsel %vm3353, %v372, %v1340
        %v3382 = vsel %vm3353, %v373, %v1342
        %v3383 = vsel %vm3353, %v374, %v1344
        %v3384 = vsel %vm3353, %v375, %v1346
        %v3385 = vsel %vm3353, %v376, %v1348
        %v3386 = vsel %vm3353, %v377, %v1350
        %v3387 = vsel %vm3353, %v378, %v1352
        %v3388 = vsel %vm3353, %v379, %v1354
        %v3389 = vsel %vm3353, %v380, %v1356
        %v3390 = vsel %vm3353, %v381, %v1358
        %v3391 = vsel %vm3353, %v382, %v1360
        %v3392 = vsel %vm3353, %v383, %v1362
        %v3393 = vsel %vm3353, %v384, %v1364
        %v3394 = vsel %vm3353, %v385, %v1366
        %v3395 = vsel %vm3353, %v386, %v1368
        %v3396 = vsel %vm3353, %v387, %v1370
        %v3397 = vsel %vm3353, %v388, %v1372
        %v3398 = vsel %vm3353, %v389, %v1374
        %v3399 = vsel %vm3353, %v390, %v1376
        %v3400 = vsel %vm3353, %v391, %v1378
        %v3401 = vsel %vm3353, %v392, %v1380
        %v3402 = vsel %vm3353, %v393, %v1382
        %v3403 = vsel %vm3353, %v394, %v1384
        %v3404 = vsel %vm3353, %v395, %v1386
        %v3405 = vsel %vm3353, %v396, %v1388
        %v3406 = vsel %vm3353, %v397, %v1390
        %v3407 = vsel %vm3353, %v398, %v1392
        %v3408 = vsel %vm3353, %v399, %v1394
        %v3409 = vsel %vm3353, %v400, %v1396
        %v3410 = vsel %vm3353, %v401, %v1398
        %v3411 = vsel %vm3353, %v402, %v1400
        %v3412 = vsel %vm3353, %v403, %v1402
        %v3413 = vsel %vm3353, %v404, %v1404
        %v3414 = vsel %vm3353, %v405, %v1406
        %v3415 = vsel %vm3353, %v406, %v1408
        %v3416 = vsel %vm3353, %v407, %v1410
        %v3417 = vsel %vm3353, %v408, %v1412
        %v3418 = vsel %vm3353, %v409, %v1414
        %v3419 = vsel %vm3353, %v410, %v1416
        %v3420 = vsel %vm3353, %v411, %v1418
        %v3421 = vsel %vm3353, %v412, %v1420
        %v3422 = vsel %vm3353, %v413, %v1422
        %v3423 = vsel %vm3353, %v414, %v1424
        %v3424 = vsel %vm3353, %v415, %v1426
        %v3425 = vsel %vm3353, %v416, %v1428
        %v3426 = vsel %vm3353, %v417, %v1430
        %v3427 = vsel %vm3353, %v418, %v1432
        %v3428 = vsel %vm3353, %v419, %v1434
        %v3429 = vsel %vm3353, %v420, %v1436
        %v3430 = vsel %vm3353, %v421, %v1438
        %v3431 = vsel %vm3353, %v422, %v1440
        %v3432 = vsel %vm3353, %v423, %v1442
        %v3433 = vsel %vm3353, %v424, %v1444
        %v3434 = vsel %vm3353, %v425, %v1446
        %v3435 = vsel %vm3353, %v426, %v1448
        %v3436 = vsel %vm3353, %v427, %v1450
        %v3437 = vsel %vm3353, %v428, %v1452
        %v3438 = vsel %vm3353, %v429, %v1454
        %v3439 = vsel %vm3353, %v430, %v1456
        %v3440 = vsel %vm3353, %v431, %v1458
        %v3441 = vsel %vm3353, %v432, %v1460
        %v3442 = vsel %vm3353, %v433, %v1462
        %v3443 = vsel %vm3353, %v434, %v1464
        %v3444 = vsel %vm3353, %v435, %v1466
        %v3445 = vsel %vm3353, %v436, %v1468
        %v3446 = vsel %vm3353, %v437, %v1470
        %v3447 = vsel %vm3353, %v438, %v1472
        %v3448 = vsel %vm3353, %v439, %v1474
        %v3449 = vsel %vm3353, %v440, %v1476
        %v3450 = vsel %vm3353, %v441, %v1478
        %v3451 = vsel %vm3353, %v442, %v1480
        %v3452 = vsel %vm3353, %v443, %v1482
        %v3453 = vsel %vm3353, %v444, %v1484
        %v3454 = vsel %vm3353, %v445, %v1486
        %v3455 = vsel %vm3353, %v446, %v1488
        %v3456 = vsel %vm3353, %v447, %v1490
        %v3457 = vsel %vm3353, %v448, %v1492
        %v3458 = vsel %vm3353, %v449, %v1494
        %v3459 = vsel %vm3353, %v450, %v1496
        %v3460 = vsel %vm3353, %v451, %v1498
        %v3461 = vsel %vm3353, %v452, %v1500
        %v3462 = vsel %vm3353, %v453, %v1502
        %v3463 = vsel %vm3353, %v454, %v1504
        %v3464 = vsel %vm3353, %v455, %v1506
        %v3465 = vsel %vm3353, %v456, %v1508
        %v3466 = vsel %vm3353, %v457, %v1510
        %v3467 = vsel %vm3353, %v458, %v1512
        %v3468 = vsel %vm3353, %v459, %v1514
        %v3469 = vsel %vm3353, %v460, %v1516
        %v3470 = vsel %vm3353, %v461, %v1518
        %v3471 = vsel %vm3353, %v462, %v1520
        %v3472 = vsel %vm3353, %v463, %v1522
        %v3473 = vsel %vm3353, %v464, %v1524
        %v3474 = vsel %vm3353, %v465, %v1526
        %v3475 = vsel %vm3353, %v466, %v1528
        %v3476 = vsel %vm3353, %v467, %v1530
        %v3477 = vsel %vm3353, %v468, %v1532
        %v3478 = vsel %vm3353, %v469, %v1534
        %v3479 = vsel %vm3353, %v470, %v1536
        %v3480 = vsel %vm3353, %v471, %v1538
        %v3481 = vsel %vm3353, %v472, %v1540
        %v3482 = vsel %vm3353, %v473, %v1542
        %v3483 = vsel %vm3353, %v474, %v1544
        %v3484 = vsel %vm3353, %v475, %v1546
        %v3485 = vsel %vm3353, %v476, %v1548
        %v3486 = vsel %vm3353, %v477, %v1550
        %v3487 = vsel %vm3353, %v478, %v1552
        %v3488 = vsel %vm3353, %v479, %v1554
        %v3489 = vsel %vm3353, %v480, %v1556
        %v3490 = vsel %vm3353, %v481, %v1558
        %v3491 = vsel %vm3353, %v482, %v1560
        %v3492 = vsel %vm3353, %v483, %v1562
        %v3493 = vsel %vm3353, %v484, %v1564
        %v3494 = vsel %vm3353, %v485, %v1566
        %v3495 = vsel %vm3353, %v486, %v1568
        %v3496 = vsel %vm3353, %v487, %v1570
        %v3497 = vsel %vm3353, %v488, %v1572
        %v3498 = vsel %vm3353, %v489, %v1574
        %v3499 = vsel %vm3353, %v490, %v1576
        %v3500 = vsel %vm3353, %v491, %v1578
        %v3501 = vsel %vm3353, %v492, %v1580
        %v3502 = vsel %vm3353, %v493, %v1582
        %v3503 = vsel %vm3353, %v494, %v1584
        %v3504 = vsel %vm3353, %v495, %v1586
        %v3505 = vsel %vm3353, %v496, %v1588
        %v3506 = vsel %vm3353, %v497, %v1590
        %v3507 = vsel %vm3353, %v498, %v1592
        %v3508 = vsel %vm3353, %v499, %v1594
        %v3509 = vsel %vm3353, %v500, %v1596
        %v3510 = vsel %vm3353, %v501, %v1598
        %v3511 = vsel %vm3353, %v502, %v1600
        %v3512 = vsel %vm3353, %v503, %v1602
        %v3513 = vsel %vm3353, %v504, %v1604
        %v3514 = vsel %vm3353, %v505, %v1606
        %v3515 = vsel %vm3353, %v506, %v1608
        %v3516 = vsel %vm3353, %v507, %v1610
        %v3517 = vsel %vm3353, %v508, %v1612
        %v3518 = vsel %vm3353, %v509, %v1614
        %v3519 = vsel %vm3353, %v510, %v1616
        %v3520 = vsel %vm3353, %v511, %v1618
        %v3521 = vsel %vm3353, %v512, %v1620
        %v3522 = vsel %vm3353, %v513, %v1622
        %v3523 = vsel %vm3353, %v514, %v1624
        %v3524 = vsel %vm3353, %v515, %v1626
        %v3525 = vsel %vm3353, %v516, %v1628
        %v3526 = vsel %vm3353, %v517, %v1630
        %v3527 = vsel %vm3353, %v518, %v1632
        %v3528 = vsel %vm3353, %v519, %v1634
        %v3529 = vsel %vm3353, %v520, %v1636
        %v3530 = vsel %vm3353, %v521, %v1638
        %v3531 = vsel %vm3353, %v522, %v1640
        %v3532 = vsel %vm3353, %v523, %v1642
        %v3533 = vsel %vm3353, %v524, %v1644
        %v3534 = vsel %vm3353, %v525, %v1646
        %v3535 = vsel %vm3353, %v526, %v1648
        %v3536 = vsel %vm3353, %v527, %v1650
        %v3537 = vsel %vm3353, %v528, %v1652
        %v3538 = vsel %vm3353, %v529, %v1654
        %v3539 = vsel %vm3353, %v530, %v1656
        %v3540 = vsel %vm3353, %v531, %v1658
        %v3541 = vsel %vm3353, %v532, %v1660
        %vm3542 = vcmask 523264
        %v3543 = vsel %vm3542, %v3354, %v2038
        %v3544 = vsel %vm3542, %v3355, %v2040
        %v3545 = vsel %vm3542, %v3356, %v2042
        %v3546 = vsel %vm3542, %v3357, %v2044
        %v3547 = vsel %vm3542, %v3358, %v2046
        %v3548 = vsel %vm3542, %v3359, %v2048
        %v3549 = vsel %vm3542, %v3360, %v2050
        %v3550 = vsel %vm3542, %v3361, %v2052
        %v3551 = vsel %vm3542, %v3362, %v2054
        %v3552 = vsel %vm3542, %v3363, %v2056
        %v3553 = vsel %vm3542, %v3364, %v2058
        %v3554 = vsel %vm3542, %v3365, %v2060
        %v3555 = vsel %vm3542, %v3366, %v2062
        %v3556 = vsel %vm3542, %v3367, %v2064
        %v3557 = vsel %vm3542, %v3368, %v2066
        %v3558 = vsel %vm3542, %v3369, %v2068
        %v3559 = vsel %vm3542, %v3370, %v2070
        %v3560 = vsel %vm3542, %v3371, %v2072
        %v3561 = vsel %vm3542, %v3372, %v2074
        %v3562 = vsel %vm3542, %v3373, %v2076
        %v3563 = vsel %vm3542, %v3374, %v2078
        %v3564 = vsel %vm3542, %v3375, %v2080
        %v3565 = vsel %vm3542, %v3376, %v2082
        %v3566 = vsel %vm3542, %v3377, %v2084
        %v3567 = vsel %vm3542, %v3378, %v2086
        %v3568 = vsel %vm3542, %v3379, %v2088
        %v3569 = vsel %vm3542, %v3380, %v2090
        %v3570 = vsel %vm3542, %v3381, %v2092
        %v3571 = vsel %vm3542, %v3382, %v2094
        %v3572 = vsel %vm3542, %v3383, %v2096
        %v3573 = vsel %vm3542, %v3384, %v2098
        %v3574 = vsel %vm3542, %v3385, %v2100
        %v3575 = vsel %vm3542, %v3386, %v2102
        %v3576 = vsel %vm3542, %v3387, %v2104
        %v3577 = vsel %vm3542, %v3388, %v2106
        %v3578 = vsel %vm3542, %v3389, %v2108
        %v3579 = vsel %vm3542, %v3390, %v2110
        %v3580 = vsel %vm3542, %v3391, %v2112
        %v3581 = vsel %vm3542, %v3392, %v2114
        %v3582 = vsel %vm3542, %v3393, %v2116
        %v3583 = vsel %vm3542, %v3394, %v2118
        %v3584 = vsel %vm3542, %v3395, %v2120
        %v3585 = vsel %vm3542, %v3396, %v2122
        %v3586 = vsel %vm3542, %v3397, %v2124
        %v3587 = vsel %vm3542, %v3398, %v2126
        %v3588 = vsel %vm3542, %v3399, %v2128
        %v3589 = vsel %vm3542, %v3400, %v2130
        %v3590 = vsel %vm3542, %v3401, %v2132
        %v3591 = vsel %vm3542, %v3402, %v2134
        %v3592 = vsel %vm3542, %v3403, %v2136
        %v3593 = vsel %vm3542, %v3404, %v2138
        %v3594 = vsel %vm3542, %v3405, %v2140
        %v3595 = vsel %vm3542, %v3406, %v2142
        %v3596 = vsel %vm3542, %v3407, %v2144
        %v3597 = vsel %vm3542, %v3408, %v2146
        %v3598 = vsel %vm3542, %v3409, %v2148
        %v3599 = vsel %vm3542, %v3410, %v2150
        %v3600 = vsel %vm3542, %v3411, %v2152
        %v3601 = vsel %vm3542, %v3412, %v2154
        %v3602 = vsel %vm3542, %v3413, %v2156
        %v3603 = vsel %vm3542, %v3414, %v2158
        %v3604 = vsel %vm3542, %v3415, %v2160
        %v3605 = vsel %vm3542, %v3416, %v2162
        %v3606 = vsel %vm3542, %v3417, %v2164
        %v3607 = vsel %vm3542, %v3418, %v2166
        %v3608 = vsel %vm3542, %v3419, %v2168
        %v3609 = vsel %vm3542, %v3420, %v2170
        %v3610 = vsel %vm3542, %v3421, %v2172
        %v3611 = vsel %vm3542, %v3422, %v2174
        %v3612 = vsel %vm3542, %v3423, %v2176
        %v3613 = vsel %vm3542, %v3424, %v2178
        %v3614 = vsel %vm3542, %v3425, %v2180
        %v3615 = vsel %vm3542, %v3426, %v2182
        %v3616 = vsel %vm3542, %v3427, %v2184
        %v3617 = vsel %vm3542, %v3428, %v2186
        %v3618 = vsel %vm3542, %v3429, %v2188
        %v3619 = vsel %vm3542, %v3430, %v2190
        %v3620 = vsel %vm3542, %v3431, %v2192
        %v3621 = vsel %vm3542, %v3432, %v2194
        %v3622 = vsel %vm3542, %v3433, %v2196
        %v3623 = vsel %vm3542, %v3434, %v2198
        %v3624 = vsel %vm3542, %v3435, %v2200
        %v3625 = vsel %vm3542, %v3436, %v2202
        %v3626 = vsel %vm3542, %v3437, %v2204
        %v3627 = vsel %vm3542, %v3438, %v2206
        %v3628 = vsel %vm3542, %v3439, %v2208
        %v3629 = vsel %vm3542, %v3440, %v2210
        %v3630 = vsel %vm3542, %v3441, %v2212
        %v3631 = vsel %vm3542, %v3442, %v2214
        %v3632 = vsel %vm3542, %v3443, %v2216
        %v3633 = vsel %vm3542, %v3444, %v2218
        %v3634 = vsel %vm3542, %v3445, %v2220
        %v3635 = vsel %vm3542, %v3446, %v2222
        %v3636 = vsel %vm3542, %v3447, %v2224
        %v3637 = vsel %vm3542, %v3448, %v2226
        %v3638 = vsel %vm3542, %v3449, %v2228
        %v3639 = vsel %vm3542, %v3450, %v2230
        %v3640 = vsel %vm3542, %v3451, %v2232
        %v3641 = vsel %vm3542, %v3452, %v2234
        %v3642 = vsel %vm3542, %v3453, %v2236
        %v3643 = vsel %vm3542, %v3454, %v2238
        %v3644 = vsel %vm3542, %v3455, %v2240
        %v3645 = vsel %vm3542, %v3456, %v2242
        %v3646 = vsel %vm3542, %v3457, %v2244
        %v3647 = vsel %vm3542, %v3458, %v2246
        %v3648 = vsel %vm3542, %v3459, %v2248
        %v3649 = vsel %vm3542, %v3460, %v2250
        %v3650 = vsel %vm3542, %v3461, %v2252
        %v3651 = vsel %vm3542, %v3462, %v2254
        %v3652 = vsel %vm3542, %v3463, %v2256
        %v3653 = vsel %vm3542, %v3464, %v2258
        %v3654 = vsel %vm3542, %v3465, %v2260
        %v3655 = vsel %vm3542, %v3466, %v2262
        %v3656 = vsel %vm3542, %v3467, %v2264
        %v3657 = vsel %vm3542, %v3468, %v2266
        %v3658 = vsel %vm3542, %v3469, %v2268
        %v3659 = vsel %vm3542, %v3470, %v2270
        %v3660 = vsel %vm3542, %v3471, %v2272
        %v3661 = vsel %vm3542, %v3472, %v2274
        %v3662 = vsel %vm3542, %v3473, %v2276
        %v3663 = vsel %vm3542, %v3474, %v2278
        %v3664 = vsel %vm3542, %v3475, %v2280
        %v3665 = vsel %vm3542, %v3476, %v2282
        %v3666 = vsel %vm3542, %v3477, %v2284
        %v3667 = vsel %vm3542, %v3478, %v2286
        %v3668 = vsel %vm3542, %v3479, %v2288
        %v3669 = vsel %vm3542, %v3480, %v2290
        %v3670 = vsel %vm3542, %v3481, %v2292
        %v3671 = vsel %vm3542, %v3482, %v2294
        %v3672 = vsel %vm3542, %v3483, %v2296
        %v3673 = vsel %vm3542, %v3484, %v2298
        %v3674 = vsel %vm3542, %v3485, %v2300
        %v3675 = vsel %vm3542, %v3486, %v2302
        %v3676 = vsel %vm3542, %v3487, %v2304
        %v3677 = vsel %vm3542, %v3488, %v2306
        %v3678 = vsel %vm3542, %v3489, %v2308
        %v3679 = vsel %vm3542, %v3490, %v2310
        %v3680 = vsel %vm3542, %v3491, %v2312
        %v3681 = vsel %vm3542, %v3492, %v2314
        %v3682 = vsel %vm3542, %v3493, %v2316
        %v3683 = vsel %vm3542, %v3494, %v2318
        %v3684 = vsel %vm3542, %v3495, %v2320
        %v3685 = vsel %vm3542, %v3496, %v2322
        %v3686 = vsel %vm3542, %v3497, %v2324
        %v3687 = vsel %vm3542, %v3498, %v2326
        %v3688 = vsel %vm3542, %v3499, %v2328
        %v3689 = vsel %vm3542, %v3500, %v2330
        %v3690 = vsel %vm3542, %v3501, %v2332
        %v3691 = vsel %vm3542, %v3502, %v2334
        %v3692 = vsel %vm3542, %v3503, %v2336
        %v3693 = vsel %vm3542, %v3504, %v2338
        %v3694 = vsel %vm3542, %v3505, %v2340
        %v3695 = vsel %vm3542, %v3506, %v2342
        %v3696 = vsel %vm3542, %v3507, %v2344
        %v3697 = vsel %vm3542, %v3508, %v2346
        %v3698 = vsel %vm3542, %v3509, %v2348
        %v3699 = vsel %vm3542, %v3510, %v2350
        %v3700 = vsel %vm3542, %v3511, %v2352
        %v3701 = vsel %vm3542, %v3512, %v2354
        %v3702 = vsel %vm3542, %v3513, %v2356
        %v3703 = vsel %vm3542, %v3514, %v2358
        %v3704 = vsel %vm3542, %v3515, %v2360
        %v3705 = vsel %vm3542, %v3516, %v2362
        %v3706 = vsel %vm3542, %v3517, %v2364
        %v3707 = vsel %vm3542, %v3518, %v2366
        %v3708 = vsel %vm3542, %v3519, %v2368
        %v3709 = vsel %vm3542, %v3520, %v2370
        %v3710 = vsel %vm3542, %v3521, %v2372
        %v3711 = vsel %vm3542, %v3522, %v2374
        %v3712 = vsel %vm3542, %v3523, %v2376
        %v3713 = vsel %vm3542, %v3524, %v2378
        %v3714 = vsel %vm3542, %v3525, %v2380
        %v3715 = vsel %vm3542, %v3526, %v2382
        %v3716 = vsel %vm3542, %v3527, %v2384
        %v3717 = vsel %vm3542, %v3528, %v2386
        %v3718 = vsel %vm3542, %v3529, %v2388
        %v3719 = vsel %vm3542, %v3530, %v2390
        %v3720 = vsel %vm3542, %v3531, %v2392
        %v3721 = vsel %vm3542, %v3532, %v2394
        %v3722 = vsel %vm3542, %v3533, %v2396
        %v3723 = vsel %vm3542, %v3534, %v2398
        %v3724 = vsel %vm3542, %v3535, %v2400
        %v3725 = vsel %vm3542, %v3536, %v2402
        %v3726 = vsel %vm3542, %v3537, %v2404
        %v3727 = vsel %vm3542, %v3538, %v2406
        %v3728 = vsel %vm3542, %v3539, %v2408
        %v3729 = vsel %vm3542, %v3540, %v2410
        %v3730 = vsel %vm3542, %v3541, %v2412
        %vm3731 = vcmask 654336
        %v3732 = vsel %vm3731, %v3543, %v2790
        %v3733 = vsel %vm3731, %v3544, %v2792
        %v3734 = vsel %vm3731, %v3545, %v2794
        %v3735 = vsel %vm3731, %v3546, %v2796
        %v3736 = vsel %vm3731, %v3547, %v2798
        %v3737 = vsel %vm3731, %v3548, %v2800
        %v3738 = vsel %vm3731, %v3549, %v2802
        %v3739 = vsel %vm3731, %v3550, %v2804
        %v3740 = vsel %vm3731, %v3551, %v2806
        %v3741 = vsel %vm3731, %v3552, %v2808
        %v3742 = vsel %vm3731, %v3553, %v2810
        %v3743 = vsel %vm3731, %v3554, %v2812
        %v3744 = vsel %vm3731, %v3555, %v2814
        %v3745 = vsel %vm3731, %v3556, %v2816
        %v3746 = vsel %vm3731, %v3557, %v2818
        %v3747 = vsel %vm3731, %v3558, %v2820
        %v3748 = vsel %vm3731, %v3559, %v2822
        %v3749 = vsel %vm3731, %v3560, %v2824
        %v3750 = vsel %vm3731, %v3561, %v2826
        %v3751 = vsel %vm3731, %v3562, %v2828
        %v3752 = vsel %vm3731, %v3563, %v2830
        %v3753 = vsel %vm3731, %v3564, %v2832
        %v3754 = vsel %vm3731, %v3565, %v2834
        %v3755 = vsel %vm3731, %v3566, %v2836
        %v3756 = vsel %vm3731, %v3567, %v2838
        %v3757 = vsel %vm3731, %v3568, %v2840
        %v3758 = vsel %vm3731, %v3569, %v2842
        %v3759 = vsel %vm3731, %v3570, %v2844
        %v3760 = vsel %vm3731, %v3571, %v2846
        %v3761 = vsel %vm3731, %v3572, %v2848
        %v3762 = vsel %vm3731, %v3573, %v2850
        %v3763 = vsel %vm3731, %v3574, %v2852
        %v3764 = vsel %vm3731, %v3575, %v2854
        %v3765 = vsel %vm3731, %v3576, %v2856
        %v3766 = vsel %vm3731, %v3577, %v2858
        %v3767 = vsel %vm3731, %v3578, %v2860
        %v3768 = vsel %vm3731, %v3579, %v2862
        %v3769 = vsel %vm3731, %v3580, %v2864
        %v3770 = vsel %vm3731, %v3581, %v2866
        %v3771 = vsel %vm3731, %v3582, %v2868
        %v3772 = vsel %vm3731, %v3583, %v2870
        %v3773 = vsel %vm3731, %v3584, %v2872
        %v3774 = vsel %vm3731, %v3585, %v2874
        %v3775 = vsel %vm3731, %v3586, %v2876
        %v3776 = vsel %vm3731, %v3587, %v2878
        %v3777 = vsel %vm3731, %v3588, %v2880
        %v3778 = vsel %vm3731, %v3589, %v2882
        %v3779 = vsel %vm3731, %v3590, %v2884
        %v3780 = vsel %vm3731, %v3591, %v2886
        %v3781 = vsel %vm3731, %v3592, %v2888
        %v3782 = vsel %vm3731, %v3593, %v2890
        %v3783 = vsel %vm3731, %v3594, %v2892
        %v3784 = vsel %vm3731, %v3595, %v2894
        %v3785 = vsel %vm3731, %v3596, %v2896
        %v3786 = vsel %vm3731, %v3597, %v2898
        %v3787 = vsel %vm3731, %v3598, %v2900
        %v3788 = vsel %vm3731, %v3599, %v2902
        %v3789 = vsel %vm3731, %v3600, %v2904
        %v3790 = vsel %vm3731, %v3601, %v2906
        %v3791 = vsel %vm3731, %v3602, %v2908
        %v3792 = vsel %vm3731, %v3603, %v2910
        %v3793 = vsel %vm3731, %v3604, %v2912
        %v3794 = vsel %vm3731, %v3605, %v2914
        %v3795 = vsel %vm3731, %v3606, %v2916
        %v3796 = vsel %vm3731, %v3607, %v2918
        %v3797 = vsel %vm3731, %v3608, %v2920
        %v3798 = vsel %vm3731, %v3609, %v2922
        %v3799 = vsel %vm3731, %v3610, %v2924
        %v3800 = vsel %vm3731, %v3611, %v2926
        %v3801 = vsel %vm3731, %v3612, %v2928
        %v3802 = vsel %vm3731, %v3613, %v2930
        %v3803 = vsel %vm3731, %v3614, %v2932
        %v3804 = vsel %vm3731, %v3615, %v2934
        %v3805 = vsel %vm3731, %v3616, %v2936
        %v3806 = vsel %vm3731, %v3617, %v2938
        %v3807 = vsel %vm3731, %v3618, %v2940
        %v3808 = vsel %vm3731, %v3619, %v2942
        %v3809 = vsel %vm3731, %v3620, %v2944
        %v3810 = vsel %vm3731, %v3621, %v2946
        %v3811 = vsel %vm3731, %v3622, %v2948
        %v3812 = vsel %vm3731, %v3623, %v2950
        %v3813 = vsel %vm3731, %v3624, %v2952
        %v3814 = vsel %vm3731, %v3625, %v2954
        %v3815 = vsel %vm3731, %v3626, %v2956
        %v3816 = vsel %vm3731, %v3627, %v2958
        %v3817 = vsel %vm3731, %v3628, %v2960
        %v3818 = vsel %vm3731, %v3629, %v2962
        %v3819 = vsel %vm3731, %v3630, %v2964
        %v3820 = vsel %vm3731, %v3631, %v2966
        %v3821 = vsel %vm3731, %v3632, %v2968
        %v3822 = vsel %vm3731, %v3633, %v2970
        %v3823 = vsel %vm3731, %v3634, %v2972
        %v3824 = vsel %vm3731, %v3635, %v2974
        %v3825 = vsel %vm3731, %v3636, %v2976
        %v3826 = vsel %vm3731, %v3637, %v2978
        %v3827 = vsel %vm3731, %v3638, %v2980
        %v3828 = vsel %vm3731, %v3639, %v2982
        %v3829 = vsel %vm3731, %v3640, %v2984
        %v3830 = vsel %vm3731, %v3641, %v2986
        %v3831 = vsel %vm3731, %v3642, %v2988
        %v3832 = vsel %vm3731, %v3643, %v2990
        %v3833 = vsel %vm3731, %v3644, %v2992
        %v3834 = vsel %vm3731, %v3645, %v2994
        %v3835 = vsel %vm3731, %v3646, %v2996
        %v3836 = vsel %vm3731, %v3647, %v2998
        %v3837 = vsel %vm3731, %v3648, %v3000
        %v3838 = vsel %vm3731, %v3649, %v3002
        %v3839 = vsel %vm3731, %v3650, %v3004
        %v3840 = vsel %vm3731, %v3651, %v3006
        %v3841 = vsel %vm3731, %v3652, %v3008
        %v3842 = vsel %vm3731, %v3653, %v3010
        %v3843 = vsel %vm3731, %v3654, %v3012
        %v3844 = vsel %vm3731, %v3655, %v3014
        %v3845 = vsel %vm3731, %v3656, %v3016
        %v3846 = vsel %vm3731, %v3657, %v3018
        %v3847 = vsel %vm3731, %v3658, %v3020
        %v3848 = vsel %vm3731, %v3659, %v3022
        %v3849 = vsel %vm3731, %v3660, %v3024
        %v3850 = vsel %vm3731, %v3661, %v3026
        %v3851 = vsel %vm3731, %v3662, %v3028
        %v3852 = vsel %vm3731, %v3663, %v3030
        %v3853 = vsel %vm3731, %v3664, %v3032
        %v3854 = vsel %vm3731, %v3665, %v3034
        %v3855 = vsel %vm3731, %v3666, %v3036
        %v3856 = vsel %vm3731, %v3667, %v3038
        %v3857 = vsel %vm3731, %v3668, %v3040
        %v3858 = vsel %vm3731, %v3669, %v3042
        %v3859 = vsel %vm3731, %v3670, %v3044
        %v3860 = vsel %vm3731, %v3671, %v3046
        %v3861 = vsel %vm3731, %v3672, %v3048
        %v3862 = vsel %vm3731, %v3673, %v3050
        %v3863 = vsel %vm3731, %v3674, %v3052
        %v3864 = vsel %vm3731, %v3675, %v3054
        %v3865 = vsel %vm3731, %v3676, %v3056
        %v3866 = vsel %vm3731, %v3677, %v3058
        %v3867 = vsel %vm3731, %v3678, %v3060
        %v3868 = vsel %vm3731, %v3679, %v3062
        %v3869 = vsel %vm3731, %v3680, %v3064
        %v3870 = vsel %vm3731, %v3681, %v3066
        %v3871 = vsel %vm3731, %v3682, %v3068
        %v3872 = vsel %vm3731, %v3683, %v3070
        %v3873 = vsel %vm3731, %v3684, %v3072
        %v3874 = vsel %vm3731, %v3685, %v3074
        %v3875 = vsel %vm3731, %v3686, %v3076
        %v3876 = vsel %vm3731, %v3687, %v3078
        %v3877 = vsel %vm3731, %v3688, %v3080
        %v3878 = vsel %vm3731, %v3689, %v3082
        %v3879 = vsel %vm3731, %v3690, %v3084
        %v3880 = vsel %vm3731, %v3691, %v3086
        %v3881 = vsel %vm3731, %v3692, %v3088
        %v3882 = vsel %vm3731, %v3693, %v3090
        %v3883 = vsel %vm3731, %v3694, %v3092
        %v3884 = vsel %vm3731, %v3695, %v3094
        %v3885 = vsel %vm3731, %v3696, %v3096
        %v3886 = vsel %vm3731, %v3697, %v3098
        %v3887 = vsel %vm3731, %v3698, %v3100
        %v3888 = vsel %vm3731, %v3699, %v3102
        %v3889 = vsel %vm3731, %v3700, %v3104
        %v3890 = vsel %vm3731, %v3701, %v3106
        %v3891 = vsel %vm3731, %v3702, %v3108
        %v3892 = vsel %vm3731, %v3703, %v3110
        %v3893 = vsel %vm3731, %v3704, %v3112
        %v3894 = vsel %vm3731, %v3705, %v3114
        %v3895 = vsel %vm3731, %v3706, %v3116
        %v3896 = vsel %vm3731, %v3707, %v3118
        %v3897 = vsel %vm3731, %v3708, %v3120
        %v3898 = vsel %vm3731, %v3709, %v3122
        %v3899 = vsel %vm3731, %v3710, %v3124
        %v3900 = vsel %vm3731, %v3711, %v3126
        %v3901 = vsel %vm3731, %v3712, %v3128
        %v3902 = vsel %vm3731, %v3713, %v3130
        %v3903 = vsel %vm3731, %v3714, %v3132
        %v3904 = vsel %vm3731, %v3715, %v3134
        %v3905 = vsel %vm3731, %v3716, %v3136
        %v3906 = vsel %vm3731, %v3717, %v3138
        %v3907 = vsel %vm3731, %v3718, %v3140
        %v3908 = vsel %vm3731, %v3719, %v3142
        %v3909 = vsel %vm3731, %v3720, %v3144
        %v3910 = vsel %vm3731, %v3721, %v3146
        %v3911 = vsel %vm3731, %v3722, %v3148
        %v3912 = vsel %vm3731, %v3723, %v3150
        %v3913 = vsel %vm3731, %v3724, %v3152
        %v3914 = vsel %vm3731, %v3725, %v3154
        %v3915 = vsel %vm3731, %v3726, %v3156
        %v3916 = vsel %vm3731, %v3727, %v3158
        %v3917 = vsel %vm3731, %v3728, %v3160
        %v3918 = vsel %vm3731, %v3729, %v3162
        %v3919 = vsel %vm3731, %v3730, %v3164
        %vm3920 = vcmask 719872
        %3921 = vst.msk [vmem:[%s283] sm:$0xff] %vm3920, %v3732
        %3922 = vst.msk [vmem:[%s283 + $0x8] sm:$0xff] %vm3920, %v3733
        %3923 = vst.msk [vmem:[%s283 + $0x10] sm:$0xff] %vm3920, %v3734
        %3924 = vst.msk [vmem:[%s283 + $0x18] sm:$0xff] %vm3920, %v3735
        %3925 = vst.msk [vmem:[%s283 + $0x20] sm:$0xff] %vm3920, %v3736
        %3926 = vst.msk [vmem:[%s283 + $0x28] sm:$0xff] %vm3920, %v3737
        %3927 = vst.msk [vmem:[%s283 + $0x30] sm:$0xff] %vm3920, %v3738
        %3928 = vst.msk [vmem:[%s283 + $0x38] sm:$0xff] %vm3920, %v3739
        %3929 = vst.msk [vmem:[%s283 + $0x40] sm:$0xff] %vm3920, %v3740
        %3930 = vst.msk [vmem:[%s283 + $0x48] sm:$0xff] %vm3920, %v3741
        %3931 = vst.msk [vmem:[%s283 + $0x50] sm:$0xff] %vm3920, %v3742
        %3932 = vst.msk [vmem:[%s283 + $0x58] sm:$0xff] %vm3920, %v3743
        %3933 = vst.msk [vmem:[%s283 + $0x60] sm:$0xff] %vm3920, %v3744
        %3934 = vst.msk [vmem:[%s283 + $0x68] sm:$0xff] %vm3920, %v3745
        %3935 = vst.msk [vmem:[%s283 + $0x70] sm:$0xff] %vm3920, %v3746
        %3936 = vst.msk [vmem:[%s283 + $0x78] sm:$0xff] %vm3920, %v3747
        %3937 = vst.msk [vmem:[%s283 + $0x80] sm:$0xff] %vm3920, %v3748
        %3938 = vst.msk [vmem:[%s283 + $0x88] sm:$0xff] %vm3920, %v3749
        %3939 = vst.msk [vmem:[%s283 + $0x90] sm:$0xff] %vm3920, %v3750
        %3940 = vst.msk [vmem:[%s283 + $0x98] sm:$0xff] %vm3920, %v3751
        %3941 = vst.msk [vmem:[%s283 + $0xa0] sm:$0xff] %vm3920, %v3752
        %3942 = vst.msk [vmem:[%s283 + $0xa8] sm:$0xff] %vm3920, %v3753
        %3943 = vst.msk [vmem:[%s283 + $0xb0] sm:$0xff] %vm3920, %v3754
        %3944 = vst.msk [vmem:[%s283 + $0xb8] sm:$0xff] %vm3920, %v3755
        %3945 = vst.msk [vmem:[%s283 + $0xc0] sm:$0xff] %vm3920, %v3756
        %3946 = vst.msk [vmem:[%s283 + $0xc8] sm:$0xff] %vm3920, %v3757
        %3947 = vst.msk [vmem:[%s283 + $0xd0] sm:$0xff] %vm3920, %v3758
        %3948 = vst.msk [vmem:[%s283 + $0xd8] sm:$0xff] %vm3920, %v3759
        %3949 = vst.msk [vmem:[%s283 + $0xe0] sm:$0xff] %vm3920, %v3760
        %3950 = vst.msk [vmem:[%s283 + $0xe8] sm:$0xff] %vm3920, %v3761
        %3951 = vst.msk [vmem:[%s283 + $0xf0] sm:$0xff] %vm3920, %v3762
        %3952 = vst.msk [vmem:[%s283 + $0xf8] sm:$0xff] %vm3920, %v3763
        %3953 = vst.msk [vmem:[%s283 + $0x100] sm:$0xff] %vm3920, %v3764
        %3954 = vst.msk [vmem:[%s283 + $0x108] sm:$0xff] %vm3920, %v3765
        %3955 = vst.msk [vmem:[%s283 + $0x110] sm:$0xff] %vm3920, %v3766
        %3956 = vst.msk [vmem:[%s283 + $0x118] sm:$0xff] %vm3920, %v3767
        %3957 = vst.msk [vmem:[%s283 + $0x120] sm:$0xff] %vm3920, %v3768
        %3958 = vst.msk [vmem:[%s283 + $0x128] sm:$0xff] %vm3920, %v3769
        %3959 = vst.msk [vmem:[%s283 + $0x130] sm:$0xff] %vm3920, %v3770
        %3960 = vst.msk [vmem:[%s283 + $0x138] sm:$0xff] %vm3920, %v3771
        %3961 = vst.msk [vmem:[%s283 + $0x140] sm:$0xff] %vm3920, %v3772
        %3962 = vst.msk [vmem:[%s283 + $0x148] sm:$0xff] %vm3920, %v3773
        %3963 = vst.msk [vmem:[%s283 + $0x150] sm:$0xff] %vm3920, %v3774
        %3964 = vst.msk [vmem:[%s283 + $0x158] sm:$0xff] %vm3920, %v3775
        %3965 = vst.msk [vmem:[%s283 + $0x160] sm:$0xff] %vm3920, %v3776
        %3966 = vst.msk [vmem:[%s283 + $0x168] sm:$0xff] %vm3920, %v3777
        %3967 = vst.msk [vmem:[%s283 + $0x170] sm:$0xff] %vm3920, %v3778
        %3968 = vst.msk [vmem:[%s283 + $0x178] sm:$0xff] %vm3920, %v3779
        %3969 = vst.msk [vmem:[%s283 + $0x180] sm:$0xff] %vm3920, %v3780
        %3970 = vst.msk [vmem:[%s283 + $0x188] sm:$0xff] %vm3920, %v3781
        %3971 = vst.msk [vmem:[%s283 + $0x190] sm:$0xff] %vm3920, %v3782
        %3972 = vst.msk [vmem:[%s283 + $0x198] sm:$0xff] %vm3920, %v3783
        %3973 = vst.msk [vmem:[%s283 + $0x1a0] sm:$0xff] %vm3920, %v3784
        %3974 = vst.msk [vmem:[%s283 + $0x1a8] sm:$0xff] %vm3920, %v3785
        %3975 = vst.msk [vmem:[%s283 + $0x1b0] sm:$0xff] %vm3920, %v3786
        %3976 = vst.msk [vmem:[%s283 + $0x1b8] sm:$0xff] %vm3920, %v3787
        %3977 = vst.msk [vmem:[%s283 + $0x1c0] sm:$0xff] %vm3920, %v3788
        %3978 = vst.msk [vmem:[%s283 + $0x1c8] sm:$0xff] %vm3920, %v3789
        %3979 = vst.msk [vmem:[%s283 + $0x1d0] sm:$0xff] %vm3920, %v3790
        %3980 = vst.msk [vmem:[%s283 + $0x1d8] sm:$0xff] %vm3920, %v3791
        %3981 = vst.msk [vmem:[%s283 + $0x1e0] sm:$0xff] %vm3920, %v3792
        %3982 = vst.msk [vmem:[%s283 + $0x1e8] sm:$0xff] %vm3920, %v3793
        %3983 = vst.msk [vmem:[%s283 + $0x1f0] sm:$0xff] %vm3920, %v3794
        %3984 = vst.msk [vmem:[%s283 + $0x1f8] sm:$0xff] %vm3920, %v3795
        %3985 = vst.msk [vmem:[%s283 + $0x200] sm:$0xff] %vm3920, %v3796
        %3986 = vst.msk [vmem:[%s283 + $0x208] sm:$0xff] %vm3920, %v3797
        %3987 = vst.msk [vmem:[%s283 + $0x210] sm:$0xff] %vm3920, %v3798
        %3988 = vst.msk [vmem:[%s283 + $0x218] sm:$0xff] %vm3920, %v3799
        %3989 = vst.msk [vmem:[%s283 + $0x220] sm:$0xff] %vm3920, %v3800
        %3990 = vst.msk [vmem:[%s283 + $0x228] sm:$0xff] %vm3920, %v3801
        %3991 = vst.msk [vmem:[%s283 + $0x230] sm:$0xff] %vm3920, %v3802
        %3992 = vst.msk [vmem:[%s283 + $0x238] sm:$0xff] %vm3920, %v3803
        %3993 = vst.msk [vmem:[%s283 + $0x240] sm:$0xff] %vm3920, %v3804
        %3994 = vst.msk [vmem:[%s283 + $0x248] sm:$0xff] %vm3920, %v3805
        %3995 = vst.msk [vmem:[%s283 + $0x250] sm:$0xff] %vm3920, %v3806
        %3996 = vst.msk [vmem:[%s283 + $0x258] sm:$0xff] %vm3920, %v3807
        %3997 = vst.msk [vmem:[%s283 + $0x260] sm:$0xff] %vm3920, %v3808
        %3998 = vst.msk [vmem:[%s283 + $0x268] sm:$0xff] %vm3920, %v3809
        %3999 = vst.msk [vmem:[%s283 + $0x270] sm:$0xff] %vm3920, %v3810
        %4000 = vst.msk [vmem:[%s283 + $0x278] sm:$0xff] %vm3920, %v3811
        %4001 = vst.msk [vmem:[%s283 + $0x280] sm:$0xff] %vm3920, %v3812
        %4002 = vst.msk [vmem:[%s283 + $0x288] sm:$0xff] %vm3920, %v3813
        %4003 = vst.msk [vmem:[%s283 + $0x290] sm:$0xff] %vm3920, %v3814
        %4004 = vst.msk [vmem:[%s283 + $0x298] sm:$0xff] %vm3920, %v3815
        %4005 = vst.msk [vmem:[%s283 + $0x2a0] sm:$0xff] %vm3920, %v3816
        %4006 = vst.msk [vmem:[%s283 + $0x2a8] sm:$0xff] %vm3920, %v3817
        %4007 = vst.msk [vmem:[%s283 + $0x2b0] sm:$0xff] %vm3920, %v3818
        %4008 = vst.msk [vmem:[%s283 + $0x2b8] sm:$0xff] %vm3920, %v3819
        %4009 = vst.msk [vmem:[%s283 + $0x2c0] sm:$0xff] %vm3920, %v3820
        %4010 = vst.msk [vmem:[%s283 + $0x2c8] sm:$0xff] %vm3920, %v3821
        %4011 = vst.msk [vmem:[%s283 + $0x2d0] sm:$0xff] %vm3920, %v3822
        %4012 = vst.msk [vmem:[%s283 + $0x2d8] sm:$0xff] %vm3920, %v3823
        %4013 = vst.msk [vmem:[%s283 + $0x2e0] sm:$0xff] %vm3920, %v3824
        %4014 = vst.msk [vmem:[%s283 + $0x2e8] sm:$0xff] %vm3920, %v3825
        %4015 = vst.msk [vmem:[%s283 + $0x2f0] sm:$0xff] %vm3920, %v3826
        %4016 = vst.msk [vmem:[%s283 + $0x2f8] sm:$0xff] %vm3920, %v3827
        %4017 = vst.msk [vmem:[%s283 + $0x300] sm:$0xff] %vm3920, %v3828
        %4018 = vst.msk [vmem:[%s283 + $0x308] sm:$0xff] %vm3920, %v3829
        %4019 = vst.msk [vmem:[%s283 + $0x310] sm:$0xff] %vm3920, %v3830
        %4020 = vst.msk [vmem:[%s283 + $0x318] sm:$0xff] %vm3920, %v3831
        %4021 = vst.msk [vmem:[%s283 + $0x320] sm:$0xff] %vm3920, %v3832
        %4022 = vst.msk [vmem:[%s283 + $0x328] sm:$0xff] %vm3920, %v3833
        %4023 = vst.msk [vmem:[%s283 + $0x330] sm:$0xff] %vm3920, %v3834
        %4024 = vst.msk [vmem:[%s283 + $0x338] sm:$0xff] %vm3920, %v3835
        %4025 = vst.msk [vmem:[%s283 + $0x340] sm:$0xff] %vm3920, %v3836
        %4026 = vst.msk [vmem:[%s283 + $0x348] sm:$0xff] %vm3920, %v3837
        %4027 = vst.msk [vmem:[%s283 + $0x350] sm:$0xff] %vm3920, %v3838
        %4028 = vst.msk [vmem:[%s283 + $0x358] sm:$0xff] %vm3920, %v3839
        %4029 = vst.msk [vmem:[%s283 + $0x360] sm:$0xff] %vm3920, %v3840
        %4030 = vst.msk [vmem:[%s283 + $0x368] sm:$0xff] %vm3920, %v3841
        %4031 = vst.msk [vmem:[%s283 + $0x370] sm:$0xff] %vm3920, %v3842
        %4032 = vst.msk [vmem:[%s283 + $0x378] sm:$0xff] %vm3920, %v3843
        %4033 = vst.msk [vmem:[%s283 + $0x380] sm:$0xff] %vm3920, %v3844
        %4034 = vst.msk [vmem:[%s283 + $0x388] sm:$0xff] %vm3920, %v3845
        %4035 = vst.msk [vmem:[%s283 + $0x390] sm:$0xff] %vm3920, %v3846
        %4036 = vst.msk [vmem:[%s283 + $0x398] sm:$0xff] %vm3920, %v3847
        %4037 = vst.msk [vmem:[%s283 + $0x3a0] sm:$0xff] %vm3920, %v3848
        %4038 = vst.msk [vmem:[%s283 + $0x3a8] sm:$0xff] %vm3920, %v3849
        %4039 = vst.msk [vmem:[%s283 + $0x3b0] sm:$0xff] %vm3920, %v3850
        %4040 = vst.msk [vmem:[%s283 + $0x3b8] sm:$0xff] %vm3920, %v3851
        %4041 = vst.msk [vmem:[%s283 + $0x3c0] sm:$0xff] %vm3920, %v3852
        %4042 = vst.msk [vmem:[%s283 + $0x3c8] sm:$0xff] %vm3920, %v3853
        %4043 = vst.msk [vmem:[%s283 + $0x3d0] sm:$0xff] %vm3920, %v3854
        %4044 = vst.msk [vmem:[%s283 + $0x3d8] sm:$0xff] %vm3920, %v3855
        %4045 = vst.msk [vmem:[%s283 + $0x3e0] sm:$0xff] %vm3920, %v3856
        %4046 = vst.msk [vmem:[%s283 + $0x3e8] sm:$0xff] %vm3920, %v3857
        %4047 = vst.msk [vmem:[%s283 + $0x3f0] sm:$0xff] %vm3920, %v3858
        %4048 = vst.msk [vmem:[%s283 + $0x3f8] sm:$0xff] %vm3920, %v3859
        %4049 = vst.msk [vmem:[%s283 + $0x400] sm:$0xff] %vm3920, %v3860
        %4050 = vst.msk [vmem:[%s283 + $0x408] sm:$0xff] %vm3920, %v3861
        %4051 = vst.msk [vmem:[%s283 + $0x410] sm:$0xff] %vm3920, %v3862
        %4052 = vst.msk [vmem:[%s283 + $0x418] sm:$0xff] %vm3920, %v3863
        %4053 = vst.msk [vmem:[%s283 + $0x420] sm:$0xff] %vm3920, %v3864
        %4054 = vst.msk [vmem:[%s283 + $0x428] sm:$0xff] %vm3920, %v3865
        %4055 = vst.msk [vmem:[%s283 + $0x430] sm:$0xff] %vm3920, %v3866
        %4056 = vst.msk [vmem:[%s283 + $0x438] sm:$0xff] %vm3920, %v3867
        %4057 = vst.msk [vmem:[%s283 + $0x440] sm:$0xff] %vm3920, %v3868
        %4058 = vst.msk [vmem:[%s283 + $0x448] sm:$0xff] %vm3920, %v3869
        %4059 = vst.msk [vmem:[%s283 + $0x450] sm:$0xff] %vm3920, %v3870
        %4060 = vst.msk [vmem:[%s283 + $0x458] sm:$0xff] %vm3920, %v3871
        %4061 = vst.msk [vmem:[%s283 + $0x460] sm:$0xff] %vm3920, %v3872
        %4062 = vst.msk [vmem:[%s283 + $0x468] sm:$0xff] %vm3920, %v3873
        %4063 = vst.msk [vmem:[%s283 + $0x470] sm:$0xff] %vm3920, %v3874
        %4064 = vst.msk [vmem:[%s283 + $0x478] sm:$0xff] %vm3920, %v3875
        %4065 = vst.msk [vmem:[%s283 + $0x480] sm:$0xff] %vm3920, %v3876
        %4066 = vst.msk [vmem:[%s283 + $0x488] sm:$0xff] %vm3920, %v3877
        %4067 = vst.msk [vmem:[%s283 + $0x490] sm:$0xff] %vm3920, %v3878
        %4068 = vst.msk [vmem:[%s283 + $0x498] sm:$0xff] %vm3920, %v3879
        %4069 = vst.msk [vmem:[%s283 + $0x4a0] sm:$0xff] %vm3920, %v3880
        %4070 = vst.msk [vmem:[%s283 + $0x4a8] sm:$0xff] %vm3920, %v3881
        %4071 = vst.msk [vmem:[%s283 + $0x4b0] sm:$0xff] %vm3920, %v3882
        %4072 = vst.msk [vmem:[%s283 + $0x4b8] sm:$0xff] %vm3920, %v3883
        %4073 = vst.msk [vmem:[%s283 + $0x4c0] sm:$0xff] %vm3920, %v3884
        %4074 = vst.msk [vmem:[%s283 + $0x4c8] sm:$0xff] %vm3920, %v3885
        %4075 = vst.msk [vmem:[%s283 + $0x4d0] sm:$0xff] %vm3920, %v3886
        %4076 = vst.msk [vmem:[%s283 + $0x4d8] sm:$0xff] %vm3920, %v3887
        %4077 = vst.msk [vmem:[%s283 + $0x4e0] sm:$0xff] %vm3920, %v3888
        %4078 = vst.msk [vmem:[%s283 + $0x4e8] sm:$0xff] %vm3920, %v3889
        %4079 = vst.msk [vmem:[%s283 + $0x4f0] sm:$0xff] %vm3920, %v3890
        %4080 = vst.msk [vmem:[%s283 + $0x4f8] sm:$0xff] %vm3920, %v3891
        %4081 = vst.msk [vmem:[%s283 + $0x500] sm:$0xff] %vm3920, %v3892
        %4082 = vst.msk [vmem:[%s283 + $0x508] sm:$0xff] %vm3920, %v3893
        %4083 = vst.msk [vmem:[%s283 + $0x510] sm:$0xff] %vm3920, %v3894
        %4084 = vst.msk [vmem:[%s283 + $0x518] sm:$0xff] %vm3920, %v3895
        %4085 = vst.msk [vmem:[%s283 + $0x520] sm:$0xff] %vm3920, %v3896
        %4086 = vst.msk [vmem:[%s283 + $0x528] sm:$0xff] %vm3920, %v3897
        %4087 = vst.msk [vmem:[%s283 + $0x530] sm:$0xff] %vm3920, %v3898
        %4088 = vst.msk [vmem:[%s283 + $0x538] sm:$0xff] %vm3920, %v3899
        %4089 = vst.msk [vmem:[%s283 + $0x540] sm:$0xff] %vm3920, %v3900
        %4090 = vst.msk [vmem:[%s283 + $0x548] sm:$0xff] %vm3920, %v3901
        %4091 = vst.msk [vmem:[%s283 + $0x550] sm:$0xff] %vm3920, %v3902
        %4092 = vst.msk [vmem:[%s283 + $0x558] sm:$0xff] %vm3920, %v3903
        %4093 = vst.msk [vmem:[%s283 + $0x560] sm:$0xff] %vm3920, %v3904
        %4094 = vst.msk [vmem:[%s283 + $0x568] sm:$0xff] %vm3920, %v3905
        %4095 = vst.msk [vmem:[%s283 + $0x570] sm:$0xff] %vm3920, %v3906
        %4096 = vst.msk [vmem:[%s283 + $0x578] sm:$0xff] %vm3920, %v3907
        %4097 = vst.msk [vmem:[%s283 + $0x580] sm:$0xff] %vm3920, %v3908
        %4098 = vst.msk [vmem:[%s283 + $0x588] sm:$0xff] %vm3920, %v3909
        %4099 = vst.msk [vmem:[%s283 + $0x590] sm:$0xff] %vm3920, %v3910
        %4100 = vst.msk [vmem:[%s283 + $0x598] sm:$0xff] %vm3920, %v3911
        %4101 = vst.msk [vmem:[%s283 + $0x5a0] sm:$0xff] %vm3920, %v3912
        %4102 = vst.msk [vmem:[%s283 + $0x5a8] sm:$0xff] %vm3920, %v3913
        %4103 = vst.msk [vmem:[%s283 + $0x5b0] sm:$0xff] %vm3920, %v3914
        %4104 = vst.msk [vmem:[%s283 + $0x5b8] sm:$0xff] %vm3920, %v3915
        %4105 = vst.msk [vmem:[%s283 + $0x5c0] sm:$0xff] %vm3920, %v3916
        %4106 = vst.msk [vmem:[%s283 + $0x5c8] sm:$0xff] %vm3920, %v3917
        %4107 = vst.msk [vmem:[%s283 + $0x5d0] sm:$0xff] %vm3920, %v3918
        %4108 = vst.msk [vmem:[%s283 + $0x5d8] sm:$0xff] %vm3920, %v3919
        %s4109 = sand.u32 %s127, 1
        %s4110 = sand.u32 %s127, 1
        %s4111 = smul.addr %s4110, 1504
        %s4112 = scalar_lea.vmem [#allocation2], %s4111
        // Predicated region
        $region37: #{tpu_custom_call.1} parent=35 // pred_check
          %p4113 = pneg %p137
        $region38: #{tpu_custom_call.1} parent=35 // pred_check_branch
          %4115 = sbr.rel (%p4113) target = $region40
        $region39: #{tpu_custom_call.1} parent=35 // pred_region
          %s4116 = smul.u32 188, %s15
          %s4117 = ssub.s32 375, %s4116
          %p4118 = scmp.lt.s32.totalorder %s4117, 188
          %s4119 = scalar_select %p4118, %s4117, 188
          %s4120 = smul.u32 8, %s4119
          %p4121 = scmp.ne.s32.totalorder 0, %s4120
          %s4122 = smul.addr %s4116, 8
          %s4123 = scalar_lea.vmem %s4, %s4122
          // Predicated region
          $region41: #{tpu_custom_call.1} parent=39 // pred_check
            %p4124 = pneg %p4121
          $region42: #{tpu_custom_call.1} parent=39 // pred_check_branch
            %4126 = sbr.rel (%p4124) target = $region44
          $region43: #{tpu_custom_call.1} parent=39 // pred_region
            // Predicated region
            $region45: #{tpu_custom_call.1} parent=43 // pred_check
              _
            $region46: #{tpu_custom_call.1} parent=43 // pred_check_branch
              %4128 = sbr.rel (0) target = $region48
            $region47: #{tpu_custom_call.1} parent=43 // pred_region
              // Predicated region
              $region67: #{tpu_custom_call.1} parent=47 // pred_check
                _
              $region68: #{tpu_custom_call.1} parent=47 // pred_check_branch
                %4240 = sbr.rel (0) target = $region70
              $region69: #{tpu_custom_call.1} parent=47 // pred_region
                %s4241 = sshrl.u32 %s4119, 5
                // While loop
                $region71: #{tpu_custom_call.1} parent=69 // loop_pre_header
                  _
                $region72: #{tpu_custom_call.1} parent=69 // loop_header
                  %s4243 = sphi 0, %s4245
                  %p4244 = scmp.ge.s32.totalorder %s4243, %s4241
                  %s4248 = sphi 0, %s4317
                  %s4249 = sphi %s4112, %s4320
                  %s4250 = sphi %s4123, %s4321
                $region73: #{tpu_custom_call.1} parent=69 // loop_header_branch
                  %4247 = sbr.rel (%p4244) target = $region77
                $region74: #{tpu_custom_call.1} parent=69 // loop_body
                  %v4251 = vld [vmem:[%s4249] sm:$0xff]
                  %4252 = vst [vmem:[%s4250] sm:$0xff] %v4251
                  %v4253 = vld [vmem:[%s4249 + $0x8] sm:$0xff]
                  %4254 = vst [vmem:[%s4250 + $0x8] sm:$0xff] %v4253
                  %v4255 = vld [vmem:[%s4249 + $0x10] sm:$0xff]
                  %4256 = vst [vmem:[%s4250 + $0x10] sm:$0xff] %v4255
                  %v4257 = vld [vmem:[%s4249 + $0x18] sm:$0xff]
                  %4258 = vst [vmem:[%s4250 + $0x18] sm:$0xff] %v4257
                  %v4259 = vld [vmem:[%s4249 + $0x20] sm:$0xff]
                  %4260 = vst [vmem:[%s4250 + $0x20] sm:$0xff] %v4259
                  %v4261 = vld [vmem:[%s4249 + $0x28] sm:$0xff]
                  %4262 = vst [vmem:[%s4250 + $0x28] sm:$0xff] %v4261
                  %v4263 = vld [vmem:[%s4249 + $0x30] sm:$0xff]
                  %4264 = vst [vmem:[%s4250 + $0x30] sm:$0xff] %v4263
                  %v4265 = vld [vmem:[%s4249 + $0x38] sm:$0xff]
                  %4266 = vst [vmem:[%s4250 + $0x38] sm:$0xff] %v4265
                  %v4267 = vld [vmem:[%s4249 + $0x40] sm:$0xff]
                  %4268 = vst [vmem:[%s4250 + $0x40] sm:$0xff] %v4267
                  %v4269 = vld [vmem:[%s4249 + $0x48] sm:$0xff]
                  %4270 = vst [vmem:[%s4250 + $0x48] sm:$0xff] %v4269
                  %v4271 = vld [vmem:[%s4249 + $0x50] sm:$0xff]
                  %4272 = vst [vmem:[%s4250 + $0x50] sm:$0xff] %v4271
                  %v4273 = vld [vmem:[%s4249 + $0x58] sm:$0xff]
                  %4274 = vst [vmem:[%s4250 + $0x58] sm:$0xff] %v4273
                  %v4275 = vld [vmem:[%s4249 + $0x60] sm:$0xff]
                  %4276 = vst [vmem:[%s4250 + $0x60] sm:$0xff] %v4275
                  %v4277 = vld [vmem:[%s4249 + $0x68] sm:$0xff]
                  %4278 = vst [vmem:[%s4250 + $0x68] sm:$0xff] %v4277
                  %v4279 = vld [vmem:[%s4249 + $0x70] sm:$0xff]
                  %4280 = vst [vmem:[%s4250 + $0x70] sm:$0xff] %v4279
                  %v4281 = vld [vmem:[%s4249 + $0x78] sm:$0xff]
                  %4282 = vst [vmem:[%s4250 + $0x78] sm:$0xff] %v4281
                  %v4283 = vld [vmem:[%s4249 + $0x80] sm:$0xff]
                  %4284 = vst [vmem:[%s4250 + $0x80] sm:$0xff] %v4283
                  %v4285 = vld [vmem:[%s4249 + $0x88] sm:$0xff]
                  %4286 = vst [vmem:[%s4250 + $0x88] sm:$0xff] %v4285
                  %v4287 = vld [vmem:[%s4249 + $0x90] sm:$0xff]
                  %4288 = vst [vmem:[%s4250 + $0x90] sm:$0xff] %v4287
                  %v4289 = vld [vmem:[%s4249 + $0x98] sm:$0xff]
                  %4290 = vst [vmem:[%s4250 + $0x98] sm:$0xff] %v4289
                  %v4291 = vld [vmem:[%s4249 + $0xa0] sm:$0xff]
                  %4292 = vst [vmem:[%s4250 + $0xa0] sm:$0xff] %v4291
                  %v4293 = vld [vmem:[%s4249 + $0xa8] sm:$0xff]
                  %4294 = vst [vmem:[%s4250 + $0xa8] sm:$0xff] %v4293
                  %v4295 = vld [vmem:[%s4249 + $0xb0] sm:$0xff]
                  %4296 = vst [vmem:[%s4250 + $0xb0] sm:$0xff] %v4295
                  %v4297 = vld [vmem:[%s4249 + $0xb8] sm:$0xff]
                  %4298 = vst [vmem:[%s4250 + $0xb8] sm:$0xff] %v4297
                  %v4299 = vld [vmem:[%s4249 + $0xc0] sm:$0xff]
                  %4300 = vst [vmem:[%s4250 + $0xc0] sm:$0xff] %v4299
                  %v4301 = vld [vmem:[%s4249 + $0xc8] sm:$0xff]
                  %4302 = vst [vmem:[%s4250 + $0xc8] sm:$0xff] %v4301
                  %v4303 = vld [vmem:[%s4249 + $0xd0] sm:$0xff]
                  %4304 = vst [vmem:[%s4250 + $0xd0] sm:$0xff] %v4303
                  %v4305 = vld [vmem:[%s4249 + $0xd8] sm:$0xff]
                  %4306 = vst [vmem:[%s4250 + $0xd8] sm:$0xff] %v4305
                  %v4307 = vld [vmem:[%s4249 + $0xe0] sm:$0xff]
                  %4308 = vst [vmem:[%s4250 + $0xe0] sm:$0xff] %v4307
                  %v4309 = vld [vmem:[%s4249 + $0xe8] sm:$0xff]
                  %4310 = vst [vmem:[%s4250 + $0xe8] sm:$0xff] %v4309
                  %v4311 = vld [vmem:[%s4249 + $0xf0] sm:$0xff]
                  %4312 = vst [vmem:[%s4250 + $0xf0] sm:$0xff] %v4311
                  %v4313 = vld [vmem:[%s4249 + $0xf8] sm:$0xff]
                  %4314 = vst [vmem:[%s4250 + $0xf8] sm:$0xff] %v4313
                  %s4315 = sadd.s32 1, %s4248
                  %p4316 = scmp.ge.s32.totalorder %s4315, %s4241
                  %s4317 = scalar_select %p4316, 0, %s4315
                  %s4318 = smul.u32 %s4317, 256
                  %s4319 = smul.u32 %s4317, 256
                  %s4320 = scalar_lea.vmem %s4112, %s4318 [#allocation2]
                  %s4321 = scalar_lea.vmem %s4123, %s4319
                $region75: #{tpu_custom_call.1} parent=69 // loop_footer
                  %s4245 = sadd.s32 %s4243, 1
                $region76: #{tpu_custom_call.1} parent=69 // loop_footer_branch
                  %4242 = sbr.rel target = $region72
                $region77: #{tpu_custom_call.1} parent=69 // loop_exit
                  _
                %s4322 = sshrl.u32 %s4119, 5
                %s4323 = sand.u32 %s4119, 31
                %s4324 = smul.u32 %s4322, 32
                %s4325 = smul.u32 8, %s4324
                %s4326 = scalar_lea.vmem %s4112, %s4325 [#allocation2]
                %s4327 = smul.u32 8, %s4324
                %s4328 = scalar_lea.vmem %s4123, %s4327
                // While loop
                $region78: #{tpu_custom_call.1} parent=69 // loop_pre_header
                  _
                $region79: #{tpu_custom_call.1} parent=69 // loop_header
                  %s4330 = sphi 0, %s4332
                  %p4331 = scmp.ge.s32.totalorder %s4330, %s4323
                  %s4335 = sphi 0, %s4342
                  %s4336 = sphi %s4326, %s4345
                  %s4337 = sphi %s4328, %s4346
                $region80: #{tpu_custom_call.1} parent=69 // loop_header_branch
                  %4334 = sbr.rel (%p4331) target = $region84
                $region81: #{tpu_custom_call.1} parent=69 // loop_body
                  %v4338 = vld [vmem:[%s4336] sm:$0xff]
                  %4339 = vst [vmem:[%s4337] sm:$0xff] %v4338
                  %s4340 = sadd.s32 1, %s4335
                  %p4341 = scmp.ge.s32.totalorder %s4340, %s4323
                  %s4342 = scalar_select %p4341, 0, %s4340
                  %s4343 = smul.u32 %s4342, 8
                  %s4344 = smul.u32 %s4342, 8
                  %s4345 = scalar_lea.vmem %s4326, %s4343 [#allocation2]
                  %s4346 = scalar_lea.vmem %s4328, %s4344
                $region82: #{tpu_custom_call.1} parent=69 // loop_footer
                  %s4332 = sadd.s32 %s4330, 1
                $region83: #{tpu_custom_call.1} parent=69 // loop_footer_branch
                  %4329 = sbr.rel target = $region79
                $region84: #{tpu_custom_call.1} parent=69 // loop_exit
                  _
              $region70: #{tpu_custom_call.1} parent=47 // pred_fallthru
                _
              // Predicated region
              $region85: #{tpu_custom_call.1} parent=47 // pred_check
                _
              $region86: #{tpu_custom_call.1} parent=47 // pred_check_branch
                %4348 = sbr.rel target = $region88
              $region87: #{tpu_custom_call.1} parent=47 // pred_region
                _
              $region88: #{tpu_custom_call.1} parent=47 // pred_fallthru
                _
            $region48: #{tpu_custom_call.1} parent=43 // pred_fallthru
              _
            // Predicated region
            $region49: #{tpu_custom_call.1} parent=43 // pred_check
              _
            $region50: #{tpu_custom_call.1} parent=43 // pred_check_branch
              %4130 = sbr.rel target = $region52
            $region51: #{tpu_custom_call.1} parent=43 // pred_region
              %s4132 = ssub.s32 256, 1
              %s4133 = sshrl.u32 %s4119, 5
              // While loop
              $region53: #{tpu_custom_call.1} parent=51 // loop_pre_header
                _
              $region54: #{tpu_custom_call.1} parent=51 // loop_header
                %s4135 = sphi 0, %s4137
                %p4136 = scmp.ge.s32.totalorder %s4135, %s4133
                %s4140 = sphi 0, %s4209
                %s4141 = sphi %s4112, %s4212
                %s4142 = sphi %s4123, %s4213
              $region55: #{tpu_custom_call.1} parent=51 // loop_header_branch
                %4139 = sbr.rel (%p4136) target = $region59
              $region56: #{tpu_custom_call.1} parent=51 // loop_body
                %v4143 = vld [vmem:[%s4141] sm:%s4132]
                %4144 = vst [vmem:[%s4142] sm:%s4132] %v4143
                %v4145 = vld [vmem:[%s4141 + $0x8] sm:%s4132]
                %4146 = vst [vmem:[%s4142 + $0x8] sm:%s4132] %v4145
                %v4147 = vld [vmem:[%s4141 + $0x10] sm:%s4132]
                %4148 = vst [vmem:[%s4142 + $0x10] sm:%s4132] %v4147
                %v4149 = vld [vmem:[%s4141 + $0x18] sm:%s4132]
                %4150 = vst [vmem:[%s4142 + $0x18] sm:%s4132] %v4149
                %v4151 = vld [vmem:[%s4141 + $0x20] sm:%s4132]
                %4152 = vst [vmem:[%s4142 + $0x20] sm:%s4132] %v4151
                %v4153 = vld [vmem:[%s4141 + $0x28] sm:%s4132]
                %4154 = vst [vmem:[%s4142 + $0x28] sm:%s4132] %v4153
                %v4155 = vld [vmem:[%s4141 + $0x30] sm:%s4132]
                %4156 = vst [vmem:[%s4142 + $0x30] sm:%s4132] %v4155
                %v4157 = vld [vmem:[%s4141 + $0x38] sm:%s4132]
                %4158 = vst [vmem:[%s4142 + $0x38] sm:%s4132] %v4157
                %v4159 = vld [vmem:[%s4141 + $0x40] sm:%s4132]
                %4160 = vst [vmem:[%s4142 + $0x40] sm:%s4132] %v4159
                %v4161 = vld [vmem:[%s4141 + $0x48] sm:%s4132]
                %4162 = vst [vmem:[%s4142 + $0x48] sm:%s4132] %v4161
                %v4163 = vld [vmem:[%s4141 + $0x50] sm:%s4132]
                %4164 = vst [vmem:[%s4142 + $0x50] sm:%s4132] %v4163
                %v4165 = vld [vmem:[%s4141 + $0x58] sm:%s4132]
                %4166 = vst [vmem:[%s4142 + $0x58] sm:%s4132] %v4165
                %v4167 = vld [vmem:[%s4141 + $0x60] sm:%s4132]
                %4168 = vst [vmem:[%s4142 + $0x60] sm:%s4132] %v4167
                %v4169 = vld [vmem:[%s4141 + $0x68] sm:%s4132]
                %4170 = vst [vmem:[%s4142 + $0x68] sm:%s4132] %v4169
                %v4171 = vld [vmem:[%s4141 + $0x70] sm:%s4132]
                %4172 = vst [vmem:[%s4142 + $0x70] sm:%s4132] %v4171
                %v4173 = vld [vmem:[%s4141 + $0x78] sm:%s4132]
                %4174 = vst [vmem:[%s4142 + $0x78] sm:%s4132] %v4173
                %v4175 = vld [vmem:[%s4141 + $0x80] sm:%s4132]
                %4176 = vst [vmem:[%s4142 + $0x80] sm:%s4132] %v4175
                %v4177 = vld [vmem:[%s4141 + $0x88] sm:%s4132]
                %4178 = vst [vmem:[%s4142 + $0x88] sm:%s4132] %v4177
                %v4179 = vld [vmem:[%s4141 + $0x90] sm:%s4132]
                %4180 = vst [vmem:[%s4142 + $0x90] sm:%s4132] %v4179
                %v4181 = vld [vmem:[%s4141 + $0x98] sm:%s4132]
                %4182 = vst [vmem:[%s4142 + $0x98] sm:%s4132] %v4181
                %v4183 = vld [vmem:[%s4141 + $0xa0] sm:%s4132]
                %4184 = vst [vmem:[%s4142 + $0xa0] sm:%s4132] %v4183
                %v4185 = vld [vmem:[%s4141 + $0xa8] sm:%s4132]
                %4186 = vst [vmem:[%s4142 + $0xa8] sm:%s4132] %v4185
                %v4187 = vld [vmem:[%s4141 + $0xb0] sm:%s4132]
                %4188 = vst [vmem:[%s4142 + $0xb0] sm:%s4132] %v4187
                %v4189 = vld [vmem:[%s4141 + $0xb8] sm:%s4132]
                %4190 = vst [vmem:[%s4142 + $0xb8] sm:%s4132] %v4189
                %v4191 = vld [vmem:[%s4141 + $0xc0] sm:%s4132]
                %4192 = vst [vmem:[%s4142 + $0xc0] sm:%s4132] %v4191
                %v4193 = vld [vmem:[%s4141 + $0xc8] sm:%s4132]
                %4194 = vst [vmem:[%s4142 + $0xc8] sm:%s4132] %v4193
                %v4195 = vld [vmem:[%s4141 + $0xd0] sm:%s4132]
                %4196 = vst [vmem:[%s4142 + $0xd0] sm:%s4132] %v4195
                %v4197 = vld [vmem:[%s4141 + $0xd8] sm:%s4132]
                %4198 = vst [vmem:[%s4142 + $0xd8] sm:%s4132] %v4197
                %v4199 = vld [vmem:[%s4141 + $0xe0] sm:%s4132]
                %4200 = vst [vmem:[%s4142 + $0xe0] sm:%s4132] %v4199
                %v4201 = vld [vmem:[%s4141 + $0xe8] sm:%s4132]
                %4202 = vst [vmem:[%s4142 + $0xe8] sm:%s4132] %v4201
                %v4203 = vld [vmem:[%s4141 + $0xf0] sm:%s4132]
                %4204 = vst [vmem:[%s4142 + $0xf0] sm:%s4132] %v4203
                %v4205 = vld [vmem:[%s4141 + $0xf8] sm:%s4132]
                %4206 = vst [vmem:[%s4142 + $0xf8] sm:%s4132] %v4205
                %s4207 = sadd.s32 1, %s4140
                %p4208 = scmp.ge.s32.totalorder %s4207, %s4133
                %s4209 = scalar_select %p4208, 0, %s4207
                %s4210 = smul.u32 %s4209, 256
                %s4211 = smul.u32 %s4209, 256
                %s4212 = scalar_lea.vmem %s4112, %s4210 [#allocation2]
                %s4213 = scalar_lea.vmem %s4123, %s4211
              $region57: #{tpu_custom_call.1} parent=51 // loop_footer
                %s4137 = sadd.s32 %s4135, 1
              $region58: #{tpu_custom_call.1} parent=51 // loop_footer_branch
                %4134 = sbr.rel target = $region54
              $region59: #{tpu_custom_call.1} parent=51 // loop_exit
                _
              %s4214 = sshrl.u32 %s4119, 5
              %s4215 = sand.u32 %s4119, 31
              %s4216 = smul.u32 %s4214, 32
              %s4217 = smul.u32 8, %s4216
              %s4218 = scalar_lea.vmem %s4112, %s4217 [#allocation2]
              %s4219 = smul.u32 8, %s4216
              %s4220 = scalar_lea.vmem %s4123, %s4219
              // While loop
              $region60: #{tpu_custom_call.1} parent=51 // loop_pre_header
                _
              $region61: #{tpu_custom_call.1} parent=51 // loop_header
                %s4222 = sphi 0, %s4224
                %p4223 = scmp.ge.s32.totalorder %s4222, %s4215
                %s4227 = sphi 0, %s4234
                %s4228 = sphi %s4218, %s4237
                %s4229 = sphi %s4220, %s4238
              $region62: #{tpu_custom_call.1} parent=51 // loop_header_branch
                %4226 = sbr.rel (%p4223) target = $region66
              $region63: #{tpu_custom_call.1} parent=51 // loop_body
                %v4230 = vld [vmem:[%s4228] sm:%s4132]
                %4231 = vst [vmem:[%s4229] sm:%s4132] %v4230
                %s4232 = sadd.s32 1, %s4227
                %p4233 = scmp.ge.s32.totalorder %s4232, %s4215
                %s4234 = scalar_select %p4233, 0, %s4232
                %s4235 = smul.u32 %s4234, 8
                %s4236 = smul.u32 %s4234, 8
                %s4237 = scalar_lea.vmem %s4218, %s4235 [#allocation2]
                %s4238 = scalar_lea.vmem %s4220, %s4236
              $region64: #{tpu_custom_call.1} parent=51 // loop_footer
                %s4224 = sadd.s32 %s4222, 1
              $region65: #{tpu_custom_call.1} parent=51 // loop_footer_branch
                %4221 = sbr.rel target = $region61
              $region66: #{tpu_custom_call.1} parent=51 // loop_exit
                _
            $region52: #{tpu_custom_call.1} parent=43 // pred_fallthru
              _
          $region44: #{tpu_custom_call.1} parent=39 // pred_fallthru
            _
          %4349 = vnop
        $region40: #{tpu_custom_call.1} parent=35 // pred_fallthru
          _
      $region36: #{tpu_custom_call.1} parent=5 // pred_fallthru
        _
      %p4350 = scmp.le.s32.totalorder 2, %s10
      // Predicated region
      $region89: #{tpu_custom_call.1} parent=5 // pred_check
        %p4351 = pneg %p4350
      $region90: #{tpu_custom_call.1} parent=5 // pred_check_branch
        %4353 = sbr.rel (%p4351) target = $region92
      $region91: #{tpu_custom_call.1} parent=5 // pred_region
        %s4354 = ssub.s32 %s10, 2
        // Predicated region
        $region93: #{tpu_custom_call.1} parent=91 // pred_check
          %p4355 = pneg %p143
        $region94: #{tpu_custom_call.1} parent=91 // pred_check_branch
          %4357 = sbr.rel (%p4355) target = $region96
        $region95: #{tpu_custom_call.1} parent=91 // pred_region
          %s4358 = sand.u32 %s128, 1
          %s4359 = sand.u32 %s128, 1
          %s4360 = smul.addr %s4359, 1504
          %s4361 = scalar_lea.vmem [#allocation2], %s4360
        $region96: #{tpu_custom_call.1} parent=91 // pred_fallthru
          _
      $region92: #{tpu_custom_call.1} parent=5 // pred_fallthru
        _
    $region6: #{tpu_custom_call.1} parent=1 // loop_footer
      %s14 = sadd.s32 1, %s10
    $region7: #{tpu_custom_call.1} parent=1 // loop_footer_branch
      %9 = sbr.rel target = $region3
    $region8: #{tpu_custom_call.1} parent=1 // loop_exit
      _

</llo_original>
